<compile_context>
chip_gen: v5e
topology: v5e:2x2
jax: 0.10.0
libtpu: 0.0.40
codegen_flags: <defaults>
</compile_context>

<pallas_src>
import numpy as np
import jax
import jax.numpy as jnp
from jax import lax
from jax.experimental import pallas as pl
from jax.experimental.pallas import tpu as pltpu

EPS = 1e-5  # nn.BatchNorm2d default eps


# --------------------------------------------------------------------------
# Kernel A: [3x3 conv as one im2col matmul] + folded BN + ReLU + 2x2 pair-max
# --------------------------------------------------------------------------
def _conv_bn_relu_pairmax_kernel(Wo):
    def kernel(p_ref, w_ref, s_ref, b_ref, o_ref):
        # single MXU matmul (bf16 x bf16 -> f32 accumulate)
        acc = jnp.dot(p_ref[...], w_ref[...], preferred_element_type=jnp.float32)
        # folded BatchNorm + ReLU in f32
        y = jnp.maximum(acc * s_ref[...] + b_ref[...], 0.0)
        P = y.shape[0]
        Lw = P - Wo - 1
        v = jnp.maximum(y[:P - Wo, :], y[Wo:, :])          # vertical pair max
        win = jnp.maximum(v[:Lw, :], v[1:Lw + 1, :])       # horizontal pair max
        o_ref[...] = win.astype(o_ref.dtype)               # lane-dense bulk store
    return kernel


def conv3x3_bn_relu_maxpool(x_nhwc, w_hwio, scale, bias):
    """(N,H,W,Cin) -> MaxPool2d(Conv3x3+BN+ReLU) = (N,(H-2)//2,(W-2)//2,Cout) bf16."""
    N, H, W, Cin = x_nhwc.shape
    Cout = w_hwio.shape[-1]
    Ho, Wo = H - 2, W - 2
    Hp, Wp = Ho // 2, Wo // 2
    P = Ho * Wo
    Lw = P - Wo - 1
    # maxpool anchors always lie inside the valid pair-max rows (garbage rows that
    # straddle an output-row boundary are never selected)
    assert 2 * (Hp - 1) * Wo + 2 * (Wp - 1) < Lw

    # wrapper-side im2col: layout plumbing only, all FLOPs stay on the MXU
    parts = [x_nhwc[:, dh:dh + Ho, dw:dw + Wo, :] for dh in range(3) for dw in range(3)]
    patches = jnp.concatenate(parts, axis=-1).reshape(N, P, 9 * Cin).astype(jnp.bfloat16)
    w_flat = w_hwio.reshape(9 * Cin, Cout).astype(jnp.bfloat16)

    win = pl.pallas_call(
        _conv_bn_relu_pairmax_kernel(Wo),
        out_shape=jax.ShapeDtypeStruct((N, Lw, Cout), jnp.bfloat16),
        grid=(N,),
        in_specs=[
            pl.BlockSpec((None, P, 9 * Cin), lambda n: (n, 0, 0)),
            pl.BlockSpec((9 * Cin, Cout), lambda n: (0, 0)),
            pl.BlockSpec((1, Cout), lambda n: (0, 0)),
            pl.BlockSpec((1, Cout), lambda n: (0, 0)),
        ],
        out_specs=pl.BlockSpec((None, Lw, Cout), lambda n: (n, 0, 0)),
        compiler_params=pltpu.CompilerParams(dimension_semantics=("parallel",)),
    )(patches, w_flat, scale, bias)

    # stride-2 anchor selection of the pair-max map: tiny lane-dense XLA slice
    win = jnp.pad(win, ((0, 0), (0, P - Lw), (0, 0))).reshape(N, Ho, Wo, Cout)
    return win[:, 0:2 * Hp:2, 0:2 * Wp:2, :]


# --------------------------------------------------------------------------
# Kernel B: conv3 + BN + ReLU + AdaptiveAvgPool(2,2) (pooling matmul) + MLP head
# --------------------------------------------------------------------------
def _conv_bn_relu_avgpool_mlp_kernel(N):
    def kernel(p_ref, w_ref, s_ref, b_ref, pm_ref, w1_ref, b1_ref, w2_ref, b2_ref,
               o_ref):
        acc = jnp.dot(p_ref[...], w_ref[...], preferred_element_type=jnp.float32)
        y = jnp.maximum(acc * s_ref[...] + b_ref[...], 0.0)          # (N*P3, Cout)
        # adaptive avg-pool(2,2) as one small matmul with a constant block-diagonal
        # 0 / (1/bin) matrix; pooled row index = p*N + n, p = i*2 + j
        pooled = jnp.dot(pm_ref[...], y, preferred_element_type=jnp.float32)
        # batched head; torch NCHW flatten order absorbed in permuted fc1 rows
        h = b1_ref[...]
        for p in range(4):
            h = h + jnp.dot(pooled[p * N:(p + 1) * N, :].astype(w1_ref.dtype),
                            w1_ref[p], preferred_element_type=jnp.float32)
        h = jnp.maximum(h, 0.0)
        o_ref[...] = (jnp.dot(h.astype(w2_ref.dtype), w2_ref[...],
                              preferred_element_type=jnp.float32) + b2_ref[...])
    return kernel


def conv3x3_bn_relu_avgpool_mlp(x_nhwc, w_hwio, scale, bias, w1p, b1, w2, b2):
    N, H, W, Cin = x_nhwc.shape
    Cout = w_hwio.shape[-1]
    Ho, Wo = H - 2, W - 2
    assert Ho % 2 == 0 and Wo % 2 == 0, "even conv3 output map expected"
    # TODO(synk): odd conv3 output maps would need PyTorch's overlapping adaptive bins.
    P = Ho * Wo
    Dh = w1p.shape[-1]
    Do = w2.shape[-1]

    parts = [x_nhwc[:, dh:dh + Ho, dw:dw + Wo, :] for dh in range(3) for dw in range(3)]
    patches = (jnp.concatenate(parts, axis=-1)
               .reshape(N * P, 9 * Cin).astype(jnp.bfloat16))
    w_flat = w_hwio.reshape(9 * Cin, Cout).astype(jnp.bfloat16)

    # constant adaptive-avg-pool(2,2) matrix (built at trace time)
    bh, bw = Ho // 2, Wo // 2
    pm = np.zeros((4 * N, N * P), np.float32)
    for n in range(N):
        for i in range(2):
            for j in range(2):
                row = (i * 2 + j) * N + n
                for r in range(bh):
                    for c in range(bw):
                        pm[row, n * P + (i * bh + r) * Wo + (j * bw + c)] = 1.0 / (bh * bw)
    pm = jnp.asarray(pm)

    return pl.pallas_call(
        _conv_bn_relu_avgpool_mlp_kernel(N),
        out_shape=jax.ShapeDtypeStruct((N, Do), jnp.float32),
        grid=(1,),
        in_specs=[
            pl.BlockSpec((N * P, 9 * Cin), lambda i: (0, 0)),
            pl.BlockSpec((9 * Cin, Cout), lambda i: (0, 0)),
            pl.BlockSpec((1, Cout), lambda i: (0, 0)),
            pl.BlockSpec((1, Cout), lambda i: (0, 0)),
            pl.BlockSpec((4 * N, N * P), lambda i: (0, 0)),
            pl.BlockSpec((4, Cout, Dh), lambda i: (0, 0, 0)),
            pl.BlockSpec((1, Dh), lambda i: (0, 0)),
            pl.BlockSpec((Dh, Do), lambda i: (0, 0)),
            pl.BlockSpec((1, Do), lambda i: (0, 0)),
        ],
        out_specs=pl.BlockSpec((N, Do), lambda i: (0, 0)),
    )(patches, w_flat, scale, bias, pm,
      w1p.astype(jnp.bfloat16), b1.reshape(1, Dh),
      w2.astype(jnp.bfloat16), b2.reshape(1, Do))


# --------------------------------------------------------------------------
# Wrapper: full forward pass
# --------------------------------------------------------------------------
def _fold_bn(params, idx):
    w = params[f"conv{idx}_w"]                 # (3,3,Cin,Cout) HWIO, f32
    b = params[f"conv{idx}_b"]
    g = params[f"bn{idx}_gamma"]
    bt = params[f"bn{idx}_beta"]
    # inference BatchNorm with fresh running stats (mean=0, var=1); conv bias folded
    scale = g / jnp.sqrt(1.0 + EPS)
    bias = b * scale + bt
    cout = w.shape[-1]
    return w, scale.reshape(1, cout), bias.reshape(1, cout)


@jax.jit
def network_cnn_forward(x_nchw, params):
    x = jnp.transpose(x_nchw, (0, 2, 3, 1))                 # NCHW -> NHWC
    w, s, b = _fold_bn(params, 1)
    x = conv3x3_bn_relu_maxpool(x, w, s, b)                 # (N, 15, 15, 32) bf16
    w, s, b = _fold_bn(params, 2)
    x = conv3x3_bn_relu_maxpool(x, w, s, b)                 # (N, 6, 6, 64) bf16
    w, s, b = _fold_bn(params, 3)
    # torch NCHW flatten order (idx = c*4 + i*2 + j) absorbed into permuted fc1 rows
    w1p = params["fc1_w"].reshape(w.shape[-1], 4, -1).transpose(1, 0, 2)  # (4,128,32)
    # TODO(synk): training-mode Dropout / batch-stat BatchNorm are stochastic /
    # stateful; inference semantics are implemented instead.
    return conv3x3_bn_relu_avgpool_mlp(
        x, w, s, b, w1p, params["fc1_b"], params["fc2_w"], params["fc2_b"])


# --------------------------------------------------------------------------
# Pure-JAX reference (HIGHEST precision) and parameter init
# --------------------------------------------------------------------------
def reference_forward(x_nchw, params):
    x = jnp.transpose(x_nchw, (0, 2, 3, 1))

    def block(x, w, b, g, bt):
        y = lax.conv_general_dilated(
            x, w, (1, 1), 'VALID',
            dimension_numbers=('NHWC', 'HWIO', 'NHWC'),
            precision=lax.Precision.HIGHEST) + b
        y = (y / jnp.sqrt(1.0 + EPS)) * g + bt
        return jnp.maximum(y, 0.0)

    def mp(x):
        return lax.reduce_window(x, -jnp.inf, lax.max,
                                 (1, 2, 2, 1), (1, 2, 2, 1), 'VALID')

    x = mp(block(x, params['conv1_w'], params['conv1_b'],
                 params['bn1_gamma'], params['bn1_beta']))
    x = mp(block(x, params['conv2_w'], params['conv2_b'],
                 params['bn2_gamma'], params['bn2_beta']))
    x = block(x, params['conv3_w'], params['conv3_b'],
              params['bn3_gamma'], params['bn3_beta'])
    N, H, W, C = x.shape
    x = x.reshape(N, 2, H // 2, 2, W // 2, C).mean(axis=(2, 4))  # adaptive pool (even)
    flat = jnp.transpose(x, (0, 3, 1, 2)).reshape(N, -1)         # torch flatten order
    h = jnp.maximum(flat @ params['fc1_w'] + params['fc1_b'], 0.0)
    return h @ params['fc2_w'] + params['fc2_b']


def init_params(key, input_dim, output_dim):
    ks = jax.random.split(key, 16)
    p = {}
    cins = [input_dim, 32, 64]
    couts = [32, 64, 128]
    for i in range(3):
        p[f"conv{i+1}_w"] = (jax.random.normal(ks[4 * i], (3, 3, cins[i], couts[i]),
                                               jnp.float32)
                             * jnp.sqrt(2.0 / (9 * cins[i])))
        p[f"conv{i+1}_b"] = 0.01 * jax.random.normal(ks[4 * i + 1], (couts[i],), jnp.float32)
        p[f"bn{i+1}_gamma"] = 1.0 + 0.1 * jax.random.normal(ks[4 * i + 2], (couts[i],), jnp.float32)
        p[f"bn{i+1}_beta"] = 0.1 * jax.random.normal(ks[4 * i + 3], (couts[i],), jnp.float32)
    p["fc1_w"] = jax.random.normal(ks[12], (512, 32), jnp.float32) * jnp.sqrt(2.0 / 512)
    p["fc1_b"] = 0.01 * jax.random.normal(ks[13], (32,), jnp.float32)
    p["fc2_w"] = jax.random.normal(ks[14], (32, output_dim), jnp.float32) * jnp.sqrt(2.0 / 32)
    p["fc2_b"] = 0.01 * jax.random.normal(ks[15], (output_dim,), jnp.float32)
    return p


if __name__ == "__main__":
    input_dim, output_dim = 4, 2
    N, H, W = 2, 32, 32  # 32 -> 30 -> 15 -> 13 -> 6 -> 4 -> adaptive 2x2 -> 512 features

    key = jax.random.PRNGKey(0)
    kx, kp = jax.random.split(key)
    x = jax.random.normal(kx, (N, input_dim, H, W), jnp.float32)  # NCHW, like PyTorch
    params = init_params(kp, input_dim, output_dim)

    y = jax.block_until_ready(network_cnn_forward(x, params))
    y_ref = jax.block_until_ready(reference_forward(x, params))

    assert y.shape == (N, output_dim), y.shape
    # tolerance: kernel matmuls use single-pass bf16 MXU inputs and bf16 inter-layer
    # activations, while the reference runs at HIGHEST precision throughout.
    if not jnp.allclose(y, y_ref, atol=2.5e-2, rtol=2.5e-2):
        raise AssertionError(f"mismatch vs reference:\n{y}\n{y_ref}")
    print("KERNEL_OK")
</pallas_src>

<mosaic_0001>
module attributes {stable_mosaic.version = 11 : i64} {
  func.func @kernel(%arg0: i32, %arg1: memref<1x900x36xbf16, #tpu.memory_space<vmem>>, %arg2: memref<36x32xbf16, #tpu.memory_space<vmem>>, %arg3: memref<1x32xf32, #tpu.memory_space<vmem>>, %arg4: memref<1x32xf32, #tpu.memory_space<vmem>>, %arg5: memref<1x869x32xbf16, #tpu.memory_space<vmem>>) attributes {dimension_semantics = [#tpu.dimension_semantics<parallel>], iteration_bounds = array<i64: 2>, scalar_prefetch = 0 : i64, scratch_operands = 0 : i64, tpu.core_type = #tpu.core_type<tc>, window_params = [{transform_indices = @transform_0, window_bounds = array<i64: 1, 900, 36>}, {pipeline_mode = #tpu.pipeline_mode<synchronous>, transform_indices = @transform_1, window_bounds = array<i64: 36, 32>}, {pipeline_mode = #tpu.pipeline_mode<synchronous>, transform_indices = @transform_2, window_bounds = array<i64: 1, 32>}, {pipeline_mode = #tpu.pipeline_mode<synchronous>, transform_indices = @transform_3, window_bounds = array<i64: 1, 32>}, {transform_indices = @transform_4, window_bounds = array<i64: 1, 869, 32>}]} {
    %c0 = arith.constant 0 : index
    %c0_0 = arith.constant 0 : index
    %c0_1 = arith.constant 0 : index
    %0 = vector.load %arg1[%c0, %c0_0, %c0_1] : memref<1x900x36xbf16, #tpu.memory_space<vmem>>, vector<1x900x36xbf16>
    %1 = vector.shape_cast %0 : vector<1x900x36xbf16> to vector<900x36xbf16>
    %c0_2 = arith.constant 0 : index
    %c0_3 = arith.constant 0 : index
    %2 = vector.load %arg2[%c0_2, %c0_3] : memref<36x32xbf16, #tpu.memory_space<vmem>>, vector<36x32xbf16>
    %cst = arith.constant dense<0.000000e+00> : vector<900x32xf32>
    %3 = tpu.matmul %1, %2, %cst {dimension_numbers = #tpu.dot_dimension_numbers<[1], [0], [0], [1], [0, 0, 1, 1], [], []>} : vector<900x36xbf16>, vector<36x32xbf16>, vector<900x32xf32> -> vector<900x32xf32>
    %c0_4 = arith.constant 0 : index
    %c0_5 = arith.constant 0 : index
    %4 = vector.load %arg3[%c0_4, %c0_5] : memref<1x32xf32, #tpu.memory_space<vmem>>, vector<1x32xf32>
    %5 = vector.broadcast %4 : vector<1x32xf32> to vector<900x32xf32>
    %6 = arith.mulf %3, %5 : vector<900x32xf32>
    %c0_6 = arith.constant 0 : index
    %c0_7 = arith.constant 0 : index
    %7 = vector.load %arg4[%c0_6, %c0_7] : memref<1x32xf32, #tpu.memory_space<vmem>>, vector<1x32xf32>
    %8 = vector.broadcast %7 : vector<1x32xf32> to vector<900x32xf32>
    %9 = arith.addf %6, %8 : vector<900x32xf32>
    %cst_8 = arith.constant 0.000000e+00 : f32
    %10 = vector.broadcast %cst_8 : f32 to vector<900x32xf32>
    %11 = arith.maximumf %9, %10 : vector<900x32xf32>
    %12 = vector.extract_strided_slice %11 {offsets = [0, 0], sizes = [870, 32], strides = [1, 1]} : vector<900x32xf32> to vector<870x32xf32>
    %13 = vector.extract_strided_slice %11 {offsets = [30, 0], sizes = [870, 32], strides = [1, 1]} : vector<900x32xf32> to vector<870x32xf32>
    %14 = arith.maximumf %12, %13 : vector<870x32xf32>
    %15 = vector.extract_strided_slice %14 {offsets = [0, 0], sizes = [869, 32], strides = [1, 1]} : vector<870x32xf32> to vector<869x32xf32>
    %16 = vector.extract_strided_slice %14 {offsets = [1, 0], sizes = [869, 32], strides = [1, 1]} : vector<870x32xf32> to vector<869x32xf32>
    %17 = arith.maximumf %15, %16 : vector<869x32xf32>
    %18 = arith.truncf %17 : vector<869x32xf32> to vector<869x32xbf16>
    %c0_9 = arith.constant 0 : index
    %c0_10 = arith.constant 0 : index
    %c0_11 = arith.constant 0 : index
    %19 = vector.load %arg5[%c0_9, %c0_10, %c0_11] : memref<1x869x32xbf16, #tpu.memory_space<vmem>>, vector<1x869x32xbf16>
    %20 = vector.shape_cast %19 : vector<1x869x32xbf16> to vector<869x32xbf16>
    %21 = vector.shape_cast %18 : vector<869x32xbf16> to vector<1x869x32xbf16>
    tpu.vector_store %arg5[%c0_9, %c0_10, %c0_11], %21 {strides = array<i32>} : memref<1x869x32xbf16, #tpu.memory_space<vmem>>, vector<1x869x32xbf16>,
    return
  }
  func.func @transform_0(%arg0: i32) -> (i32, i32, i32) {
    %c0_i32 = arith.constant 0 : i32
    %c0_i32_0 = arith.constant 0 : i32
    %c0_i32_1 = arith.constant 0 : i32
    return %arg0, %c0_i32, %c0_i32_0 : i32, i32, i32
  }
  func.func @transform_1(%arg0: i32) -> (i32, i32) {
    %c0_i32 = arith.constant 0 : i32
    %c0_i32_0 = arith.constant 0 : i32
    %c0_i32_1 = arith.constant 0 : i32
    return %c0_i32, %c0_i32_0 : i32, i32
  }
  func.func @transform_2(%arg0: i32) -> (i32, i32) {
    %c0_i32 = arith.constant 0 : i32
    %c0_i32_0 = arith.constant 0 : i32
    %c0_i32_1 = arith.constant 0 : i32
    return %c0_i32, %c0_i32_0 : i32, i32
  }
  func.func @transform_3(%arg0: i32) -> (i32, i32) {
    %c0_i32 = arith.constant 0 : i32
    %c0_i32_0 = arith.constant 0 : i32
    %c0_i32_1 = arith.constant 0 : i32
    return %c0_i32, %c0_i32_0 : i32, i32
  }
  func.func @transform_4(%arg0: i32) -> (i32, i32, i32) {
    %c0_i32 = arith.constant 0 : i32
    %c0_i32_0 = arith.constant 0 : i32
    %c0_i32_1 = arith.constant 0 : i32
    return %arg0, %c0_i32, %c0_i32_0 : i32, i32, i32
  }
}

module attributes {stable_mosaic.version = 11 : i64} {
  func.func @kernel(%arg0: i32, %arg1: memref<1x169x288xbf16, #tpu.memory_space<vmem>>, %arg2: memref<288x64xbf16, #tpu.memory_space<vmem>>, %arg3: memref<1x64xf32, #tpu.memory_space<vmem>>, %arg4: memref<1x64xf32, #tpu.memory_space<vmem>>, %arg5: memref<1x155x64xbf16, #tpu.memory_space<vmem>>) attributes {dimension_semantics = [#tpu.dimension_semantics<parallel>], iteration_bounds = array<i64: 2>, scalar_prefetch = 0 : i64, scratch_operands = 0 : i64, tpu.core_type = #tpu.core_type<tc>, window_params = [{transform_indices = @transform_0, window_bounds = array<i64: 1, 169, 288>}, {pipeline_mode = #tpu.pipeline_mode<synchronous>, transform_indices = @transform_1, window_bounds = array<i64: 288, 64>}, {pipeline_mode = #tpu.pipeline_mode<synchronous>, transform_indices = @transform_2, window_bounds = array<i64: 1, 64>}, {pipeline_mode = #tpu.pipeline_mode<synchronous>, transform_indices = @transform_3, window_bounds = array<i64: 1, 64>}, {transform_indices = @transform_4, window_bounds = array<i64: 1, 155, 64>}]} {
    %c0 = arith.constant 0 : index
    %c0_0 = arith.constant 0 : index
    %c0_1 = arith.constant 0 : index
    %0 = vector.load %arg1[%c0, %c0_0, %c0_1] : memref<1x169x288xbf16, #tpu.memory_space<vmem>>, vector<1x169x288xbf16>
    %1 = vector.shape_cast %0 : vector<1x169x288xbf16> to vector<169x288xbf16>
    %c0_2 = arith.constant 0 : index
    %c0_3 = arith.constant 0 : index
    %2 = vector.load %arg2[%c0_2, %c0_3] : memref<288x64xbf16, #tpu.memory_space<vmem>>, vector<288x64xbf16>
    %cst = arith.constant dense<0.000000e+00> : vector<169x64xf32>
    %3 = tpu.matmul %1, %2, %cst {dimension_numbers = #tpu.dot_dimension_numbers<[1], [0], [0], [1], [0, 0, 1, 1], [], []>} : vector<169x288xbf16>, vector<288x64xbf16>, vector<169x64xf32> -> vector<169x64xf32>
    %c0_4 = arith.constant 0 : index
    %c0_5 = arith.constant 0 : index
    %4 = vector.load %arg3[%c0_4, %c0_5] : memref<1x64xf32, #tpu.memory_space<vmem>>, vector<1x64xf32>
    %5 = vector.broadcast %4 : vector<1x64xf32> to vector<169x64xf32>
    %6 = arith.mulf %3, %5 : vector<169x64xf32>
    %c0_6 = arith.constant 0 : index
    %c0_7 = arith.constant 0 : index
    %7 = vector.load %arg4[%c0_6, %c0_7] : memref<1x64xf32, #tpu.memory_space<vmem>>, vector<1x64xf32>
    %8 = vector.broadcast %7 : vector<1x64xf32> to vector<169x64xf32>
    %9 = arith.addf %6, %8 : vector<169x64xf32>
    %cst_8 = arith.constant 0.000000e+00 : f32
    %10 = vector.broadcast %cst_8 : f32 to vector<169x64xf32>
    %11 = arith.maximumf %9, %10 : vector<169x64xf32>
    %12 = vector.extract_strided_slice %11 {offsets = [0, 0], sizes = [156, 64], strides = [1, 1]} : vector<169x64xf32> to vector<156x64xf32>
    %13 = vector.extract_strided_slice %11 {offsets = [13, 0], sizes = [156, 64], strides = [1, 1]} : vector<169x64xf32> to vector<156x64xf32>
    %14 = arith.maximumf %12, %13 : vector<156x64xf32>
    %15 = vector.extract_strided_slice %14 {offsets = [0, 0], sizes = [155, 64], strides = [1, 1]} : vector<156x64xf32> to vector<155x64xf32>
    %16 = vector.extract_strided_slice %14 {offsets = [1, 0], sizes = [155, 64], strides = [1, 1]} : vector<156x64xf32> to vector<155x64xf32>
    %17 = arith.maximumf %15, %16 : vector<155x64xf32>
    %18 = arith.truncf %17 : vector<155x64xf32> to vector<155x64xbf16>
    %c0_9 = arith.constant 0 : index
    %c0_10 = arith.constant 0 : index
    %c0_11 = arith.constant 0 : index
    %19 = vector.load %arg5[%c0_9, %c0_10, %c0_11] : memref<1x155x64xbf16, #tpu.memory_space<vmem>>, vector<1x155x64xbf16>
    %20 = vector.shape_cast %19 : vector<1x155x64xbf16> to vector<155x64xbf16>
    %21 = vector.shape_cast %18 : vector<155x64xbf16> to vector<1x155x64xbf16>
    tpu.vector_store %arg5[%c0_9, %c0_10, %c0_11], %21 {strides = array<i32>} : memref<1x155x64xbf16, #tpu.memory_space<vmem>>, vector<1x155x64xbf16>,
    return
  }
  func.func @transform_0(%arg0: i32) -> (i32, i32, i32) {
    %c0_i32 = arith.constant 0 : i32
    %c0_i32_0 = arith.constant 0 : i32
    %c0_i32_1 = arith.constant 0 : i32
    return %arg0, %c0_i32, %c0_i32_0 : i32, i32, i32
  }
  func.func @transform_1(%arg0: i32) -> (i32, i32) {
    %c0_i32 = arith.constant 0 : i32
    %c0_i32_0 = arith.constant 0 : i32
    %c0_i32_1 = arith.constant 0 : i32
    return %c0_i32, %c0_i32_0 : i32, i32
  }
  func.func @transform_2(%arg0: i32) -> (i32, i32) {
    %c0_i32 = arith.constant 0 : i32
    %c0_i32_0 = arith.constant 0 : i32
    %c0_i32_1 = arith.constant 0 : i32
    return %c0_i32, %c0_i32_0 : i32, i32
  }
  func.func @transform_3(%arg0: i32) -> (i32, i32) {
    %c0_i32 = arith.constant 0 : i32
    %c0_i32_0 = arith.constant 0 : i32
    %c0_i32_1 = arith.constant 0 : i32
    return %c0_i32, %c0_i32_0 : i32, i32
  }
  func.func @transform_4(%arg0: i32) -> (i32, i32, i32) {
    %c0_i32 = arith.constant 0 : i32
    %c0_i32_0 = arith.constant 0 : i32
    %c0_i32_1 = arith.constant 0 : i32
    return %arg0, %c0_i32, %c0_i32_0 : i32, i32, i32
  }
}

module attributes {stable_mosaic.version = 11 : i64} {
  func.func @kernel(%arg0: i32, %arg1: memref<32x576xbf16, #tpu.memory_space<vmem>>, %arg2: memref<576x128xbf16, #tpu.memory_space<vmem>>, %arg3: memref<1x128xf32, #tpu.memory_space<vmem>>, %arg4: memref<1x128xf32, #tpu.memory_space<vmem>>, %arg5: memref<8x32xf32, #tpu.memory_space<vmem>>, %arg6: memref<4x128x32xbf16, #tpu.memory_space<vmem>>, %arg7: memref<1x32xf32, #tpu.memory_space<vmem>>, %arg8: memref<32x2xbf16, #tpu.memory_space<vmem>>, %arg9: memref<1x2xf32, #tpu.memory_space<vmem>>, %arg10: memref<2x2xf32, #tpu.memory_space<vmem>>) attributes {dimension_semantics = [#tpu.dimension_semantics<arbitrary>], iteration_bounds = array<i64: 1>, scalar_prefetch = 0 : i64, scratch_operands = 0 : i64, tpu.core_type = #tpu.core_type<tc>, window_params = [{pipeline_mode = #tpu.pipeline_mode<synchronous>, transform_indices = @transform_0, window_bounds = array<i64: 32, 576>}, {pipeline_mode = #tpu.pipeline_mode<synchronous>, transform_indices = @transform_1, window_bounds = array<i64: 576, 128>}, {pipeline_mode = #tpu.pipeline_mode<synchronous>, transform_indices = @transform_2, window_bounds = array<i64: 1, 128>}, {pipeline_mode = #tpu.pipeline_mode<synchronous>, transform_indices = @transform_3, window_bounds = array<i64: 1, 128>}, {pipeline_mode = #tpu.pipeline_mode<synchronous>, transform_indices = @transform_4, window_bounds = array<i64: 8, 32>}, {pipeline_mode = #tpu.pipeline_mode<synchronous>, transform_indices = @transform_5, window_bounds = array<i64: 4, 128, 32>}, {pipeline_mode = #tpu.pipeline_mode<synchronous>, transform_indices = @transform_6, window_bounds = array<i64: 1, 32>}, {pipeline_mode = #tpu.pipeline_mode<synchronous>, transform_indices = @transform_7, window_bounds = array<i64: 32, 2>}, {pipeline_mode = #tpu.pipeline_mode<synchronous>, transform_indices = @transform_8, window_bounds = array<i64: 1, 2>}, {pipeline_mode = #tpu.pipeline_mode<synchronous>, transform_indices = @transform_9, window_bounds = array<i64: 2, 2>}]} {
    %c0 = arith.constant 0 : index
    %c0_0 = arith.constant 0 : index
    %0 = vector.load %arg1[%c0, %c0_0] : memref<32x576xbf16, #tpu.memory_space<vmem>>, vector<32x576xbf16>
    %c0_1 = arith.constant 0 : index
    %c0_2 = arith.constant 0 : index
    %1 = vector.load %arg2[%c0_1, %c0_2] : memref<576x128xbf16, #tpu.memory_space<vmem>>, vector<576x128xbf16>
    %cst = arith.constant dense<0.000000e+00> : vector<32x128xf32>
    %2 = tpu.matmul %0, %1, %cst {dimension_numbers = #tpu.dot_dimension_numbers<[1], [0], [0], [1], [0, 0, 1, 1], [], []>} : vector<32x576xbf16>, vector<576x128xbf16>, vector<32x128xf32> -> vector<32x128xf32>
    %c0_3 = arith.constant 0 : index
    %c0_4 = arith.constant 0 : index
    %3 = vector.load %arg3[%c0_3, %c0_4] : memref<1x128xf32, #tpu.memory_space<vmem>>, vector<1x128xf32>
    %4 = vector.broadcast %3 : vector<1x128xf32> to vector<32x128xf32>
    %5 = arith.mulf %2, %4 : vector<32x128xf32>
    %c0_5 = arith.constant 0 : index
    %c0_6 = arith.constant 0 : index
    %6 = vector.load %arg4[%c0_5, %c0_6] : memref<1x128xf32, #tpu.memory_space<vmem>>, vector<1x128xf32>
    %7 = vector.broadcast %6 : vector<1x128xf32> to vector<32x128xf32>
    %8 = arith.addf %5, %7 : vector<32x128xf32>
    %cst_7 = arith.constant 0.000000e+00 : f32
    %9 = vector.broadcast %cst_7 : f32 to vector<32x128xf32>
    %10 = arith.maximumf %8, %9 : vector<32x128xf32>
    %c0_8 = arith.constant 0 : index
    %c0_9 = arith.constant 0 : index
    %11 = vector.load %arg5[%c0_8, %c0_9] : memref<8x32xf32, #tpu.memory_space<vmem>>, vector<8x32xf32>
    %cst_10 = arith.constant dense<0.000000e+00> : vector<8x128xf32>
    %12 = tpu.matmul %11, %10, %cst_10 {dimension_numbers = #tpu.dot_dimension_numbers<[1], [0], [0], [1], [0, 0, 1, 1], [], []>} : vector<8x32xf32>, vector<32x128xf32>, vector<8x128xf32> -> vector<8x128xf32>
    %c0_11 = arith.constant 0 : index
    %c0_12 = arith.constant 0 : index
    %13 = vector.load %arg7[%c0_11, %c0_12] : memref<1x32xf32, #tpu.memory_space<vmem>>, vector<1x32xf32>
    %14 = vector.extract_strided_slice %12 {offsets = [0, 0], sizes = [2, 128], strides = [1, 1]} : vector<8x128xf32> to vector<2x128xf32>
    %15 = arith.truncf %14 : vector<2x128xf32> to vector<2x128xbf16>
    %c0_13 = arith.constant 0 : index
    %c0_14 = arith.constant 0 : index
    %c0_15 = arith.constant 0 : index
    %16 = vector.load %arg6[%c0_13, %c0_14, %c0_15] : memref<4x128x32xbf16, #tpu.memory_space<vmem>>, vector<1x128x32xbf16>
    %17 = vector.shape_cast %16 : vector<1x128x32xbf16> to vector<128x32xbf16>
    %cst_16 = arith.constant dense<0.000000e+00> : vector<2x32xf32>
    %18 = tpu.matmul %15, %17, %cst_16 {dimension_numbers = #tpu.dot_dimension_numbers<[1], [0], [0], [1], [0, 0, 1, 1], [], []>} : vector<2x128xbf16>, vector<128x32xbf16>, vector<2x32xf32> -> vector<2x32xf32>
    %19 = vector.broadcast %13 : vector<1x32xf32> to vector<2x32xf32>
    %20 = arith.addf %19, %18 : vector<2x32xf32>
    %21 = vector.extract_strided_slice %12 {offsets = [2, 0], sizes = [2, 128], strides = [1, 1]} : vector<8x128xf32> to vector<2x128xf32>
    %22 = arith.truncf %21 : vector<2x128xf32> to vector<2x128xbf16>
    %c1 = arith.constant 1 : index
    %c0_17 = arith.constant 0 : index
    %c0_18 = arith.constant 0 : index
    %23 = vector.load %arg6[%c1, %c0_17, %c0_18] : memref<4x128x32xbf16, #tpu.memory_space<vmem>>, vector<1x128x32xbf16>
    %24 = vector.shape_cast %23 : vector<1x128x32xbf16> to vector<128x32xbf16>
    %cst_19 = arith.constant dense<0.000000e+00> : vector<2x32xf32>
    %25 = tpu.matmul %22, %24, %cst_19 {dimension_numbers = #tpu.dot_dimension_numbers<[1], [0], [0], [1], [0, 0, 1, 1], [], []>} : vector<2x128xbf16>, vector<128x32xbf16>, vector<2x32xf32> -> vector<2x32xf32>
    %26 = arith.addf %20, %25 : vector<2x32xf32>
    %27 = vector.extract_strided_slice %12 {offsets = [4, 0], sizes = [2, 128], strides = [1, 1]} : vector<8x128xf32> to vector<2x128xf32>
    %28 = arith.truncf %27 : vector<2x128xf32> to vector<2x128xbf16>
    %c2 = arith.constant 2 : index
    %c0_20 = arith.constant 0 : index
    %c0_21 = arith.constant 0 : index
    %29 = vector.load %arg6[%c2, %c0_20, %c0_21] : memref<4x128x32xbf16, #tpu.memory_space<vmem>>, vector<1x128x32xbf16>
    %30 = vector.shape_cast %29 : vector<1x128x32xbf16> to vector<128x32xbf16>
    %cst_22 = arith.constant dense<0.000000e+00> : vector<2x32xf32>
    %31 = tpu.matmul %28, %30, %cst_22 {dimension_numbers = #tpu.dot_dimension_numbers<[1], [0], [0], [1], [0, 0, 1, 1], [], []>} : vector<2x128xbf16>, vector<128x32xbf16>, vector<2x32xf32> -> vector<2x32xf32>
    %32 = arith.addf %26, %31 : vector<2x32xf32>
    %33 = vector.extract_strided_slice %12 {offsets = [6, 0], sizes = [2, 128], strides = [1, 1]} : vector<8x128xf32> to vector<2x128xf32>
    %34 = arith.truncf %33 : vector<2x128xf32> to vector<2x128xbf16>
    %c3 = arith.constant 3 : index
    %c0_23 = arith.constant 0 : index
    %c0_24 = arith.constant 0 : index
    %35 = vector.load %arg6[%c3, %c0_23, %c0_24] : memref<4x128x32xbf16, #tpu.memory_space<vmem>>, vector<1x128x32xbf16>
    %36 = vector.shape_cast %35 : vector<1x128x32xbf16> to vector<128x32xbf16>
    %cst_25 = arith.constant dense<0.000000e+00> : vector<2x32xf32>
    %37 = tpu.matmul %34, %36, %cst_25 {dimension_numbers = #tpu.dot_dimension_numbers<[1], [0], [0], [1], [0, 0, 1, 1], [], []>} : vector<2x128xbf16>, vector<128x32xbf16>, vector<2x32xf32> -> vector<2x32xf32>
    %38 = arith.addf %32, %37 : vector<2x32xf32>
    %cst_26 = arith.constant 0.000000e+00 : f32
    %39 = vector.broadcast %cst_26 : f32 to vector<2x32xf32>
    %40 = arith.maximumf %38, %39 : vector<2x32xf32>
    %41 = arith.truncf %40 : vector<2x32xf32> to vector<2x32xbf16>
    %c0_27 = arith.constant 0 : index
    %c0_28 = arith.constant 0 : index
    %42 = vector.load %arg8[%c0_27, %c0_28] : memref<32x2xbf16, #tpu.memory_space<vmem>>, vector<32x2xbf16>
    %cst_29 = arith.constant dense<0.000000e+00> : vector<2x2xf32>
    %43 = tpu.matmul %41, %42, %cst_29 {dimension_numbers = #tpu.dot_dimension_numbers<[1], [0], [0], [1], [0, 0, 1, 1], [], []>} : vector<2x32xbf16>, vector<32x2xbf16>, vector<2x2xf32> -> vector<2x2xf32>
    %c0_30 = arith.constant 0 : index
    %c0_31 = arith.constant 0 : index
    %44 = vector.load %arg9[%c0_30, %c0_31] : memref<1x2xf32, #tpu.memory_space<vmem>>, vector<1x2xf32>
    %45 = vector.broadcast %44 : vector<1x2xf32> to vector<2x2xf32>
    %46 = arith.addf %43, %45 : vector<2x2xf32>
    %c0_32 = arith.constant 0 : index
    %c0_33 = arith.constant 0 : index
    %47 = vector.load %arg10[%c0_32, %c0_33] : memref<2x2xf32, #tpu.memory_space<vmem>>, vector<2x2xf32>
    tpu.vector_store %arg10[%c0_32, %c0_33], %46 {strides = array<i32>} : memref<2x2xf32, #tpu.memory_space<vmem>>, vector<2x2xf32>,
    return
  }
  func.func @transform_0(%arg0: i32) -> (i32, i32) {
    %c0_i32 = arith.constant 0 : i32
    %c0_i32_0 = arith.constant 0 : i32
    %c0_i32_1 = arith.constant 0 : i32
    return %c0_i32, %c0_i32_0 : i32, i32
  }
  func.func @transform_1(%arg0: i32) -> (i32, i32) {
    %c0_i32 = arith.constant 0 : i32
    %c0_i32_0 = arith.constant 0 : i32
    %c0_i32_1 = arith.constant 0 : i32
    return %c0_i32, %c0_i32_0 : i32, i32
  }
  func.func @transform_2(%arg0: i32) -> (i32, i32) {
    %c0_i32 = arith.constant 0 : i32
    %c0_i32_0 = arith.constant 0 : i32
    %c0_i32_1 = arith.constant 0 : i32
    return %c0_i32, %c0_i32_0 : i32, i32
  }
  func.func @transform_3(%arg0: i32) -> (i32, i32) {
    %c0_i32 = arith.constant 0 : i32
    %c0_i32_0 = arith.constant 0 : i32
    %c0_i32_1 = arith.constant 0 : i32
    return %c0_i32, %c0_i32_0 : i32, i32
  }
  func.func @transform_4(%arg0: i32) -> (i32, i32) {
    %c0_i32 = arith.constant 0 : i32
    %c0_i32_0 = arith.constant 0 : i32
    %c0_i32_1 = arith.constant 0 : i32
    return %c0_i32, %c0_i32_0 : i32, i32
  }
  func.func @transform_5(%arg0: i32) -> (i32, i32, i32) {
    %c0_i32 = arith.constant 0 : i32
    %c0_i32_0 = arith.constant 0 : i32
    %c0_i32_1 = arith.constant 0 : i32
    %c0_i32_2 = arith.constant 0 : i32
    return %c0_i32, %c0_i32_0, %c0_i32_1 : i32, i32, i32
  }
  func.func @transform_6(%arg0: i32) -> (i32, i32) {
    %c0_i32 = arith.constant 0 : i32
    %c0_i32_0 = arith.constant 0 : i32
    %c0_i32_1 = arith.constant 0 : i32
    return %c0_i32, %c0_i32_0 : i32, i32
  }
  func.func @transform_7(%arg0: i32) -> (i32, i32) {
    %c0_i32 = arith.constant 0 : i32
    %c0_i32_0 = arith.constant 0 : i32
    %c0_i32_1 = arith.constant 0 : i32
    return %c0_i32, %c0_i32_0 : i32, i32
  }
  func.func @transform_8(%arg0: i32) -> (i32, i32) {
    %c0_i32 = arith.constant 0 : i32
    %c0_i32_0 = arith.constant 0 : i32
    %c0_i32_1 = arith.constant 0 : i32
    return %c0_i32, %c0_i32_0 : i32, i32
  }
  func.func @transform_9(%arg0: i32) -> (i32, i32) {
    %c0_i32 = arith.constant 0 : i32
    %c0_i32_0 = arith.constant 0 : i32
    %c0_i32_1 = arith.constant 0 : i32
    return %c0_i32, %c0_i32_0 : i32, i32
  }
}

</mosaic_0001>

<llo_original>
// kernel: network_cnn_forward.3
$region0: #{network_cnn_forward.3}
  #allocation0 [shape = 'u32[]', space=smem, size = 0x4, offset = 0x4, fixed_abs, tag = 'smem constant byte address 0x4 - core index']
  #allocation1 [shape = 'u32[72,128]{1,0:T(1,128)}', space=vmem, size = 0x9000, scoped, tag = 'internal scratch']
  %s0 = inlined_call_operand.vmem [shape: bf16[2,900,36], index: 0, kind: input, shape index: {}]
  %s1 = inlined_call_operand.vmem [shape: bf16[36,32], index: 1, kind: input, shape index: {}]
  %s2 = inlined_call_operand.vmem [shape: f32[1,32], index: 2, kind: input, shape index: {}]
  %s3 = inlined_call_operand.vmem [shape: f32[1,32], index: 3, kind: input, shape index: {}]
  %s4 = inlined_call_operand.vmem [shape: bf16[2,869,32], index: 4, kind: output, shape index: {}]
  %s5 = sld [smem:[#allocation0]]
  $region49: #{network_cnn_forward.3} parent=0
    _
  %s7 = ssub.s32 1, %s5
  %s8 = scalar_select 0, %s7, %s5
  loop: start=0, step=1, limit=4
  $region2: #{network_cnn_forward.3} parent=0 // loop_pre_header
    _
  $region3: #{network_cnn_forward.3} parent=0 // loop_header
    %s10 = sphi 0, %s14
    %p11 = scmp.ge.s32.totalorder %s10, 4
    %s20 = sphi 0, %s22
    %s23 = sphi 0, %s20
    %s24 = sphi 0, %s23
    %s40 = sphi 0, %s24
    %s44 = sphi 0, %s44
    %s46 = sphi 0, %s44
    %s47 = sphi 0, %s46
    %s61 = sphi 0, %s47
    %s65 = sphi 0, %s65
    %s67 = sphi 0, %s65
    %s68 = sphi 0, %s67
    %s82 = sphi 0, %s68
    %s86 = sphi 0, %s86
    %s88 = sphi 0, %s86
    %s89 = sphi 0, %s88
    %s103 = sphi 0, %s89
    %s109 = sphi 0, %s111
    %s112 = sphi 0, %s109
    %s113 = sphi 0, %s112
    %s129 = sphi 0, %s113
  $region4: #{network_cnn_forward.3} parent=0 // loop_header_branch
    %13 = sbr.rel (%p11) target = $region8
  $region5: #{network_cnn_forward.3} parent=0 // loop_body
    %s15 = ssub.s32 %s10, 1
    %s16 = ssub.s32 %s10, 2
    %s17 = sadd.s32 %s10, 1
    %s18 = ssub.s32 %s10, %s17
    %p19 = scmp.eq.s32.totalorder %s18, 0
    %s21 = sadd.s32 %s20, 1
    %s22 = scalar_select %p19, %s20, %s21
    %p25 = pneg %p19
    %p26 = scmp.eq.s32.totalorder %s10, 1
    %p27 = por %p25, %p26
    %p28 = scmp.ne.s32.totalorder %s20, %s23
    %p29 = scmp.eq.s32.totalorder %s10, 0
    %p30 = por %p28, %p29
    %p31 = scmp.ne.s32.totalorder %s20, %s23
    %p32 = scmp.eq.s32.totalorder %s15, 1
    %p33 = por %p31, %p32
    %p34 = scmp.ne.s32.totalorder %s23, %s24
    %p35 = scmp.eq.s32.totalorder %s15, 0
    %p36 = por %p34, %p35
    %p37 = scmp.ne.s32.totalorder %s23, %s24
    %p38 = scmp.eq.s32.totalorder %s16, 1
    %p39 = por %p37, %p38
    %p41 = scmp.ne.s32.totalorder %s24, %s40
    %p42 = scmp.eq.s32.totalorder %s16, 0
    %p43 = por %p41, %p42
    %s45 = sadd.s32 %s44, 1
    %p48 = scmp.eq.s32.totalorder %s10, 1
    %p49 = scmp.ne.s32.totalorder %s44, %s46
    %p50 = scmp.eq.s32.totalorder %s10, 0
    %p51 = por %p49, %p50
    %p52 = scmp.ne.s32.totalorder %s44, %s46
    %p53 = scmp.eq.s32.totalorder %s15, 1
    %p54 = por %p52, %p53
    %p55 = scmp.ne.s32.totalorder %s46, %s47
    %p56 = scmp.eq.s32.totalorder %s15, 0
    %p57 = por %p55, %p56
    %p58 = scmp.ne.s32.totalorder %s46, %s47
    %p59 = scmp.eq.s32.totalorder %s16, 1
    %p60 = por %p58, %p59
    %p62 = scmp.ne.s32.totalorder %s47, %s61
    %p63 = scmp.eq.s32.totalorder %s16, 0
    %p64 = por %p62, %p63
    %s66 = sadd.s32 %s65, 1
    %p69 = scmp.eq.s32.totalorder %s10, 1
    %p70 = scmp.ne.s32.totalorder %s65, %s67
    %p71 = scmp.eq.s32.totalorder %s10, 0
    %p72 = por %p70, %p71
    %p73 = scmp.ne.s32.totalorder %s65, %s67
    %p74 = scmp.eq.s32.totalorder %s15, 1
    %p75 = por %p73, %p74
    %p76 = scmp.ne.s32.totalorder %s67, %s68
    %p77 = scmp.eq.s32.totalorder %s15, 0
    %p78 = por %p76, %p77
    %p79 = scmp.ne.s32.totalorder %s67, %s68
    %p80 = scmp.eq.s32.totalorder %s16, 1
    %p81 = por %p79, %p80
    %p83 = scmp.ne.s32.totalorder %s68, %s82
    %p84 = scmp.eq.s32.totalorder %s16, 0
    %p85 = por %p83, %p84
    %s87 = sadd.s32 %s86, 1
    %p90 = scmp.eq.s32.totalorder %s10, 1
    %p91 = scmp.ne.s32.totalorder %s86, %s88
    %p92 = scmp.eq.s32.totalorder %s10, 0
    %p93 = por %p91, %p92
    %p94 = scmp.ne.s32.totalorder %s86, %s88
    %p95 = scmp.eq.s32.totalorder %s15, 1
    %p96 = por %p94, %p95
    %p97 = scmp.ne.s32.totalorder %s88, %s89
    %p98 = scmp.eq.s32.totalorder %s15, 0
    %p99 = por %p97, %p98
    %p100 = scmp.ne.s32.totalorder %s88, %s89
    %p101 = scmp.eq.s32.totalorder %s16, 1
    %p102 = por %p100, %p101
    %p104 = scmp.ne.s32.totalorder %s89, %s103
    %p105 = scmp.eq.s32.totalorder %s16, 0
    %p106 = por %p104, %p105
    %s107 = ssub.s32 %s10, %s17
    %p108 = scmp.eq.s32.totalorder %s107, 0
    %s110 = sadd.s32 %s109, 1
    %s111 = scalar_select %p108, %s109, %s110
    %p114 = pneg %p108
    %p115 = scmp.eq.s32.totalorder %s10, 1
    %p116 = por %p114, %p115
    %p117 = scmp.ne.s32.totalorder %s109, %s112
    %p118 = scmp.eq.s32.totalorder %s10, 0
    %p119 = por %p117, %p118
    %p120 = scmp.ne.s32.totalorder %s109, %s112
    %p121 = scmp.eq.s32.totalorder %s15, 1
    %p122 = por %p120, %p121
    %p123 = scmp.ne.s32.totalorder %s112, %s113
    %p124 = scmp.eq.s32.totalorder %s15, 0
    %p125 = por %p123, %p124
    %p126 = scmp.ne.s32.totalorder %s112, %s113
    %p127 = scmp.eq.s32.totalorder %s16, 1
    %p128 = por %p126, %p127
    %p130 = scmp.ne.s32.totalorder %s113, %s129
    %p131 = scmp.eq.s32.totalorder %s16, 0
    %p132 = por %p130, %p131
    %p133 = scmp.le.s32.totalorder 1, %s10
    %p134 = scmp.lt.s32.totalorder %s10, 3
    %p135 = pnand %p133, %p134
    %p136 = pneg %p135
    // Predicated region
    $region9: #{network_cnn_forward.3} parent=5 // pred_check
      _
    $region10: #{network_cnn_forward.3} parent=5 // pred_check_branch
      %138 = sbr.rel (%p135) target = $region12
    $region11: #{network_cnn_forward.3} parent=5 // pred_region
      %s139 = ssub.s32 %s10, 1
      // Predicated region
      $region13: #{network_cnn_forward.3} parent=11 // pred_check
        %p140 = pneg %p57
      $region14: #{network_cnn_forward.3} parent=11 // pred_check_branch
        %142 = sbr.rel (%p140) target = $region16
      $region15: #{network_cnn_forward.3} parent=11 // pred_region
        _
      $region16: #{network_cnn_forward.3} parent=11 // pred_fallthru
        _
      // Predicated region
      $region17: #{network_cnn_forward.3} parent=11 // pred_check
        %p143 = pneg %p78
      $region18: #{network_cnn_forward.3} parent=11 // pred_check_branch
        %145 = sbr.rel (%p143) target = $region20
      $region19: #{network_cnn_forward.3} parent=11 // pred_region
        _
      $region20: #{network_cnn_forward.3} parent=11 // pred_fallthru
        _
      // Predicated region
      $region21: #{network_cnn_forward.3} parent=11 // pred_check
        %p146 = pneg %p99
      $region22: #{network_cnn_forward.3} parent=11 // pred_check_branch
        %148 = sbr.rel (%p146) target = $region24
      $region23: #{network_cnn_forward.3} parent=11 // pred_region
        _
      $region24: #{network_cnn_forward.3} parent=11 // pred_fallthru
        _
    $region12: #{network_cnn_forward.3} parent=5 // pred_fallthru
      _
    %p149 = scmp.lt.s32.totalorder %s10, 2
    // Predicated region
    $region25: #{network_cnn_forward.3} parent=5 // pred_check
      %p150 = pneg %p149
    $region26: #{network_cnn_forward.3} parent=5 // pred_check_branch
      %152 = sbr.rel (%p150) target = $region28
    $region27: #{network_cnn_forward.3} parent=5 // pred_region
      // Predicated region
      $region29: #{network_cnn_forward.3} parent=27 // pred_check
        %p153 = pneg %p30
      $region30: #{network_cnn_forward.3} parent=27 // pred_check_branch
        %155 = sbr.rel (%p153) target = $region32
      $region31: #{network_cnn_forward.3} parent=27 // pred_region
        %p156 = scmp.lt.s32.totalorder %s10, 1
        %s157 = scalar_select %p156, %s10, 1
        %s158 = smul.addr %s157, 113
        %s159 = smul.addr %s158, 4
        %s160 = scalar_lea.vmem %s0, %s159
      $region32: #{network_cnn_forward.3} parent=27 // pred_fallthru
        _
    $region28: #{network_cnn_forward.3} parent=5 // pred_fallthru
      _
    %p161 = scmp.le.s32.totalorder 1, %s10
    %p162 = scmp.lt.s32.totalorder %s10, 3
    %p163 = pnand %p161, %p162
    %p164 = pneg %p163
    // Predicated region
    $region33: #{network_cnn_forward.3} parent=5 // pred_check
      _
    $region34: #{network_cnn_forward.3} parent=5 // pred_check_branch
      %166 = sbr.rel (%p163) target = $region36
    $region35: #{network_cnn_forward.3} parent=5 // pred_region
      %s167 = ssub.s32 %s10, 1
      %p168 = scmp.lt.s32.totalorder %s15, 1
      %s169 = scalar_select %p168, %s15, 1
      %s170 = smul.addr %s169, 113
      %s171 = smul.addr %s170, 4
      %s172 = scalar_lea.vmem %s0, %s171
      %p173 = pneg %p36
      %p174 = pneg %p33
      %p175 = pneg %p57
      %p176 = pneg %p54
      %p177 = pneg %p78
      %p178 = pneg %p75
      %p179 = pneg %p99
      %p180 = pneg %p96
      %p181 = pneg %p125
      %p182 = pneg %p122
      %p183 = scmp.lt.s32.totalorder %s15, 1
      %s184 = scalar_select %p183, %s15, 1
      %s185 = smul.addr %s184, 109
      %s186 = smul.addr %s185, 4
      %s187 = scalar_lea.vmem %s4, %s186
      %p188 = scmp.lt.s32.totalorder %s15, 1
      %s189 = scalar_select %p188, %s15, 1
      %s190 = smul.addr %s189, 113
      %s191 = smul.addr %s190, 4
      %s192 = scalar_lea.vmem %s0, %s191
      %p193 = scmp.lt.s32.totalorder %s15, 1
      %s194 = scalar_select %p193, %s15, 1
      %s195 = smul.addr %s194, 109
      %s196 = smul.addr %s195, 4
      %s197 = scalar_lea.vmem %s4, %s196
      %v199 = vld [vmem:[%s192] sm:$0xf]
      %v200 = vld [vmem:[%s192 + $0x4] sm:$0xf]
      %v201 = vld [vmem:[%s192 + $0x8] sm:$0xf]
      %v202 = vld [vmem:[%s192 + $0xc] sm:$0xf]
      %v203 = vld [vmem:[%s192 + $0x10] sm:$0xf]
      %v204 = vld [vmem:[%s192 + $0x14] sm:$0xf]
      %v205 = vld [vmem:[%s192 + $0x18] sm:$0xf]
      %v206 = vld [vmem:[%s192 + $0x1c] sm:$0xf]
      %v207 = vld [vmem:[%s192 + $0x20] sm:$0xf]
      %v208 = vld [vmem:[%s192 + $0x24] sm:$0xf]
      %v209 = vld [vmem:[%s192 + $0x28] sm:$0xf]
      %v210 = vld [vmem:[%s192 + $0x2c] sm:$0xf]
      %v211 = vld [vmem:[%s192 + $0x30] sm:$0xf]
      %v212 = vld [vmem:[%s192 + $0x34] sm:$0xf]
      %v213 = vld [vmem:[%s192 + $0x38] sm:$0xf]
      %v214 = vld [vmem:[%s192 + $0x3c] sm:$0xf]
      %v215 = vld [vmem:[%s192 + $0x40] sm:$0xf]
      %v216 = vld [vmem:[%s192 + $0x44] sm:$0xf]
      %v217 = vld [vmem:[%s192 + $0x48] sm:$0xf]
      %v218 = vld [vmem:[%s192 + $0x4c] sm:$0xf]
      %v219 = vld [vmem:[%s192 + $0x50] sm:$0xf]
      %v220 = vld [vmem:[%s192 + $0x54] sm:$0xf]
      %v221 = vld [vmem:[%s192 + $0x58] sm:$0xf]
      %v222 = vld [vmem:[%s192 + $0x5c] sm:$0xf]
      %v223 = vld [vmem:[%s192 + $0x60] sm:$0xf]
      %v224 = vld [vmem:[%s192 + $0x64] sm:$0xf]
      %v225 = vld [vmem:[%s192 + $0x68] sm:$0xf]
      %v226 = vld [vmem:[%s192 + $0x6c] sm:$0xf]
      %v227 = vld [vmem:[%s192 + $0x70] sm:$0xf]
      %v228 = vld [vmem:[%s192 + $0x74] sm:$0xf]
      %v229 = vld [vmem:[%s192 + $0x78] sm:$0xf]
      %v230 = vld [vmem:[%s192 + $0x7c] sm:$0xf]
      %v231 = vld [vmem:[%s192 + $0x80] sm:$0xf]
      %v232 = vld [vmem:[%s192 + $0x84] sm:$0xf]
      %v233 = vld [vmem:[%s192 + $0x88] sm:$0xf]
      %v234 = vld [vmem:[%s192 + $0x8c] sm:$0xf]
      %v235 = vld [vmem:[%s192 + $0x90] sm:$0xf]
      %v236 = vld [vmem:[%s192 + $0x94] sm:$0xf]
      %v237 = vld [vmem:[%s192 + $0x98] sm:$0xf]
      %v238 = vld [vmem:[%s192 + $0x9c] sm:$0xf]
      %v239 = vld [vmem:[%s192 + $0xa0] sm:$0xf]
      %v240 = vld [vmem:[%s192 + $0xa4] sm:$0xf]
      %v241 = vld [vmem:[%s192 + $0xa8] sm:$0xf]
      %v242 = vld [vmem:[%s192 + $0xac] sm:$0xf]
      %v243 = vld [vmem:[%s192 + $0xb0] sm:$0xf]
      %v244 = vld [vmem:[%s192 + $0xb4] sm:$0xf]
      %v245 = vld [vmem:[%s192 + $0xb8] sm:$0xf]
      %v246 = vld [vmem:[%s192 + $0xbc] sm:$0xf]
      %v247 = vld [vmem:[%s192 + $0xc0] sm:$0xf]
      %v248 = vld [vmem:[%s192 + $0xc4] sm:$0xf]
      %v249 = vld [vmem:[%s192 + $0xc8] sm:$0xf]
      %v250 = vld [vmem:[%s192 + $0xcc] sm:$0xf]
      %v251 = vld [vmem:[%s192 + $0xd0] sm:$0xf]
      %v252 = vld [vmem:[%s192 + $0xd4] sm:$0xf]
      %v253 = vld [vmem:[%s192 + $0xd8] sm:$0xf]
      %v254 = vld [vmem:[%s192 + $0xdc] sm:$0xf]
      %v255 = vld [vmem:[%s192 + $0xe0] sm:$0xf]
      %v256 = vld [vmem:[%s192 + $0xe4] sm:$0xf]
      %v257 = vld [vmem:[%s192 + $0xe8] sm:$0xf]
      %v258 = vld [vmem:[%s192 + $0xec] sm:$0xf]
      %v259 = vld [vmem:[%s192 + $0xf0] sm:$0xf]
      %v260 = vld [vmem:[%s192 + $0xf4] sm:$0xf]
      %v261 = vld [vmem:[%s192 + $0xf8] sm:$0xf]
      %v262 = vld [vmem:[%s192 + $0xfc] sm:$0xf]
      %v263 = vld [vmem:[%s192 + $0x100] sm:$0xf]
      %v264 = vld [vmem:[%s192 + $0x104] sm:$0xf]
      %v265 = vld [vmem:[%s192 + $0x108] sm:$0xf]
      %v266 = vld [vmem:[%s192 + $0x10c] sm:$0xf]
      %v267 = vld [vmem:[%s192 + $0x110] sm:$0xf]
      %v268 = vld [vmem:[%s192 + $0x114] sm:$0xf]
      %v269 = vld [vmem:[%s192 + $0x118] sm:$0xf]
      %v270 = vld [vmem:[%s192 + $0x11c] sm:$0xf]
      %v271 = vld [vmem:[%s192 + $0x120] sm:$0xf]
      %v272 = vld [vmem:[%s192 + $0x124] sm:$0xf]
      %v273 = vld [vmem:[%s192 + $0x128] sm:$0xf]
      %v274 = vld [vmem:[%s192 + $0x12c] sm:$0xf]
      %v275 = vld [vmem:[%s192 + $0x130] sm:$0xf]
      %v276 = vld [vmem:[%s192 + $0x134] sm:$0xf]
      %v277 = vld [vmem:[%s192 + $0x138] sm:$0xf]
      %v278 = vld [vmem:[%s192 + $0x13c] sm:$0xf]
      %v279 = vld [vmem:[%s192 + $0x140] sm:$0xf]
      %v280 = vld [vmem:[%s192 + $0x144] sm:$0xf]
      %v281 = vld [vmem:[%s192 + $0x148] sm:$0xf]
      %v282 = vld [vmem:[%s192 + $0x14c] sm:$0xf]
      %v283 = vld [vmem:[%s192 + $0x150] sm:$0xf]
      %v284 = vld [vmem:[%s192 + $0x154] sm:$0xf]
      %v285 = vld [vmem:[%s192 + $0x158] sm:$0xf]
      %v286 = vld [vmem:[%s192 + $0x15c] sm:$0xf]
      %v287 = vld [vmem:[%s192 + $0x160] sm:$0xf]
      %v288 = vld [vmem:[%s192 + $0x164] sm:$0xf]
      %v289 = vld [vmem:[%s192 + $0x168] sm:$0xf]
      %v290 = vld [vmem:[%s192 + $0x16c] sm:$0xf]
      %v291 = vld [vmem:[%s192 + $0x170] sm:$0xf]
      %v292 = vld [vmem:[%s192 + $0x174] sm:$0xf]
      %v293 = vld [vmem:[%s192 + $0x178] sm:$0xf]
      %v294 = vld [vmem:[%s192 + $0x17c] sm:$0xf]
      %v295 = vld [vmem:[%s192 + $0x180] sm:$0xf]
      %v296 = vld [vmem:[%s192 + $0x184] sm:$0xf]
      %v297 = vld [vmem:[%s192 + $0x188] sm:$0xf]
      %v298 = vld [vmem:[%s192 + $0x18c] sm:$0xf]
      %v299 = vld [vmem:[%s192 + $0x190] sm:$0xf]
      %v300 = vld [vmem:[%s192 + $0x194] sm:$0xf]
      %v301 = vld [vmem:[%s192 + $0x198] sm:$0xf]
      %v302 = vld [vmem:[%s192 + $0x19c] sm:$0xf]
      %v303 = vld [vmem:[%s192 + $0x1a0] sm:$0xf]
      %v304 = vld [vmem:[%s192 + $0x1a4] sm:$0xf]
      %v305 = vld [vmem:[%s192 + $0x1a8] sm:$0xf]
      %v306 = vld [vmem:[%s192 + $0x1ac] sm:$0xf]
      %v307 = vld [vmem:[%s192 + $0x1b0] sm:$0xf]
      %v308 = vld [vmem:[%s192 + $0x1b4] sm:$0xf]
      %v309 = vld [vmem:[%s192 + $0x1b8] sm:$0xf]
      %v310 = vld [vmem:[%s192 + $0x1bc] sm:$0xf]
      %v311 = vld [vmem:[%s192 + $0x1c0] sm:$0x3]
      %v312 = vld [vmem:[%s1] sm:$0xf]
      %v313 = vld [vmem:[%s1 + $0x4] sm:$0xf]
      %v314 = vld [vmem:[%s1 + $0x8] sm:$0xf]
      %v315 = vld [vmem:[%s1 + $0xc] sm:$0xf]
      %v316 = vld [vmem:[%s1 + $0x10] sm:$0x3]
      %v430 = vunpack.c.l.b16 %v199
      %v431 = vunpack.c.l.b16 %v200
      %v432 = vunpack.c.l.b16 %v201
      %v433 = vunpack.c.l.b16 %v202
      %v434 = vunpack.c.l.b16 %v203
      %v435 = vunpack.c.l.b16 %v204
      %v436 = vunpack.c.l.b16 %v205
      %v437 = vunpack.c.l.b16 %v206
      %v438 = vunpack.c.l.b16 %v207
      %v439 = vunpack.c.l.b16 %v208
      %v440 = vunpack.c.l.b16 %v209
      %v441 = vunpack.c.l.b16 %v210
      %v442 = vunpack.c.l.b16 %v211
      %v443 = vunpack.c.l.b16 %v212
      %v444 = vunpack.c.l.b16 %v213
      %v445 = vunpack.c.l.b16 %v214
      %v446 = vunpack.c.l.b16 %v215
      %v447 = vunpack.c.l.b16 %v216
      %v448 = vunpack.c.l.b16 %v217
      %v449 = vunpack.c.l.b16 %v218
      %v450 = vunpack.c.l.b16 %v219
      %v451 = vunpack.c.l.b16 %v220
      %v452 = vunpack.c.l.b16 %v221
      %v453 = vunpack.c.l.b16 %v222
      %v454 = vunpack.c.l.b16 %v223
      %v455 = vunpack.c.l.b16 %v224
      %v456 = vunpack.c.l.b16 %v225
      %v457 = vunpack.c.l.b16 %v226
      %v458 = vunpack.c.l.b16 %v227
      %v459 = vunpack.c.l.b16 %v228
      %v460 = vunpack.c.l.b16 %v229
      %v461 = vunpack.c.l.b16 %v230
      %v462 = vunpack.c.l.b16 %v231
      %v463 = vunpack.c.l.b16 %v232
      %v464 = vunpack.c.l.b16 %v233
      %v465 = vunpack.c.l.b16 %v234
      %v466 = vunpack.c.l.b16 %v235
      %v467 = vunpack.c.l.b16 %v236
      %v468 = vunpack.c.l.b16 %v237
      %v469 = vunpack.c.l.b16 %v238
      %v470 = vunpack.c.l.b16 %v239
      %v471 = vunpack.c.l.b16 %v240
      %v472 = vunpack.c.l.b16 %v241
      %v473 = vunpack.c.l.b16 %v242
      %v474 = vunpack.c.l.b16 %v243
      %v475 = vunpack.c.l.b16 %v244
      %v476 = vunpack.c.l.b16 %v245
      %v477 = vunpack.c.l.b16 %v246
      %v478 = vunpack.c.l.b16 %v247
      %v479 = vunpack.c.l.b16 %v248
      %v480 = vunpack.c.l.b16 %v249
      %v481 = vunpack.c.l.b16 %v250
      %v482 = vunpack.c.l.b16 %v251
      %v483 = vunpack.c.l.b16 %v252
      %v484 = vunpack.c.l.b16 %v253
      %v485 = vunpack.c.l.b16 %v254
      %v486 = vunpack.c.l.b16 %v255
      %v487 = vunpack.c.l.b16 %v256
      %v488 = vunpack.c.l.b16 %v257
      %v489 = vunpack.c.l.b16 %v258
      %v490 = vunpack.c.l.b16 %v259
      %v491 = vunpack.c.l.b16 %v260
      %v492 = vunpack.c.l.b16 %v261
      %v493 = vunpack.c.l.b16 %v262
      %v494 = vunpack.c.l.b16 %v263
      %v495 = vunpack.c.l.b16 %v264
      %v496 = vunpack.c.l.b16 %v265
      %v497 = vunpack.c.l.b16 %v266
      %v498 = vunpack.c.l.b16 %v267
      %v499 = vunpack.c.l.b16 %v268
      %v500 = vunpack.c.l.b16 %v269
      %v501 = vunpack.c.l.b16 %v270
      %v502 = vunpack.c.l.b16 %v271
      %v503 = vunpack.c.l.b16 %v272
      %v504 = vunpack.c.l.b16 %v273
      %v505 = vunpack.c.l.b16 %v274
      %v506 = vunpack.c.l.b16 %v275
      %v507 = vunpack.c.l.b16 %v276
      %v508 = vunpack.c.l.b16 %v277
      %v509 = vunpack.c.l.b16 %v278
      %v510 = vunpack.c.l.b16 %v279
      %v511 = vunpack.c.l.b16 %v280
      %v512 = vunpack.c.l.b16 %v281
      %v513 = vunpack.c.l.b16 %v282
      %v514 = vunpack.c.l.b16 %v283
      %v515 = vunpack.c.l.b16 %v284
      %v516 = vunpack.c.l.b16 %v285
      %v517 = vunpack.c.l.b16 %v286
      %v518 = vunpack.c.l.b16 %v287
      %v519 = vunpack.c.l.b16 %v288
      %v520 = vunpack.c.l.b16 %v289
      %v521 = vunpack.c.l.b16 %v290
      %v522 = vunpack.c.l.b16 %v291
      %v523 = vunpack.c.l.b16 %v292
      %v524 = vunpack.c.l.b16 %v293
      %v525 = vunpack.c.l.b16 %v294
      %v526 = vunpack.c.l.b16 %v295
      %v527 = vunpack.c.l.b16 %v296
      %v528 = vunpack.c.l.b16 %v297
      %v529 = vunpack.c.l.b16 %v298
      %v530 = vunpack.c.l.b16 %v299
      %v531 = vunpack.c.l.b16 %v300
      %v532 = vunpack.c.l.b16 %v301
      %v533 = vunpack.c.l.b16 %v302
      %v534 = vunpack.c.l.b16 %v303
      %v535 = vunpack.c.l.b16 %v304
      %v536 = vunpack.c.l.b16 %v305
      %v537 = vunpack.c.l.b16 %v306
      %v538 = vunpack.c.l.b16 %v307
      %v539 = vunpack.c.l.b16 %v308
      %v540 = vunpack.c.l.b16 %v309
      %v541 = vunpack.c.l.b16 %v310
      %v542 = vunpack.c.l.b16 %v311
      %v543 = vpack.c.b16 %v431, %v430
      %v544 = vpack.c.b16 %v433, %v432
      %v545 = vpack.c.b16 %v435, %v434
      %v546 = vpack.c.b16 %v437, %v436
      %v547 = vpack.c.b16 %v439, %v438
      %v548 = vpack.c.b16 %v441, %v440
      %v549 = vpack.c.b16 %v443, %v442
      %v550 = vpack.c.b16 %v445, %v444
      %v551 = vpack.c.b16 %v447, %v446
      %v552 = vpack.c.b16 %v449, %v448
      %v553 = vpack.c.b16 %v451, %v450
      %v554 = vpack.c.b16 %v453, %v452
      %v555 = vpack.c.b16 %v455, %v454
      %v556 = vpack.c.b16 %v457, %v456
      %v557 = vpack.c.b16 %v459, %v458
      %v558 = vpack.c.b16 %v461, %v460
      %v559 = vpack.c.b16 %v463, %v462
      %v560 = vpack.c.b16 %v465, %v464
      %v561 = vpack.c.b16 %v467, %v466
      %v562 = vpack.c.b16 %v469, %v468
      %v563 = vpack.c.b16 %v471, %v470
      %v564 = vpack.c.b16 %v473, %v472
      %v565 = vpack.c.b16 %v475, %v474
      %v566 = vpack.c.b16 %v477, %v476
      %v567 = vpack.c.b16 %v479, %v478
      %v568 = vpack.c.b16 %v481, %v480
      %v569 = vpack.c.b16 %v483, %v482
      %v570 = vpack.c.b16 %v485, %v484
      %v571 = vpack.c.b16 %v487, %v486
      %v572 = vpack.c.b16 %v489, %v488
      %v573 = vpack.c.b16 %v491, %v490
      %v574 = vpack.c.b16 %v493, %v492
      %v575 = vpack.c.b16 %v495, %v494
      %v576 = vpack.c.b16 %v497, %v496
      %v577 = vpack.c.b16 %v499, %v498
      %v578 = vpack.c.b16 %v501, %v500
      %v579 = vpack.c.b16 %v503, %v502
      %v580 = vpack.c.b16 %v505, %v504
      %v581 = vpack.c.b16 %v507, %v506
      %v582 = vpack.c.b16 %v509, %v508
      %v583 = vpack.c.b16 %v511, %v510
      %v584 = vpack.c.b16 %v513, %v512
      %v585 = vpack.c.b16 %v515, %v514
      %v586 = vpack.c.b16 %v517, %v516
      %v587 = vpack.c.b16 %v519, %v518
      %v588 = vpack.c.b16 %v521, %v520
      %v589 = vpack.c.b16 %v523, %v522
      %v590 = vpack.c.b16 %v525, %v524
      %v591 = vpack.c.b16 %v527, %v526
      %v592 = vpack.c.b16 %v529, %v528
      %v593 = vpack.c.b16 %v531, %v530
      %v594 = vpack.c.b16 %v533, %v532
      %v595 = vpack.c.b16 %v535, %v534
      %v596 = vpack.c.b16 %v537, %v536
      %v597 = vpack.c.b16 %v539, %v538
      %v598 = vpack.c.b16 %v541, %v540
      %v599 = vpack.c.b16 %v542, %v542
      %v605 = vunpack.c.l.b16 %v312
      %v606 = vunpack.c.l.b16 %v313
      %v607 = vunpack.c.l.b16 %v314
      %v608 = vunpack.c.l.b16 %v315
      %v609 = vunpack.c.l.b16 %v316
      %v610 = vpack.c.b16 %v606, %v605
      %v611 = vpack.c.b16 %v608, %v607
      %v612 = vpack.c.b16 %v609, %v609
      %vm615 = vcmask 293888
      %v617 = vsel %vm615, %v543, 0
      %v620 = vsel %vm615, %v544, 0
      %v623 = vsel %vm615, %v545, 0
      %v626 = vsel %vm615, %v546, 0
      %v629 = vsel %vm615, %v547, 0
      %v632 = vsel %vm615, %v548, 0
      %v635 = vsel %vm615, %v549, 0
      %v638 = vsel %vm615, %v550, 0
      %v641 = vsel %vm615, %v551, 0
      %v644 = vsel %vm615, %v552, 0
      %v647 = vsel %vm615, %v553, 0
      %v650 = vsel %vm615, %v554, 0
      %v653 = vsel %vm615, %v555, 0
      %v656 = vsel %vm615, %v556, 0
      %v659 = vsel %vm615, %v557, 0
      %v662 = vsel %vm615, %v558, 0
      %v665 = vsel %vm615, %v559, 0
      %v668 = vsel %vm615, %v560, 0
      %v671 = vsel %vm615, %v561, 0
      %v674 = vsel %vm615, %v562, 0
      %v677 = vsel %vm615, %v563, 0
      %v680 = vsel %vm615, %v564, 0
      %v683 = vsel %vm615, %v565, 0
      %v686 = vsel %vm615, %v566, 0
      %v689 = vsel %vm615, %v567, 0
      %v692 = vsel %vm615, %v568, 0
      %v695 = vsel %vm615, %v569, 0
      %v698 = vsel %vm615, %v570, 0
      %v701 = vsel %vm615, %v571, 0
      %v704 = vsel %vm615, %v572, 0
      %v707 = vsel %vm615, %v573, 0
      %v710 = vsel %vm615, %v574, 0
      %v713 = vsel %vm615, %v575, 0
      %v716 = vsel %vm615, %v576, 0
      %v719 = vsel %vm615, %v577, 0
      %v722 = vsel %vm615, %v578, 0
      %v725 = vsel %vm615, %v579, 0
      %v728 = vsel %vm615, %v580, 0
      %v731 = vsel %vm615, %v581, 0
      %v734 = vsel %vm615, %v582, 0
      %v737 = vsel %vm615, %v583, 0
      %v740 = vsel %vm615, %v584, 0
      %v743 = vsel %vm615, %v585, 0
      %v746 = vsel %vm615, %v586, 0
      %v749 = vsel %vm615, %v587, 0
      %v752 = vsel %vm615, %v588, 0
      %v755 = vsel %vm615, %v589, 0
      %v758 = vsel %vm615, %v590, 0
      %v761 = vsel %vm615, %v591, 0
      %v764 = vsel %vm615, %v592, 0
      %v767 = vsel %vm615, %v593, 0
      %v770 = vsel %vm615, %v594, 0
      %v773 = vsel %vm615, %v595, 0
      %v776 = vsel %vm615, %v596, 0
      %v779 = vsel %vm615, %v597, 0
      %v782 = vsel %vm615, %v598, 0
      %v785 = vsel %vm615, %v599, 0
      %vm787 = vcmask 1041408
      %v789 = vsel %vm787, %v612, 0
      %791 = vmatpush.bf16.msra.mxu0 0
      %792 = vmatpush.bf16.msra.mxu0 0
      %793 = vmatpush.bf16.msra.mxu0 0
      %794 = vmatpush.bf16.msra.mxu0 0
      %795 = vmatpush.bf16.msra.mxu0 0
      %796 = vmatpush.bf16.msra.mxu0 %v789
      %797 = vmatpush.bf16.msra.mxu0 %v611
      %798 = vmatpush.bf16.msra.mxu0 %v610
      %799 = vmatmul.bf16.gmra.mxu0 %v617
      %v800 = vpop.f32.mrf.mxu0
      %v801 = vadd.f32 0.0, %v800
      %v802 = vpop.f32.mrf.mxu0
      %v803 = vadd.f32 0.0, %v802
      %804 = vmatmul.bf16.gmra.mxu0 %v620
      %v805 = vpop.f32.mrf.mxu0
      %v806 = vadd.f32 0.0, %v805
      %v807 = vpop.f32.mrf.mxu0
      %v808 = vadd.f32 0.0, %v807
      %809 = vmatmul.bf16.gmra.mxu0 %v623
      %v810 = vpop.f32.mrf.mxu0
      %v811 = vadd.f32 0.0, %v810
      %v812 = vpop.f32.mrf.mxu0
      %v813 = vadd.f32 0.0, %v812
      %814 = vmatmul.bf16.gmra.mxu0 %v626
      %v815 = vpop.f32.mrf.mxu0
      %v816 = vadd.f32 0.0, %v815
      %v817 = vpop.f32.mrf.mxu0
      %v818 = vadd.f32 0.0, %v817
      %819 = vmatmul.bf16.gmra.mxu0 %v629
      %v820 = vpop.f32.mrf.mxu0
      %v821 = vadd.f32 0.0, %v820
      %v822 = vpop.f32.mrf.mxu0
      %v823 = vadd.f32 0.0, %v822
      %824 = vmatmul.bf16.gmra.mxu0 %v632
      %v825 = vpop.f32.mrf.mxu0
      %v826 = vadd.f32 0.0, %v825
      %v827 = vpop.f32.mrf.mxu0
      %v828 = vadd.f32 0.0, %v827
      %829 = vmatmul.bf16.gmra.mxu0 %v635
      %v830 = vpop.f32.mrf.mxu0
      %v831 = vadd.f32 0.0, %v830
      %v832 = vpop.f32.mrf.mxu0
      %v833 = vadd.f32 0.0, %v832
      %834 = vmatmul.bf16.gmra.mxu0 %v638
      %v835 = vpop.f32.mrf.mxu0
      %v836 = vadd.f32 0.0, %v835
      %v837 = vpop.f32.mrf.mxu0
      %v838 = vadd.f32 0.0, %v837
      %839 = vmatmul.bf16.gmra.mxu0 %v641
      %v840 = vpop.f32.mrf.mxu0
      %v841 = vadd.f32 0.0, %v840
      %v842 = vpop.f32.mrf.mxu0
      %v843 = vadd.f32 0.0, %v842
      %844 = vmatmul.bf16.gmra.mxu0 %v644
      %v845 = vpop.f32.mrf.mxu0
      %v846 = vadd.f32 0.0, %v845
      %v847 = vpop.f32.mrf.mxu0
      %v848 = vadd.f32 0.0, %v847
      %849 = vmatmul.bf16.gmra.mxu0 %v647
      %v850 = vpop.f32.mrf.mxu0
      %v851 = vadd.f32 0.0, %v850
      %v852 = vpop.f32.mrf.mxu0
      %v853 = vadd.f32 0.0, %v852
      %854 = vmatmul.bf16.gmra.mxu0 %v650
      %v855 = vpop.f32.mrf.mxu0
      %v856 = vadd.f32 0.0, %v855
      %v857 = vpop.f32.mrf.mxu0
      %v858 = vadd.f32 0.0, %v857
      %859 = vmatmul.bf16.gmra.mxu0 %v653
      %v860 = vpop.f32.mrf.mxu0
      %v861 = vadd.f32 0.0, %v860
      %v862 = vpop.f32.mrf.mxu0
      %v863 = vadd.f32 0.0, %v862
      %864 = vmatmul.bf16.gmra.mxu0 %v656
      %v865 = vpop.f32.mrf.mxu0
      %v866 = vadd.f32 0.0, %v865
      %v867 = vpop.f32.mrf.mxu0
      %v868 = vadd.f32 0.0, %v867
      %869 = vmatmul.bf16.gmra.mxu0 %v659
      %v870 = vpop.f32.mrf.mxu0
      %v871 = vadd.f32 0.0, %v870
      %v872 = vpop.f32.mrf.mxu0
      %v873 = vadd.f32 0.0, %v872
      %874 = vmatmul.bf16.gmra.mxu0 %v662
      %v875 = vpop.f32.mrf.mxu0
      %v876 = vadd.f32 0.0, %v875
      %v877 = vpop.f32.mrf.mxu0
      %v878 = vadd.f32 0.0, %v877
      %879 = vmatmul.bf16.gmra.mxu0 %v665
      %v880 = vpop.f32.mrf.mxu0
      %v881 = vadd.f32 0.0, %v880
      %v882 = vpop.f32.mrf.mxu0
      %v883 = vadd.f32 0.0, %v882
      %884 = vmatmul.bf16.gmra.mxu0 %v668
      %v885 = vpop.f32.mrf.mxu0
      %v886 = vadd.f32 0.0, %v885
      %v887 = vpop.f32.mrf.mxu0
      %v888 = vadd.f32 0.0, %v887
      %889 = vmatmul.bf16.gmra.mxu0 %v671
      %v890 = vpop.f32.mrf.mxu0
      %v891 = vadd.f32 0.0, %v890
      %v892 = vpop.f32.mrf.mxu0
      %v893 = vadd.f32 0.0, %v892
      %894 = vmatmul.bf16.gmra.mxu0 %v674
      %v895 = vpop.f32.mrf.mxu0
      %v896 = vadd.f32 0.0, %v895
      %v897 = vpop.f32.mrf.mxu0
      %v898 = vadd.f32 0.0, %v897
      %899 = vmatmul.bf16.gmra.mxu0 %v677
      %v900 = vpop.f32.mrf.mxu0
      %v901 = vadd.f32 0.0, %v900
      %v902 = vpop.f32.mrf.mxu0
      %v903 = vadd.f32 0.0, %v902
      %904 = vmatmul.bf16.gmra.mxu0 %v680
      %v905 = vpop.f32.mrf.mxu0
      %v906 = vadd.f32 0.0, %v905
      %v907 = vpop.f32.mrf.mxu0
      %v908 = vadd.f32 0.0, %v907
      %909 = vmatmul.bf16.gmra.mxu0 %v683
      %v910 = vpop.f32.mrf.mxu0
      %v911 = vadd.f32 0.0, %v910
      %v912 = vpop.f32.mrf.mxu0
      %v913 = vadd.f32 0.0, %v912
      %914 = vmatmul.bf16.gmra.mxu0 %v686
      %v915 = vpop.f32.mrf.mxu0
      %v916 = vadd.f32 0.0, %v915
      %v917 = vpop.f32.mrf.mxu0
      %v918 = vadd.f32 0.0, %v917
      %919 = vmatmul.bf16.gmra.mxu0 %v689
      %v920 = vpop.f32.mrf.mxu0
      %v921 = vadd.f32 0.0, %v920
      %v922 = vpop.f32.mrf.mxu0
      %v923 = vadd.f32 0.0, %v922
      %924 = vmatmul.bf16.gmra.mxu0 %v692
      %v925 = vpop.f32.mrf.mxu0
      %v926 = vadd.f32 0.0, %v925
      %v927 = vpop.f32.mrf.mxu0
      %v928 = vadd.f32 0.0, %v927
      %929 = vmatmul.bf16.gmra.mxu0 %v695
      %v930 = vpop.f32.mrf.mxu0
      %v931 = vadd.f32 0.0, %v930
      %v932 = vpop.f32.mrf.mxu0
      %v933 = vadd.f32 0.0, %v932
      %934 = vmatmul.bf16.gmra.mxu0 %v698
      %v935 = vpop.f32.mrf.mxu0
      %v936 = vadd.f32 0.0, %v935
      %v937 = vpop.f32.mrf.mxu0
      %v938 = vadd.f32 0.0, %v937
      %939 = vmatmul.bf16.gmra.mxu0 %v701
      %v940 = vpop.f32.mrf.mxu0
      %v941 = vadd.f32 0.0, %v940
      %v942 = vpop.f32.mrf.mxu0
      %v943 = vadd.f32 0.0, %v942
      %944 = vmatmul.bf16.gmra.mxu0 %v704
      %v945 = vpop.f32.mrf.mxu0
      %v946 = vadd.f32 0.0, %v945
      %v947 = vpop.f32.mrf.mxu0
      %v948 = vadd.f32 0.0, %v947
      %949 = vmatmul.bf16.gmra.mxu0 %v707
      %v950 = vpop.f32.mrf.mxu0
      %v951 = vadd.f32 0.0, %v950
      %v952 = vpop.f32.mrf.mxu0
      %v953 = vadd.f32 0.0, %v952
      %954 = vmatmul.bf16.gmra.mxu0 %v710
      %v955 = vpop.f32.mrf.mxu0
      %v956 = vadd.f32 0.0, %v955
      %v957 = vpop.f32.mrf.mxu0
      %v958 = vadd.f32 0.0, %v957
      %959 = vmatmul.bf16.gmra.mxu0 %v713
      %v960 = vpop.f32.mrf.mxu0
      %v961 = vadd.f32 0.0, %v960
      %v962 = vpop.f32.mrf.mxu0
      %v963 = vadd.f32 0.0, %v962
      %964 = vmatmul.bf16.gmra.mxu0 %v716
      %v965 = vpop.f32.mrf.mxu0
      %v966 = vadd.f32 0.0, %v965
      %v967 = vpop.f32.mrf.mxu0
      %v968 = vadd.f32 0.0, %v967
      %969 = vmatmul.bf16.gmra.mxu0 %v719
      %v970 = vpop.f32.mrf.mxu0
      %v971 = vadd.f32 0.0, %v970
      %v972 = vpop.f32.mrf.mxu0
      %v973 = vadd.f32 0.0, %v972
      %974 = vmatmul.bf16.gmra.mxu0 %v722
      %v975 = vpop.f32.mrf.mxu0
      %v976 = vadd.f32 0.0, %v975
      %v977 = vpop.f32.mrf.mxu0
      %v978 = vadd.f32 0.0, %v977
      %979 = vmatmul.bf16.gmra.mxu0 %v725
      %v980 = vpop.f32.mrf.mxu0
      %v981 = vadd.f32 0.0, %v980
      %v982 = vpop.f32.mrf.mxu0
      %v983 = vadd.f32 0.0, %v982
      %984 = vmatmul.bf16.gmra.mxu0 %v728
      %v985 = vpop.f32.mrf.mxu0
      %v986 = vadd.f32 0.0, %v985
      %v987 = vpop.f32.mrf.mxu0
      %v988 = vadd.f32 0.0, %v987
      %989 = vmatmul.bf16.gmra.mxu0 %v731
      %v990 = vpop.f32.mrf.mxu0
      %v991 = vadd.f32 0.0, %v990
      %v992 = vpop.f32.mrf.mxu0
      %v993 = vadd.f32 0.0, %v992
      %994 = vmatmul.bf16.gmra.mxu0 %v734
      %v995 = vpop.f32.mrf.mxu0
      %v996 = vadd.f32 0.0, %v995
      %v997 = vpop.f32.mrf.mxu0
      %v998 = vadd.f32 0.0, %v997
      %999 = vmatmul.bf16.gmra.mxu0 %v737
      %v1000 = vpop.f32.mrf.mxu0
      %v1001 = vadd.f32 0.0, %v1000
      %v1002 = vpop.f32.mrf.mxu0
      %v1003 = vadd.f32 0.0, %v1002
      %1004 = vmatmul.bf16.gmra.mxu0 %v740
      %v1005 = vpop.f32.mrf.mxu0
      %v1006 = vadd.f32 0.0, %v1005
      %v1007 = vpop.f32.mrf.mxu0
      %v1008 = vadd.f32 0.0, %v1007
      %1009 = vmatmul.bf16.gmra.mxu0 %v743
      %v1010 = vpop.f32.mrf.mxu0
      %v1011 = vadd.f32 0.0, %v1010
      %v1012 = vpop.f32.mrf.mxu0
      %v1013 = vadd.f32 0.0, %v1012
      %1014 = vmatmul.bf16.gmra.mxu0 %v746
      %v1015 = vpop.f32.mrf.mxu0
      %v1016 = vadd.f32 0.0, %v1015
      %v1017 = vpop.f32.mrf.mxu0
      %v1018 = vadd.f32 0.0, %v1017
      %1019 = vmatmul.bf16.gmra.mxu0 %v749
      %v1020 = vpop.f32.mrf.mxu0
      %v1021 = vadd.f32 0.0, %v1020
      %v1022 = vpop.f32.mrf.mxu0
      %v1023 = vadd.f32 0.0, %v1022
      %1024 = vmatmul.bf16.gmra.mxu0 %v752
      %v1025 = vpop.f32.mrf.mxu0
      %v1026 = vadd.f32 0.0, %v1025
      %v1027 = vpop.f32.mrf.mxu0
      %v1028 = vadd.f32 0.0, %v1027
      %1029 = vmatmul.bf16.gmra.mxu0 %v755
      %v1030 = vpop.f32.mrf.mxu0
      %v1031 = vadd.f32 0.0, %v1030
      %v1032 = vpop.f32.mrf.mxu0
      %v1033 = vadd.f32 0.0, %v1032
      %1034 = vmatmul.bf16.gmra.mxu0 %v758
      %v1035 = vpop.f32.mrf.mxu0
      %v1036 = vadd.f32 0.0, %v1035
      %v1037 = vpop.f32.mrf.mxu0
      %v1038 = vadd.f32 0.0, %v1037
      %1039 = vmatmul.bf16.gmra.mxu0 %v761
      %v1040 = vpop.f32.mrf.mxu0
      %v1041 = vadd.f32 0.0, %v1040
      %v1042 = vpop.f32.mrf.mxu0
      %v1043 = vadd.f32 0.0, %v1042
      %1044 = vmatmul.bf16.gmra.mxu0 %v764
      %v1045 = vpop.f32.mrf.mxu0
      %v1046 = vadd.f32 0.0, %v1045
      %v1047 = vpop.f32.mrf.mxu0
      %v1048 = vadd.f32 0.0, %v1047
      %1049 = vmatmul.bf16.gmra.mxu0 %v767
      %v1050 = vpop.f32.mrf.mxu0
      %v1051 = vadd.f32 0.0, %v1050
      %v1052 = vpop.f32.mrf.mxu0
      %v1053 = vadd.f32 0.0, %v1052
      %1054 = vmatmul.bf16.gmra.mxu0 %v770
      %v1055 = vpop.f32.mrf.mxu0
      %v1056 = vadd.f32 0.0, %v1055
      %v1057 = vpop.f32.mrf.mxu0
      %v1058 = vadd.f32 0.0, %v1057
      %1059 = vmatmul.bf16.gmra.mxu0 %v773
      %v1060 = vpop.f32.mrf.mxu0
      %v1061 = vadd.f32 0.0, %v1060
      %v1062 = vpop.f32.mrf.mxu0
      %v1063 = vadd.f32 0.0, %v1062
      %1064 = vmatmul.bf16.gmra.mxu0 %v776
      %v1065 = vpop.f32.mrf.mxu0
      %v1066 = vadd.f32 0.0, %v1065
      %v1067 = vpop.f32.mrf.mxu0
      %v1068 = vadd.f32 0.0, %v1067
      %1069 = vmatmul.bf16.gmra.mxu0 %v779
      %v1070 = vpop.f32.mrf.mxu0
      %v1071 = vadd.f32 0.0, %v1070
      %v1072 = vpop.f32.mrf.mxu0
      %v1073 = vadd.f32 0.0, %v1072
      %1074 = vmatmul.bf16.gmra.mxu0 %v782
      %v1075 = vpop.f32.mrf.mxu0
      %v1076 = vadd.f32 0.0, %v1075
      %v1077 = vpop.f32.mrf.mxu0
      %v1078 = vadd.f32 0.0, %v1077
      %1079 = vmatmul.bf16.gmra.mxu0 %v785
      %v1080 = vpop.f32.mrf.mxu0
      %v1081 = vadd.f32 0.0, %v1080
      %v1082 = vpop.f32.mrf.mxu0
      %1083 = vdwg.mxu0
      %v1084 = vld [vmem:[%s2] sm:$0x1]
      %v1086 = vperm.slane %v1084, 0
      %v1088 = vmul.f32 %v801, %v1086
      %v1089 = vmul.f32 %v803, %v1086
      %v1090 = vmul.f32 %v806, %v1086
      %v1091 = vmul.f32 %v808, %v1086
      %v1092 = vmul.f32 %v811, %v1086
      %v1093 = vmul.f32 %v813, %v1086
      %v1094 = vmul.f32 %v816, %v1086
      %v1095 = vmul.f32 %v818, %v1086
      %v1096 = vmul.f32 %v821, %v1086
      %v1097 = vmul.f32 %v823, %v1086
      %v1098 = vmul.f32 %v826, %v1086
      %v1099 = vmul.f32 %v828, %v1086
      %v1100 = vmul.f32 %v831, %v1086
      %v1101 = vmul.f32 %v833, %v1086
      %v1102 = vmul.f32 %v836, %v1086
      %v1103 = vmul.f32 %v838, %v1086
      %v1104 = vmul.f32 %v841, %v1086
      %v1105 = vmul.f32 %v843, %v1086
      %v1106 = vmul.f32 %v846, %v1086
      %v1107 = vmul.f32 %v848, %v1086
      %v1108 = vmul.f32 %v851, %v1086
      %v1109 = vmul.f32 %v853, %v1086
      %v1110 = vmul.f32 %v856, %v1086
      %v1111 = vmul.f32 %v858, %v1086
      %v1112 = vmul.f32 %v861, %v1086
      %v1113 = vmul.f32 %v863, %v1086
      %v1114 = vmul.f32 %v866, %v1086
      %v1115 = vmul.f32 %v868, %v1086
      %v1116 = vmul.f32 %v871, %v1086
      %v1117 = vmul.f32 %v873, %v1086
      %v1118 = vmul.f32 %v876, %v1086
      %v1119 = vmul.f32 %v878, %v1086
      %v1120 = vmul.f32 %v881, %v1086
      %v1121 = vmul.f32 %v883, %v1086
      %v1122 = vmul.f32 %v886, %v1086
      %v1123 = vmul.f32 %v888, %v1086
      %v1124 = vmul.f32 %v891, %v1086
      %v1125 = vmul.f32 %v893, %v1086
      %v1126 = vmul.f32 %v896, %v1086
      %v1127 = vmul.f32 %v898, %v1086
      %v1128 = vmul.f32 %v901, %v1086
      %v1129 = vmul.f32 %v903, %v1086
      %v1130 = vmul.f32 %v906, %v1086
      %v1131 = vmul.f32 %v908, %v1086
      %v1132 = vmul.f32 %v911, %v1086
      %v1133 = vmul.f32 %v913, %v1086
      %v1134 = vmul.f32 %v916, %v1086
      %v1135 = vmul.f32 %v918, %v1086
      %v1136 = vmul.f32 %v921, %v1086
      %v1137 = vmul.f32 %v923, %v1086
      %v1138 = vmul.f32 %v926, %v1086
      %v1139 = vmul.f32 %v928, %v1086
      %v1140 = vmul.f32 %v931, %v1086
      %v1141 = vmul.f32 %v933, %v1086
      %v1142 = vmul.f32 %v936, %v1086
      %v1143 = vmul.f32 %v938, %v1086
      %v1144 = vmul.f32 %v941, %v1086
      %v1145 = vmul.f32 %v943, %v1086
      %v1146 = vmul.f32 %v946, %v1086
      %v1147 = vmul.f32 %v948, %v1086
      %v1148 = vmul.f32 %v951, %v1086
      %v1149 = vmul.f32 %v953, %v1086
      %v1150 = vmul.f32 %v956, %v1086
      %v1151 = vmul.f32 %v958, %v1086
      %v1152 = vmul.f32 %v961, %v1086
      %v1153 = vmul.f32 %v963, %v1086
      %v1154 = vmul.f32 %v966, %v1086
      %v1155 = vmul.f32 %v968, %v1086
      %v1156 = vmul.f32 %v971, %v1086
      %v1157 = vmul.f32 %v973, %v1086
      %v1158 = vmul.f32 %v976, %v1086
      %v1159 = vmul.f32 %v978, %v1086
      %v1160 = vmul.f32 %v981, %v1086
      %v1161 = vmul.f32 %v983, %v1086
      %v1162 = vmul.f32 %v986, %v1086
      %v1163 = vmul.f32 %v988, %v1086
      %v1164 = vmul.f32 %v991, %v1086
      %v1165 = vmul.f32 %v993, %v1086
      %v1166 = vmul.f32 %v996, %v1086
      %v1167 = vmul.f32 %v998, %v1086
      %v1168 = vmul.f32 %v1001, %v1086
      %v1169 = vmul.f32 %v1003, %v1086
      %v1170 = vmul.f32 %v1006, %v1086
      %v1171 = vmul.f32 %v1008, %v1086
      %v1172 = vmul.f32 %v1011, %v1086
      %v1173 = vmul.f32 %v1013, %v1086
      %v1174 = vmul.f32 %v1016, %v1086
      %v1175 = vmul.f32 %v1018, %v1086
      %v1176 = vmul.f32 %v1021, %v1086
      %v1177 = vmul.f32 %v1023, %v1086
      %v1178 = vmul.f32 %v1026, %v1086
      %v1179 = vmul.f32 %v1028, %v1086
      %v1180 = vmul.f32 %v1031, %v1086
      %v1181 = vmul.f32 %v1033, %v1086
      %v1182 = vmul.f32 %v1036, %v1086
      %v1183 = vmul.f32 %v1038, %v1086
      %v1184 = vmul.f32 %v1041, %v1086
      %v1185 = vmul.f32 %v1043, %v1086
      %v1186 = vmul.f32 %v1046, %v1086
      %v1187 = vmul.f32 %v1048, %v1086
      %v1188 = vmul.f32 %v1051, %v1086
      %v1189 = vmul.f32 %v1053, %v1086
      %v1190 = vmul.f32 %v1056, %v1086
      %v1191 = vmul.f32 %v1058, %v1086
      %v1192 = vmul.f32 %v1061, %v1086
      %v1193 = vmul.f32 %v1063, %v1086
      %v1194 = vmul.f32 %v1066, %v1086
      %v1195 = vmul.f32 %v1068, %v1086
      %v1196 = vmul.f32 %v1071, %v1086
      %v1197 = vmul.f32 %v1073, %v1086
      %v1198 = vmul.f32 %v1076, %v1086
      %v1199 = vmul.f32 %v1078, %v1086
      %v1200 = vmul.f32 %v1081, %v1086
      %v1201 = vld [vmem:[%s3] sm:$0x1]
      %v1203 = vperm.slane %v1201, 0
      %v1205 = vadd.f32 %v1088, %v1203
      %v1206 = vadd.f32 %v1089, %v1203
      %v1207 = vadd.f32 %v1090, %v1203
      %v1208 = vadd.f32 %v1091, %v1203
      %v1209 = vadd.f32 %v1092, %v1203
      %v1210 = vadd.f32 %v1093, %v1203
      %v1211 = vadd.f32 %v1094, %v1203
      %v1212 = vadd.f32 %v1095, %v1203
      %v1213 = vadd.f32 %v1096, %v1203
      %v1214 = vadd.f32 %v1097, %v1203
      %v1215 = vadd.f32 %v1098, %v1203
      %v1216 = vadd.f32 %v1099, %v1203
      %v1217 = vadd.f32 %v1100, %v1203
      %v1218 = vadd.f32 %v1101, %v1203
      %v1219 = vadd.f32 %v1102, %v1203
      %v1220 = vadd.f32 %v1103, %v1203
      %v1221 = vadd.f32 %v1104, %v1203
      %v1222 = vadd.f32 %v1105, %v1203
      %v1223 = vadd.f32 %v1106, %v1203
      %v1224 = vadd.f32 %v1107, %v1203
      %v1225 = vadd.f32 %v1108, %v1203
      %v1226 = vadd.f32 %v1109, %v1203
      %v1227 = vadd.f32 %v1110, %v1203
      %v1228 = vadd.f32 %v1111, %v1203
      %v1229 = vadd.f32 %v1112, %v1203
      %v1230 = vadd.f32 %v1113, %v1203
      %v1231 = vadd.f32 %v1114, %v1203
      %v1232 = vadd.f32 %v1115, %v1203
      %v1233 = vadd.f32 %v1116, %v1203
      %v1234 = vadd.f32 %v1117, %v1203
      %v1235 = vadd.f32 %v1118, %v1203
      %v1236 = vadd.f32 %v1119, %v1203
      %v1237 = vadd.f32 %v1120, %v1203
      %v1238 = vadd.f32 %v1121, %v1203
      %v1239 = vadd.f32 %v1122, %v1203
      %v1240 = vadd.f32 %v1123, %v1203
      %v1241 = vadd.f32 %v1124, %v1203
      %v1242 = vadd.f32 %v1125, %v1203
      %v1243 = vadd.f32 %v1126, %v1203
      %v1244 = vadd.f32 %v1127, %v1203
      %v1245 = vadd.f32 %v1128, %v1203
      %v1246 = vadd.f32 %v1129, %v1203
      %v1247 = vadd.f32 %v1130, %v1203
      %v1248 = vadd.f32 %v1131, %v1203
      %v1249 = vadd.f32 %v1132, %v1203
      %v1250 = vadd.f32 %v1133, %v1203
      %v1251 = vadd.f32 %v1134, %v1203
      %v1252 = vadd.f32 %v1135, %v1203
      %v1253 = vadd.f32 %v1136, %v1203
      %v1254 = vadd.f32 %v1137, %v1203
      %v1255 = vadd.f32 %v1138, %v1203
      %v1256 = vadd.f32 %v1139, %v1203
      %v1257 = vadd.f32 %v1140, %v1203
      %v1258 = vadd.f32 %v1141, %v1203
      %v1259 = vadd.f32 %v1142, %v1203
      %v1260 = vadd.f32 %v1143, %v1203
      %v1261 = vadd.f32 %v1144, %v1203
      %v1262 = vadd.f32 %v1145, %v1203
      %v1263 = vadd.f32 %v1146, %v1203
      %v1264 = vadd.f32 %v1147, %v1203
      %v1265 = vadd.f32 %v1148, %v1203
      %v1266 = vadd.f32 %v1149, %v1203
      %v1267 = vadd.f32 %v1150, %v1203
      %v1268 = vadd.f32 %v1151, %v1203
      %v1269 = vadd.f32 %v1152, %v1203
      %v1270 = vadd.f32 %v1153, %v1203
      %v1271 = vadd.f32 %v1154, %v1203
      %v1272 = vadd.f32 %v1155, %v1203
      %v1273 = vadd.f32 %v1156, %v1203
      %v1274 = vadd.f32 %v1157, %v1203
      %v1275 = vadd.f32 %v1158, %v1203
      %v1276 = vadd.f32 %v1159, %v1203
      %v1277 = vadd.f32 %v1160, %v1203
      %v1278 = vadd.f32 %v1161, %v1203
      %v1279 = vadd.f32 %v1162, %v1203
      %v1280 = vadd.f32 %v1163, %v1203
      %v1281 = vadd.f32 %v1164, %v1203
      %v1282 = vadd.f32 %v1165, %v1203
      %v1283 = vadd.f32 %v1166, %v1203
      %v1284 = vadd.f32 %v1167, %v1203
      %v1285 = vadd.f32 %v1168, %v1203
      %v1286 = vadd.f32 %v1169, %v1203
      %v1287 = vadd.f32 %v1170, %v1203
      %v1288 = vadd.f32 %v1171, %v1203
      %v1289 = vadd.f32 %v1172, %v1203
      %v1290 = vadd.f32 %v1173, %v1203
      %v1291 = vadd.f32 %v1174, %v1203
      %v1292 = vadd.f32 %v1175, %v1203
      %v1293 = vadd.f32 %v1176, %v1203
      %v1294 = vadd.f32 %v1177, %v1203
      %v1295 = vadd.f32 %v1178, %v1203
      %v1296 = vadd.f32 %v1179, %v1203
      %v1297 = vadd.f32 %v1180, %v1203
      %v1298 = vadd.f32 %v1181, %v1203
      %v1299 = vadd.f32 %v1182, %v1203
      %v1300 = vadd.f32 %v1183, %v1203
      %v1301 = vadd.f32 %v1184, %v1203
      %v1302 = vadd.f32 %v1185, %v1203
      %v1303 = vadd.f32 %v1186, %v1203
      %v1304 = vadd.f32 %v1187, %v1203
      %v1305 = vadd.f32 %v1188, %v1203
      %v1306 = vadd.f32 %v1189, %v1203
      %v1307 = vadd.f32 %v1190, %v1203
      %v1308 = vadd.f32 %v1191, %v1203
      %v1309 = vadd.f32 %v1192, %v1203
      %v1310 = vadd.f32 %v1193, %v1203
      %v1311 = vadd.f32 %v1194, %v1203
      %v1312 = vadd.f32 %v1195, %v1203
      %v1313 = vadd.f32 %v1196, %v1203
      %v1314 = vadd.f32 %v1197, %v1203
      %v1315 = vadd.f32 %v1198, %v1203
      %v1316 = vadd.f32 %v1199, %v1203
      %v1317 = vadd.f32 %v1200, %v1203
      %v1318 = vmax.f32 %v1205, 0.0
      %v1319 = vmax.f32 %v1206, 0.0
      %v1320 = vmax.f32 %v1207, 0.0
      %v1321 = vmax.f32 %v1208, 0.0
      %v1322 = vmax.f32 %v1209, 0.0
      %v1323 = vmax.f32 %v1210, 0.0
      %v1324 = vmax.f32 %v1211, 0.0
      %v1325 = vmax.f32 %v1212, 0.0
      %v1326 = vmax.f32 %v1213, 0.0
      %v1327 = vmax.f32 %v1214, 0.0
      %v1328 = vmax.f32 %v1215, 0.0
      %v1329 = vmax.f32 %v1216, 0.0
      %v1330 = vmax.f32 %v1217, 0.0
      %v1331 = vmax.f32 %v1218, 0.0
      %v1332 = vmax.f32 %v1219, 0.0
      %v1333 = vmax.f32 %v1220, 0.0
      %v1334 = vmax.f32 %v1221, 0.0
      %v1335 = vmax.f32 %v1222, 0.0
      %v1336 = vmax.f32 %v1223, 0.0
      %v1337 = vmax.f32 %v1224, 0.0
      %v1338 = vmax.f32 %v1225, 0.0
      %v1339 = vmax.f32 %v1226, 0.0
      %v1340 = vmax.f32 %v1227, 0.0
      %v1341 = vmax.f32 %v1228, 0.0
      %v1342 = vmax.f32 %v1229, 0.0
      %v1343 = vmax.f32 %v1230, 0.0
      %v1344 = vmax.f32 %v1231, 0.0
      %v1345 = vmax.f32 %v1232, 0.0
      %v1346 = vmax.f32 %v1233, 0.0
      %v1347 = vmax.f32 %v1234, 0.0
      %v1348 = vmax.f32 %v1235, 0.0
      %v1349 = vmax.f32 %v1236, 0.0
      %v1350 = vmax.f32 %v1237, 0.0
      %v1351 = vmax.f32 %v1238, 0.0
      %v1352 = vmax.f32 %v1239, 0.0
      %v1353 = vmax.f32 %v1240, 0.0
      %v1354 = vmax.f32 %v1241, 0.0
      %v1355 = vmax.f32 %v1242, 0.0
      %v1356 = vmax.f32 %v1243, 0.0
      %v1357 = vmax.f32 %v1244, 0.0
      %v1358 = vmax.f32 %v1245, 0.0
      %v1359 = vmax.f32 %v1246, 0.0
      %v1360 = vmax.f32 %v1247, 0.0
      %v1361 = vmax.f32 %v1248, 0.0
      %v1362 = vmax.f32 %v1249, 0.0
      %v1363 = vmax.f32 %v1250, 0.0
      %v1364 = vmax.f32 %v1251, 0.0
      %v1365 = vmax.f32 %v1252, 0.0
      %v1366 = vmax.f32 %v1253, 0.0
      %v1367 = vmax.f32 %v1254, 0.0
      %v1368 = vmax.f32 %v1255, 0.0
      %v1369 = vmax.f32 %v1256, 0.0
      %v1370 = vmax.f32 %v1257, 0.0
      %v1371 = vmax.f32 %v1258, 0.0
      %v1372 = vmax.f32 %v1259, 0.0
      %v1373 = vmax.f32 %v1260, 0.0
      %v1374 = vmax.f32 %v1261, 0.0
      %v1375 = vmax.f32 %v1262, 0.0
      %v1376 = vmax.f32 %v1263, 0.0
      %v1377 = vmax.f32 %v1264, 0.0
      %v1378 = vmax.f32 %v1265, 0.0
      %v1379 = vmax.f32 %v1266, 0.0
      %v1380 = vmax.f32 %v1267, 0.0
      %v1381 = vmax.f32 %v1268, 0.0
      %v1382 = vmax.f32 %v1269, 0.0
      %v1383 = vmax.f32 %v1270, 0.0
      %v1384 = vmax.f32 %v1271, 0.0
      %v1385 = vmax.f32 %v1272, 0.0
      %v1386 = vmax.f32 %v1273, 0.0
      %v1387 = vmax.f32 %v1274, 0.0
      %v1388 = vmax.f32 %v1275, 0.0
      %v1389 = vmax.f32 %v1276, 0.0
      %v1390 = vmax.f32 %v1277, 0.0
      %v1391 = vmax.f32 %v1278, 0.0
      %v1392 = vmax.f32 %v1279, 0.0
      %v1393 = vmax.f32 %v1280, 0.0
      %v1394 = vmax.f32 %v1281, 0.0
      %v1395 = vmax.f32 %v1282, 0.0
      %v1396 = vmax.f32 %v1283, 0.0
      %v1397 = vmax.f32 %v1284, 0.0
      %v1398 = vmax.f32 %v1285, 0.0
      %v1399 = vmax.f32 %v1286, 0.0
      %v1400 = vmax.f32 %v1287, 0.0
      %v1401 = vmax.f32 %v1288, 0.0
      %v1402 = vmax.f32 %v1289, 0.0
      %v1403 = vmax.f32 %v1290, 0.0
      %v1404 = vmax.f32 %v1291, 0.0
      %v1405 = vmax.f32 %v1292, 0.0
      %v1406 = vmax.f32 %v1293, 0.0
      %v1407 = vmax.f32 %v1294, 0.0
      %v1408 = vmax.f32 %v1295, 0.0
      %v1409 = vmax.f32 %v1296, 0.0
      %v1410 = vmax.f32 %v1297, 0.0
      %v1411 = vmax.f32 %v1298, 0.0
      %v1412 = vmax.f32 %v1299, 0.0
      %v1413 = vmax.f32 %v1300, 0.0
      %v1414 = vmax.f32 %v1301, 0.0
      %v1415 = vmax.f32 %v1302, 0.0
      %v1416 = vmax.f32 %v1303, 0.0
      %v1417 = vmax.f32 %v1304, 0.0
      %v1418 = vmax.f32 %v1305, 0.0
      %v1419 = vmax.f32 %v1306, 0.0
      %v1420 = vmax.f32 %v1307, 0.0
      %v1421 = vmax.f32 %v1308, 0.0
      %v1422 = vmax.f32 %v1309, 0.0
      %v1423 = vmax.f32 %v1310, 0.0
      %v1424 = vmax.f32 %v1311, 0.0
      %v1425 = vmax.f32 %v1312, 0.0
      %v1426 = vmax.f32 %v1313, 0.0
      %v1427 = vmax.f32 %v1314, 0.0
      %v1428 = vmax.f32 %v1315, 0.0
      %v1429 = vmax.f32 %v1316, 0.0
      %v1430 = vmax.f32 %v1317, 0.0
      %v1541 = vrot.slane %v1321, 6
      %v1542 = vrot.slane %v1322, 6
      %v1543 = vsel %vm787, %v1541, %v1542
      %v1544 = vrot.slane %v1323, 6
      %v1545 = vsel %vm787, %v1542, %v1544
      %v1546 = vrot.slane %v1324, 6
      %v1547 = vsel %vm787, %v1544, %v1546
      %v1548 = vrot.slane %v1325, 6
      %v1549 = vsel %vm787, %v1546, %v1548
      %v1550 = vrot.slane %v1326, 6
      %v1551 = vsel %vm787, %v1548, %v1550
      %v1552 = vrot.slane %v1327, 6
      %v1553 = vsel %vm787, %v1550, %v1552
      %v1554 = vrot.slane %v1328, 6
      %v1555 = vsel %vm787, %v1552, %v1554
      %v1556 = vrot.slane %v1329, 6
      %v1557 = vsel %vm787, %v1554, %v1556
      %v1558 = vrot.slane %v1330, 6
      %v1559 = vsel %vm787, %v1556, %v1558
      %v1560 = vrot.slane %v1331, 6
      %v1561 = vsel %vm787, %v1558, %v1560
      %v1562 = vrot.slane %v1332, 6
      %v1563 = vsel %vm787, %v1560, %v1562
      %v1564 = vrot.slane %v1333, 6
      %v1565 = vsel %vm787, %v1562, %v1564
      %v1566 = vrot.slane %v1334, 6
      %v1567 = vsel %vm787, %v1564, %v1566
      %v1568 = vrot.slane %v1335, 6
      %v1569 = vsel %vm787, %v1566, %v1568
      %v1570 = vrot.slane %v1336, 6
      %v1571 = vsel %vm787, %v1568, %v1570
      %v1572 = vrot.slane %v1337, 6
      %v1573 = vsel %vm787, %v1570, %v1572
      %v1574 = vrot.slane %v1338, 6
      %v1575 = vsel %vm787, %v1572, %v1574
      %v1576 = vrot.slane %v1339, 6
      %v1577 = vsel %vm787, %v1574, %v1576
      %v1578 = vrot.slane %v1340, 6
      %v1579 = vsel %vm787, %v1576, %v1578
      %v1580 = vrot.slane %v1341, 6
      %v1581 = vsel %vm787, %v1578, %v1580
      %v1582 = vrot.slane %v1342, 6
      %v1583 = vsel %vm787, %v1580, %v1582
      %v1584 = vrot.slane %v1343, 6
      %v1585 = vsel %vm787, %v1582, %v1584
      %v1586 = vrot.slane %v1344, 6
      %v1587 = vsel %vm787, %v1584, %v1586
      %v1588 = vrot.slane %v1345, 6
      %v1589 = vsel %vm787, %v1586, %v1588
      %v1590 = vrot.slane %v1346, 6
      %v1591 = vsel %vm787, %v1588, %v1590
      %v1592 = vrot.slane %v1347, 6
      %v1593 = vsel %vm787, %v1590, %v1592
      %v1594 = vrot.slane %v1348, 6
      %v1595 = vsel %vm787, %v1592, %v1594
      %v1596 = vrot.slane %v1349, 6
      %v1597 = vsel %vm787, %v1594, %v1596
      %v1598 = vrot.slane %v1350, 6
      %v1599 = vsel %vm787, %v1596, %v1598
      %v1600 = vrot.slane %v1351, 6
      %v1601 = vsel %vm787, %v1598, %v1600
      %v1602 = vrot.slane %v1352, 6
      %v1603 = vsel %vm787, %v1600, %v1602
      %v1604 = vrot.slane %v1353, 6
      %v1605 = vsel %vm787, %v1602, %v1604
      %v1606 = vrot.slane %v1354, 6
      %v1607 = vsel %vm787, %v1604, %v1606
      %v1608 = vrot.slane %v1355, 6
      %v1609 = vsel %vm787, %v1606, %v1608
      %v1610 = vrot.slane %v1356, 6
      %v1611 = vsel %vm787, %v1608, %v1610
      %v1612 = vrot.slane %v1357, 6
      %v1613 = vsel %vm787, %v1610, %v1612
      %v1614 = vrot.slane %v1358, 6
      %v1615 = vsel %vm787, %v1612, %v1614
      %v1616 = vrot.slane %v1359, 6
      %v1617 = vsel %vm787, %v1614, %v1616
      %v1618 = vrot.slane %v1360, 6
      %v1619 = vsel %vm787, %v1616, %v1618
      %v1620 = vrot.slane %v1361, 6
      %v1621 = vsel %vm787, %v1618, %v1620
      %v1622 = vrot.slane %v1362, 6
      %v1623 = vsel %vm787, %v1620, %v1622
      %v1624 = vrot.slane %v1363, 6
      %v1625 = vsel %vm787, %v1622, %v1624
      %v1626 = vrot.slane %v1364, 6
      %v1627 = vsel %vm787, %v1624, %v1626
      %v1628 = vrot.slane %v1365, 6
      %v1629 = vsel %vm787, %v1626, %v1628
      %v1630 = vrot.slane %v1366, 6
      %v1631 = vsel %vm787, %v1628, %v1630
      %v1632 = vrot.slane %v1367, 6
      %v1633 = vsel %vm787, %v1630, %v1632
      %v1634 = vrot.slane %v1368, 6
      %v1635 = vsel %vm787, %v1632, %v1634
      %v1636 = vrot.slane %v1369, 6
      %v1637 = vsel %vm787, %v1634, %v1636
      %v1638 = vrot.slane %v1370, 6
      %v1639 = vsel %vm787, %v1636, %v1638
      %v1640 = vrot.slane %v1371, 6
      %v1641 = vsel %vm787, %v1638, %v1640
      %v1642 = vrot.slane %v1372, 6
      %v1643 = vsel %vm787, %v1640, %v1642
      %v1644 = vrot.slane %v1373, 6
      %v1645 = vsel %vm787, %v1642, %v1644
      %v1646 = vrot.slane %v1374, 6
      %v1647 = vsel %vm787, %v1644, %v1646
      %v1648 = vrot.slane %v1375, 6
      %v1649 = vsel %vm787, %v1646, %v1648
      %v1650 = vrot.slane %v1376, 6
      %v1651 = vsel %vm787, %v1648, %v1650
      %v1652 = vrot.slane %v1377, 6
      %v1653 = vsel %vm787, %v1650, %v1652
      %v1654 = vrot.slane %v1378, 6
      %v1655 = vsel %vm787, %v1652, %v1654
      %v1656 = vrot.slane %v1379, 6
      %v1657 = vsel %vm787, %v1654, %v1656
      %v1658 = vrot.slane %v1380, 6
      %v1659 = vsel %vm787, %v1656, %v1658
      %v1660 = vrot.slane %v1381, 6
      %v1661 = vsel %vm787, %v1658, %v1660
      %v1662 = vrot.slane %v1382, 6
      %v1663 = vsel %vm787, %v1660, %v1662
      %v1664 = vrot.slane %v1383, 6
      %v1665 = vsel %vm787, %v1662, %v1664
      %v1666 = vrot.slane %v1384, 6
      %v1667 = vsel %vm787, %v1664, %v1666
      %v1668 = vrot.slane %v1385, 6
      %v1669 = vsel %vm787, %v1666, %v1668
      %v1670 = vrot.slane %v1386, 6
      %v1671 = vsel %vm787, %v1668, %v1670
      %v1672 = vrot.slane %v1387, 6
      %v1673 = vsel %vm787, %v1670, %v1672
      %v1674 = vrot.slane %v1388, 6
      %v1675 = vsel %vm787, %v1672, %v1674
      %v1676 = vrot.slane %v1389, 6
      %v1677 = vsel %vm787, %v1674, %v1676
      %v1678 = vrot.slane %v1390, 6
      %v1679 = vsel %vm787, %v1676, %v1678
      %v1680 = vrot.slane %v1391, 6
      %v1681 = vsel %vm787, %v1678, %v1680
      %v1682 = vrot.slane %v1392, 6
      %v1683 = vsel %vm787, %v1680, %v1682
      %v1684 = vrot.slane %v1393, 6
      %v1685 = vsel %vm787, %v1682, %v1684
      %v1686 = vrot.slane %v1394, 6
      %v1687 = vsel %vm787, %v1684, %v1686
      %v1688 = vrot.slane %v1395, 6
      %v1689 = vsel %vm787, %v1686, %v1688
      %v1690 = vrot.slane %v1396, 6
      %v1691 = vsel %vm787, %v1688, %v1690
      %v1692 = vrot.slane %v1397, 6
      %v1693 = vsel %vm787, %v1690, %v1692
      %v1694 = vrot.slane %v1398, 6
      %v1695 = vsel %vm787, %v1692, %v1694
      %v1696 = vrot.slane %v1399, 6
      %v1697 = vsel %vm787, %v1694, %v1696
      %v1698 = vrot.slane %v1400, 6
      %v1699 = vsel %vm787, %v1696, %v1698
      %v1700 = vrot.slane %v1401, 6
      %v1701 = vsel %vm787, %v1698, %v1700
      %v1702 = vrot.slane %v1402, 6
      %v1703 = vsel %vm787, %v1700, %v1702
      %v1704 = vrot.slane %v1403, 6
      %v1705 = vsel %vm787, %v1702, %v1704
      %v1706 = vrot.slane %v1404, 6
      %v1707 = vsel %vm787, %v1704, %v1706
      %v1708 = vrot.slane %v1405, 6
      %v1709 = vsel %vm787, %v1706, %v1708
      %v1710 = vrot.slane %v1406, 6
      %v1711 = vsel %vm787, %v1708, %v1710
      %v1712 = vrot.slane %v1407, 6
      %v1713 = vsel %vm787, %v1710, %v1712
      %v1714 = vrot.slane %v1408, 6
      %v1715 = vsel %vm787, %v1712, %v1714
      %v1716 = vrot.slane %v1409, 6
      %v1717 = vsel %vm787, %v1714, %v1716
      %v1718 = vrot.slane %v1410, 6
      %v1719 = vsel %vm787, %v1716, %v1718
      %v1720 = vrot.slane %v1411, 6
      %v1721 = vsel %vm787, %v1718, %v1720
      %v1722 = vrot.slane %v1412, 6
      %v1723 = vsel %vm787, %v1720, %v1722
      %v1724 = vrot.slane %v1413, 6
      %v1725 = vsel %vm787, %v1722, %v1724
      %v1726 = vrot.slane %v1414, 6
      %v1727 = vsel %vm787, %v1724, %v1726
      %v1728 = vrot.slane %v1415, 6
      %v1729 = vsel %vm787, %v1726, %v1728
      %v1730 = vrot.slane %v1416, 6
      %v1731 = vsel %vm787, %v1728, %v1730
      %v1732 = vrot.slane %v1417, 6
      %v1733 = vsel %vm787, %v1730, %v1732
      %v1734 = vrot.slane %v1418, 6
      %v1735 = vsel %vm787, %v1732, %v1734
      %v1736 = vrot.slane %v1419, 6
      %v1737 = vsel %vm787, %v1734, %v1736
      %v1738 = vrot.slane %v1420, 6
      %v1739 = vsel %vm787, %v1736, %v1738
      %v1740 = vrot.slane %v1421, 6
      %v1741 = vsel %vm787, %v1738, %v1740
      %v1742 = vrot.slane %v1422, 6
      %v1743 = vsel %vm787, %v1740, %v1742
      %v1744 = vrot.slane %v1423, 6
      %v1745 = vsel %vm787, %v1742, %v1744
      %v1746 = vrot.slane %v1424, 6
      %v1747 = vsel %vm787, %v1744, %v1746
      %v1748 = vrot.slane %v1425, 6
      %v1749 = vsel %vm787, %v1746, %v1748
      %v1750 = vrot.slane %v1426, 6
      %v1751 = vsel %vm787, %v1748, %v1750
      %v1752 = vrot.slane %v1427, 6
      %v1753 = vsel %vm787, %v1750, %v1752
      %v1754 = vrot.slane %v1428, 6
      %v1755 = vsel %vm787, %v1752, %v1754
      %v1756 = vrot.slane %v1429, 6
      %v1757 = vsel %vm787, %v1754, %v1756
      %v1758 = vrot.slane %v1430, 6
      %v1759 = vsel %vm787, %v1756, %v1758
      %v1869 = vmax.f32 %v1318, %v1543
      %v1870 = vmax.f32 %v1319, %v1545
      %v1871 = vmax.f32 %v1320, %v1547
      %v1872 = vmax.f32 %v1321, %v1549
      %v1873 = vmax.f32 %v1322, %v1551
      %v1874 = vmax.f32 %v1323, %v1553
      %v1875 = vmax.f32 %v1324, %v1555
      %v1876 = vmax.f32 %v1325, %v1557
      %v1877 = vmax.f32 %v1326, %v1559
      %v1878 = vmax.f32 %v1327, %v1561
      %v1879 = vmax.f32 %v1328, %v1563
      %v1880 = vmax.f32 %v1329, %v1565
      %v1881 = vmax.f32 %v1330, %v1567
      %v1882 = vmax.f32 %v1331, %v1569
      %v1883 = vmax.f32 %v1332, %v1571
      %v1884 = vmax.f32 %v1333, %v1573
      %v1885 = vmax.f32 %v1334, %v1575
      %v1886 = vmax.f32 %v1335, %v1577
      %v1887 = vmax.f32 %v1336, %v1579
      %v1888 = vmax.f32 %v1337, %v1581
      %v1889 = vmax.f32 %v1338, %v1583
      %v1890 = vmax.f32 %v1339, %v1585
      %v1891 = vmax.f32 %v1340, %v1587
      %v1892 = vmax.f32 %v1341, %v1589
      %v1893 = vmax.f32 %v1342, %v1591
      %v1894 = vmax.f32 %v1343, %v1593
      %v1895 = vmax.f32 %v1344, %v1595
      %v1896 = vmax.f32 %v1345, %v1597
      %v1897 = vmax.f32 %v1346, %v1599
      %v1898 = vmax.f32 %v1347, %v1601
      %v1899 = vmax.f32 %v1348, %v1603
      %v1900 = vmax.f32 %v1349, %v1605
      %v1901 = vmax.f32 %v1350, %v1607
      %v1902 = vmax.f32 %v1351, %v1609
      %v1903 = vmax.f32 %v1352, %v1611
      %v1904 = vmax.f32 %v1353, %v1613
      %v1905 = vmax.f32 %v1354, %v1615
      %v1906 = vmax.f32 %v1355, %v1617
      %v1907 = vmax.f32 %v1356, %v1619
      %v1908 = vmax.f32 %v1357, %v1621
      %v1909 = vmax.f32 %v1358, %v1623
      %v1910 = vmax.f32 %v1359, %v1625
      %v1911 = vmax.f32 %v1360, %v1627
      %v1912 = vmax.f32 %v1361, %v1629
      %v1913 = vmax.f32 %v1362, %v1631
      %v1914 = vmax.f32 %v1363, %v1633
      %v1915 = vmax.f32 %v1364, %v1635
      %v1916 = vmax.f32 %v1365, %v1637
      %v1917 = vmax.f32 %v1366, %v1639
      %v1918 = vmax.f32 %v1367, %v1641
      %v1919 = vmax.f32 %v1368, %v1643
      %v1920 = vmax.f32 %v1369, %v1645
      %v1921 = vmax.f32 %v1370, %v1647
      %v1922 = vmax.f32 %v1371, %v1649
      %v1923 = vmax.f32 %v1372, %v1651
      %v1924 = vmax.f32 %v1373, %v1653
      %v1925 = vmax.f32 %v1374, %v1655
      %v1926 = vmax.f32 %v1375, %v1657
      %v1927 = vmax.f32 %v1376, %v1659
      %v1928 = vmax.f32 %v1377, %v1661
      %v1929 = vmax.f32 %v1378, %v1663
      %v1930 = vmax.f32 %v1379, %v1665
      %v1931 = vmax.f32 %v1380, %v1667
      %v1932 = vmax.f32 %v1381, %v1669
      %v1933 = vmax.f32 %v1382, %v1671
      %v1934 = vmax.f32 %v1383, %v1673
      %v1935 = vmax.f32 %v1384, %v1675
      %v1936 = vmax.f32 %v1385, %v1677
      %v1937 = vmax.f32 %v1386, %v1679
      %v1938 = vmax.f32 %v1387, %v1681
      %v1939 = vmax.f32 %v1388, %v1683
      %v1940 = vmax.f32 %v1389, %v1685
      %v1941 = vmax.f32 %v1390, %v1687
      %v1942 = vmax.f32 %v1391, %v1689
      %v1943 = vmax.f32 %v1392, %v1691
      %v1944 = vmax.f32 %v1393, %v1693
      %v1945 = vmax.f32 %v1394, %v1695
      %v1946 = vmax.f32 %v1395, %v1697
      %v1947 = vmax.f32 %v1396, %v1699
      %v1948 = vmax.f32 %v1397, %v1701
      %v1949 = vmax.f32 %v1398, %v1703
      %v1950 = vmax.f32 %v1399, %v1705
      %v1951 = vmax.f32 %v1400, %v1707
      %v1952 = vmax.f32 %v1401, %v1709
      %v1953 = vmax.f32 %v1402, %v1711
      %v1954 = vmax.f32 %v1403, %v1713
      %v1955 = vmax.f32 %v1404, %v1715
      %v1956 = vmax.f32 %v1405, %v1717
      %v1957 = vmax.f32 %v1406, %v1719
      %v1958 = vmax.f32 %v1407, %v1721
      %v1959 = vmax.f32 %v1408, %v1723
      %v1960 = vmax.f32 %v1409, %v1725
      %v1961 = vmax.f32 %v1410, %v1727
      %v1962 = vmax.f32 %v1411, %v1729
      %v1963 = vmax.f32 %v1412, %v1731
      %v1964 = vmax.f32 %v1413, %v1733
      %v1965 = vmax.f32 %v1414, %v1735
      %v1966 = vmax.f32 %v1415, %v1737
      %v1967 = vmax.f32 %v1416, %v1739
      %v1968 = vmax.f32 %v1417, %v1741
      %v1969 = vmax.f32 %v1418, %v1743
      %v1970 = vmax.f32 %v1419, %v1745
      %v1971 = vmax.f32 %v1420, %v1747
      %v1972 = vmax.f32 %v1421, %v1749
      %v1973 = vmax.f32 %v1422, %v1751
      %v1974 = vmax.f32 %v1423, %v1753
      %v1975 = vmax.f32 %v1424, %v1755
      %v1976 = vmax.f32 %v1425, %v1757
      %v1977 = vmax.f32 %v1426, %v1759
      %vm2087 = vcmask 1046528
      %v2088 = vrot.slane %v1869, 1
      %v2089 = vrot.slane %v1870, 1
      %v2090 = vsel %vm2087, %v2088, %v2089
      %v2091 = vrot.slane %v1871, 1
      %v2092 = vsel %vm2087, %v2089, %v2091
      %v2093 = vrot.slane %v1872, 1
      %v2094 = vsel %vm2087, %v2091, %v2093
      %v2095 = vrot.slane %v1873, 1
      %v2096 = vsel %vm2087, %v2093, %v2095
      %v2097 = vrot.slane %v1874, 1
      %v2098 = vsel %vm2087, %v2095, %v2097
      %v2099 = vrot.slane %v1875, 1
      %v2100 = vsel %vm2087, %v2097, %v2099
      %v2101 = vrot.slane %v1876, 1
      %v2102 = vsel %vm2087, %v2099, %v2101
      %v2103 = vrot.slane %v1877, 1
      %v2104 = vsel %vm2087, %v2101, %v2103
      %v2105 = vrot.slane %v1878, 1
      %v2106 = vsel %vm2087, %v2103, %v2105
      %v2107 = vrot.slane %v1879, 1
      %v2108 = vsel %vm2087, %v2105, %v2107
      %v2109 = vrot.slane %v1880, 1
      %v2110 = vsel %vm2087, %v2107, %v2109
      %v2111 = vrot.slane %v1881, 1
      %v2112 = vsel %vm2087, %v2109, %v2111
      %v2113 = vrot.slane %v1882, 1
      %v2114 = vsel %vm2087, %v2111, %v2113
      %v2115 = vrot.slane %v1883, 1
      %v2116 = vsel %vm2087, %v2113, %v2115
      %v2117 = vrot.slane %v1884, 1
      %v2118 = vsel %vm2087, %v2115, %v2117
      %v2119 = vrot.slane %v1885, 1
      %v2120 = vsel %vm2087, %v2117, %v2119
      %v2121 = vrot.slane %v1886, 1
      %v2122 = vsel %vm2087, %v2119, %v2121
      %v2123 = vrot.slane %v1887, 1
      %v2124 = vsel %vm2087, %v2121, %v2123
      %v2125 = vrot.slane %v1888, 1
      %v2126 = vsel %vm2087, %v2123, %v2125
      %v2127 = vrot.slane %v1889, 1
      %v2128 = vsel %vm2087, %v2125, %v2127
      %v2129 = vrot.slane %v1890, 1
      %v2130 = vsel %vm2087, %v2127, %v2129
      %v2131 = vrot.slane %v1891, 1
      %v2132 = vsel %vm2087, %v2129, %v2131
      %v2133 = vrot.slane %v1892, 1
      %v2134 = vsel %vm2087, %v2131, %v2133
      %v2135 = vrot.slane %v1893, 1
      %v2136 = vsel %vm2087, %v2133, %v2135
      %v2137 = vrot.slane %v1894, 1
      %v2138 = vsel %vm2087, %v2135, %v2137
      %v2139 = vrot.slane %v1895, 1
      %v2140 = vsel %vm2087, %v2137, %v2139
      %v2141 = vrot.slane %v1896, 1
      %v2142 = vsel %vm2087, %v2139, %v2141
      %v2143 = vrot.slane %v1897, 1
      %v2144 = vsel %vm2087, %v2141, %v2143
      %v2145 = vrot.slane %v1898, 1
      %v2146 = vsel %vm2087, %v2143, %v2145
      %v2147 = vrot.slane %v1899, 1
      %v2148 = vsel %vm2087, %v2145, %v2147
      %v2149 = vrot.slane %v1900, 1
      %v2150 = vsel %vm2087, %v2147, %v2149
      %v2151 = vrot.slane %v1901, 1
      %v2152 = vsel %vm2087, %v2149, %v2151
      %v2153 = vrot.slane %v1902, 1
      %v2154 = vsel %vm2087, %v2151, %v2153
      %v2155 = vrot.slane %v1903, 1
      %v2156 = vsel %vm2087, %v2153, %v2155
      %v2157 = vrot.slane %v1904, 1
      %v2158 = vsel %vm2087, %v2155, %v2157
      %v2159 = vrot.slane %v1905, 1
      %v2160 = vsel %vm2087, %v2157, %v2159
      %v2161 = vrot.slane %v1906, 1
      %v2162 = vsel %vm2087, %v2159, %v2161
      %v2163 = vrot.slane %v1907, 1
      %v2164 = vsel %vm2087, %v2161, %v2163
      %v2165 = vrot.slane %v1908, 1
      %v2166 = vsel %vm2087, %v2163, %v2165
      %v2167 = vrot.slane %v1909, 1
      %v2168 = vsel %vm2087, %v2165, %v2167
      %v2169 = vrot.slane %v1910, 1
      %v2170 = vsel %vm2087, %v2167, %v2169
      %v2171 = vrot.slane %v1911, 1
      %v2172 = vsel %vm2087, %v2169, %v2171
      %v2173 = vrot.slane %v1912, 1
      %v2174 = vsel %vm2087, %v2171, %v2173
      %v2175 = vrot.slane %v1913, 1
      %v2176 = vsel %vm2087, %v2173, %v2175
      %v2177 = vrot.slane %v1914, 1
      %v2178 = vsel %vm2087, %v2175, %v2177
      %v2179 = vrot.slane %v1915, 1
      %v2180 = vsel %vm2087, %v2177, %v2179
      %v2181 = vrot.slane %v1916, 1
      %v2182 = vsel %vm2087, %v2179, %v2181
      %v2183 = vrot.slane %v1917, 1
      %v2184 = vsel %vm2087, %v2181, %v2183
      %v2185 = vrot.slane %v1918, 1
      %v2186 = vsel %vm2087, %v2183, %v2185
      %v2187 = vrot.slane %v1919, 1
      %v2188 = vsel %vm2087, %v2185, %v2187
      %v2189 = vrot.slane %v1920, 1
      %v2190 = vsel %vm2087, %v2187, %v2189
      %v2191 = vrot.slane %v1921, 1
      %v2192 = vsel %vm2087, %v2189, %v2191
      %v2193 = vrot.slane %v1922, 1
      %v2194 = vsel %vm2087, %v2191, %v2193
      %v2195 = vrot.slane %v1923, 1
      %v2196 = vsel %vm2087, %v2193, %v2195
      %v2197 = vrot.slane %v1924, 1
      %v2198 = vsel %vm2087, %v2195, %v2197
      %v2199 = vrot.slane %v1925, 1
      %v2200 = vsel %vm2087, %v2197, %v2199
      %v2201 = vrot.slane %v1926, 1
      %v2202 = vsel %vm2087, %v2199, %v2201
      %v2203 = vrot.slane %v1927, 1
      %v2204 = vsel %vm2087, %v2201, %v2203
      %v2205 = vrot.slane %v1928, 1
      %v2206 = vsel %vm2087, %v2203, %v2205
      %v2207 = vrot.slane %v1929, 1
      %v2208 = vsel %vm2087, %v2205, %v2207
      %v2209 = vrot.slane %v1930, 1
      %v2210 = vsel %vm2087, %v2207, %v2209
      %v2211 = vrot.slane %v1931, 1
      %v2212 = vsel %vm2087, %v2209, %v2211
      %v2213 = vrot.slane %v1932, 1
      %v2214 = vsel %vm2087, %v2211, %v2213
      %v2215 = vrot.slane %v1933, 1
      %v2216 = vsel %vm2087, %v2213, %v2215
      %v2217 = vrot.slane %v1934, 1
      %v2218 = vsel %vm2087, %v2215, %v2217
      %v2219 = vrot.slane %v1935, 1
      %v2220 = vsel %vm2087, %v2217, %v2219
      %v2221 = vrot.slane %v1936, 1
      %v2222 = vsel %vm2087, %v2219, %v2221
      %v2223 = vrot.slane %v1937, 1
      %v2224 = vsel %vm2087, %v2221, %v2223
      %v2225 = vrot.slane %v1938, 1
      %v2226 = vsel %vm2087, %v2223, %v2225
      %v2227 = vrot.slane %v1939, 1
      %v2228 = vsel %vm2087, %v2225, %v2227
      %v2229 = vrot.slane %v1940, 1
      %v2230 = vsel %vm2087, %v2227, %v2229
      %v2231 = vrot.slane %v1941, 1
      %v2232 = vsel %vm2087, %v2229, %v2231
      %v2233 = vrot.slane %v1942, 1
      %v2234 = vsel %vm2087, %v2231, %v2233
      %v2235 = vrot.slane %v1943, 1
      %v2236 = vsel %vm2087, %v2233, %v2235
      %v2237 = vrot.slane %v1944, 1
      %v2238 = vsel %vm2087, %v2235, %v2237
      %v2239 = vrot.slane %v1945, 1
      %v2240 = vsel %vm2087, %v2237, %v2239
      %v2241 = vrot.slane %v1946, 1
      %v2242 = vsel %vm2087, %v2239, %v2241
      %v2243 = vrot.slane %v1947, 1
      %v2244 = vsel %vm2087, %v2241, %v2243
      %v2245 = vrot.slane %v1948, 1
      %v2246 = vsel %vm2087, %v2243, %v2245
      %v2247 = vrot.slane %v1949, 1
      %v2248 = vsel %vm2087, %v2245, %v2247
      %v2249 = vrot.slane %v1950, 1
      %v2250 = vsel %vm2087, %v2247, %v2249
      %v2251 = vrot.slane %v1951, 1
      %v2252 = vsel %vm2087, %v2249, %v2251
      %v2253 = vrot.slane %v1952, 1
      %v2254 = vsel %vm2087, %v2251, %v2253
      %v2255 = vrot.slane %v1953, 1
      %v2256 = vsel %vm2087, %v2253, %v2255
      %v2257 = vrot.slane %v1954, 1
      %v2258 = vsel %vm2087, %v2255, %v2257
      %v2259 = vrot.slane %v1955, 1
      %v2260 = vsel %vm2087, %v2257, %v2259
      %v2261 = vrot.slane %v1956, 1
      %v2262 = vsel %vm2087, %v2259, %v2261
      %v2263 = vrot.slane %v1957, 1
      %v2264 = vsel %vm2087, %v2261, %v2263
      %v2265 = vrot.slane %v1958, 1
      %v2266 = vsel %vm2087, %v2263, %v2265
      %v2267 = vrot.slane %v1959, 1
      %v2268 = vsel %vm2087, %v2265, %v2267
      %v2269 = vrot.slane %v1960, 1
      %v2270 = vsel %vm2087, %v2267, %v2269
      %v2271 = vrot.slane %v1961, 1
      %v2272 = vsel %vm2087, %v2269, %v2271
      %v2273 = vrot.slane %v1962, 1
      %v2274 = vsel %vm2087, %v2271, %v2273
      %v2275 = vrot.slane %v1963, 1
      %v2276 = vsel %vm2087, %v2273, %v2275
      %v2277 = vrot.slane %v1964, 1
      %v2278 = vsel %vm2087, %v2275, %v2277
      %v2279 = vrot.slane %v1965, 1
      %v2280 = vsel %vm2087, %v2277, %v2279
      %v2281 = vrot.slane %v1966, 1
      %v2282 = vsel %vm2087, %v2279, %v2281
      %v2283 = vrot.slane %v1967, 1
      %v2284 = vsel %vm2087, %v2281, %v2283
      %v2285 = vrot.slane %v1968, 1
      %v2286 = vsel %vm2087, %v2283, %v2285
      %v2287 = vrot.slane %v1969, 1
      %v2288 = vsel %vm2087, %v2285, %v2287
      %v2289 = vrot.slane %v1970, 1
      %v2290 = vsel %vm2087, %v2287, %v2289
      %v2291 = vrot.slane %v1971, 1
      %v2292 = vsel %vm2087, %v2289, %v2291
      %v2293 = vrot.slane %v1972, 1
      %v2294 = vsel %vm2087, %v2291, %v2293
      %v2295 = vrot.slane %v1973, 1
      %v2296 = vsel %vm2087, %v2293, %v2295
      %v2297 = vrot.slane %v1974, 1
      %v2298 = vsel %vm2087, %v2295, %v2297
      %v2299 = vrot.slane %v1975, 1
      %v2300 = vsel %vm2087, %v2297, %v2299
      %v2301 = vrot.slane %v1976, 1
      %v2302 = vsel %vm2087, %v2299, %v2301
      %v2303 = vrot.slane %v1977, 1
      %v2304 = vsel %vm2087, %v2301, %v2303
      %v2414 = vmax.f32 %v1869, %v2090
      %v2415 = vmax.f32 %v1870, %v2092
      %v2416 = vmax.f32 %v1871, %v2094
      %v2417 = vmax.f32 %v1872, %v2096
      %v2418 = vmax.f32 %v1873, %v2098
      %v2419 = vmax.f32 %v1874, %v2100
      %v2420 = vmax.f32 %v1875, %v2102
      %v2421 = vmax.f32 %v1876, %v2104
      %v2422 = vmax.f32 %v1877, %v2106
      %v2423 = vmax.f32 %v1878, %v2108
      %v2424 = vmax.f32 %v1879, %v2110
      %v2425 = vmax.f32 %v1880, %v2112
      %v2426 = vmax.f32 %v1881, %v2114
      %v2427 = vmax.f32 %v1882, %v2116
      %v2428 = vmax.f32 %v1883, %v2118
      %v2429 = vmax.f32 %v1884, %v2120
      %v2430 = vmax.f32 %v1885, %v2122
      %v2431 = vmax.f32 %v1886, %v2124
      %v2432 = vmax.f32 %v1887, %v2126
      %v2433 = vmax.f32 %v1888, %v2128
      %v2434 = vmax.f32 %v1889, %v2130
      %v2435 = vmax.f32 %v1890, %v2132
      %v2436 = vmax.f32 %v1891, %v2134
      %v2437 = vmax.f32 %v1892, %v2136
      %v2438 = vmax.f32 %v1893, %v2138
      %v2439 = vmax.f32 %v1894, %v2140
      %v2440 = vmax.f32 %v1895, %v2142
      %v2441 = vmax.f32 %v1896, %v2144
      %v2442 = vmax.f32 %v1897, %v2146
      %v2443 = vmax.f32 %v1898, %v2148
      %v2444 = vmax.f32 %v1899, %v2150
      %v2445 = vmax.f32 %v1900, %v2152
      %v2446 = vmax.f32 %v1901, %v2154
      %v2447 = vmax.f32 %v1902, %v2156
      %v2448 = vmax.f32 %v1903, %v2158
      %v2449 = vmax.f32 %v1904, %v2160
      %v2450 = vmax.f32 %v1905, %v2162
      %v2451 = vmax.f32 %v1906, %v2164
      %v2452 = vmax.f32 %v1907, %v2166
      %v2453 = vmax.f32 %v1908, %v2168
      %v2454 = vmax.f32 %v1909, %v2170
      %v2455 = vmax.f32 %v1910, %v2172
      %v2456 = vmax.f32 %v1911, %v2174
      %v2457 = vmax.f32 %v1912, %v2176
      %v2458 = vmax.f32 %v1913, %v2178
      %v2459 = vmax.f32 %v1914, %v2180
      %v2460 = vmax.f32 %v1915, %v2182
      %v2461 = vmax.f32 %v1916, %v2184
      %v2462 = vmax.f32 %v1917, %v2186
      %v2463 = vmax.f32 %v1918, %v2188
      %v2464 = vmax.f32 %v1919, %v2190
      %v2465 = vmax.f32 %v1920, %v2192
      %v2466 = vmax.f32 %v1921, %v2194
      %v2467 = vmax.f32 %v1922, %v2196
      %v2468 = vmax.f32 %v1923, %v2198
      %v2469 = vmax.f32 %v1924, %v2200
      %v2470 = vmax.f32 %v1925, %v2202
      %v2471 = vmax.f32 %v1926, %v2204
      %v2472 = vmax.f32 %v1927, %v2206
      %v2473 = vmax.f32 %v1928, %v2208
      %v2474 = vmax.f32 %v1929, %v2210
      %v2475 = vmax.f32 %v1930, %v2212
      %v2476 = vmax.f32 %v1931, %v2214
      %v2477 = vmax.f32 %v1932, %v2216
      %v2478 = vmax.f32 %v1933, %v2218
      %v2479 = vmax.f32 %v1934, %v2220
      %v2480 = vmax.f32 %v1935, %v2222
      %v2481 = vmax.f32 %v1936, %v2224
      %v2482 = vmax.f32 %v1937, %v2226
      %v2483 = vmax.f32 %v1938, %v2228
      %v2484 = vmax.f32 %v1939, %v2230
      %v2485 = vmax.f32 %v1940, %v2232
      %v2486 = vmax.f32 %v1941, %v2234
      %v2487 = vmax.f32 %v1942, %v2236
      %v2488 = vmax.f32 %v1943, %v2238
      %v2489 = vmax.f32 %v1944, %v2240
      %v2490 = vmax.f32 %v1945, %v2242
      %v2491 = vmax.f32 %v1946, %v2244
      %v2492 = vmax.f32 %v1947, %v2246
      %v2493 = vmax.f32 %v1948, %v2248
      %v2494 = vmax.f32 %v1949, %v2250
      %v2495 = vmax.f32 %v1950, %v2252
      %v2496 = vmax.f32 %v1951, %v2254
      %v2497 = vmax.f32 %v1952, %v2256
      %v2498 = vmax.f32 %v1953, %v2258
      %v2499 = vmax.f32 %v1954, %v2260
      %v2500 = vmax.f32 %v1955, %v2262
      %v2501 = vmax.f32 %v1956, %v2264
      %v2502 = vmax.f32 %v1957, %v2266
      %v2503 = vmax.f32 %v1958, %v2268
      %v2504 = vmax.f32 %v1959, %v2270
      %v2505 = vmax.f32 %v1960, %v2272
      %v2506 = vmax.f32 %v1961, %v2274
      %v2507 = vmax.f32 %v1962, %v2276
      %v2508 = vmax.f32 %v1963, %v2278
      %v2509 = vmax.f32 %v1964, %v2280
      %v2510 = vmax.f32 %v1965, %v2282
      %v2511 = vmax.f32 %v1966, %v2284
      %v2512 = vmax.f32 %v1967, %v2286
      %v2513 = vmax.f32 %v1968, %v2288
      %v2514 = vmax.f32 %v1969, %v2290
      %v2515 = vmax.f32 %v1970, %v2292
      %v2516 = vmax.f32 %v1971, %v2294
      %v2517 = vmax.f32 %v1972, %v2296
      %v2518 = vmax.f32 %v1973, %v2298
      %v2519 = vmax.f32 %v1974, %v2300
      %v2520 = vmax.f32 %v1975, %v2302
      %v2521 = vmax.f32 %v1976, %v2304
      %v2522 = vmax.f32 %v1977, %v2303
      %v2523 = vpack.c.bf16 %v2414, %v2414
      %v2524 = vpack.c.bf16 %v2415, %v2415
      %v2525 = vpack.c.bf16 %v2416, %v2416
      %v2526 = vpack.c.bf16 %v2417, %v2417
      %v2527 = vpack.c.bf16 %v2418, %v2418
      %v2528 = vpack.c.bf16 %v2419, %v2419
      %v2529 = vpack.c.bf16 %v2420, %v2420
      %v2530 = vpack.c.bf16 %v2421, %v2421
      %v2531 = vpack.c.bf16 %v2422, %v2422
      %v2532 = vpack.c.bf16 %v2423, %v2423
      %v2533 = vpack.c.bf16 %v2424, %v2424
      %v2534 = vpack.c.bf16 %v2425, %v2425
      %v2535 = vpack.c.bf16 %v2426, %v2426
      %v2536 = vpack.c.bf16 %v2427, %v2427
      %v2537 = vpack.c.bf16 %v2428, %v2428
      %v2538 = vpack.c.bf16 %v2429, %v2429
      %v2539 = vpack.c.bf16 %v2430, %v2430
      %v2540 = vpack.c.bf16 %v2431, %v2431
      %v2541 = vpack.c.bf16 %v2432, %v2432
      %v2542 = vpack.c.bf16 %v2433, %v2433
      %v2543 = vpack.c.bf16 %v2434, %v2434
      %v2544 = vpack.c.bf16 %v2435, %v2435
      %v2545 = vpack.c.bf16 %v2436, %v2436
      %v2546 = vpack.c.bf16 %v2437, %v2437
      %v2547 = vpack.c.bf16 %v2438, %v2438
      %v2548 = vpack.c.bf16 %v2439, %v2439
      %v2549 = vpack.c.bf16 %v2440, %v2440
      %v2550 = vpack.c.bf16 %v2441, %v2441
      %v2551 = vpack.c.bf16 %v2442, %v2442
      %v2552 = vpack.c.bf16 %v2443, %v2443
      %v2553 = vpack.c.bf16 %v2444, %v2444
      %v2554 = vpack.c.bf16 %v2445, %v2445
      %v2555 = vpack.c.bf16 %v2446, %v2446
      %v2556 = vpack.c.bf16 %v2447, %v2447
      %v2557 = vpack.c.bf16 %v2448, %v2448
      %v2558 = vpack.c.bf16 %v2449, %v2449
      %v2559 = vpack.c.bf16 %v2450, %v2450
      %v2560 = vpack.c.bf16 %v2451, %v2451
      %v2561 = vpack.c.bf16 %v2452, %v2452
      %v2562 = vpack.c.bf16 %v2453, %v2453
      %v2563 = vpack.c.bf16 %v2454, %v2454
      %v2564 = vpack.c.bf16 %v2455, %v2455
      %v2565 = vpack.c.bf16 %v2456, %v2456
      %v2566 = vpack.c.bf16 %v2457, %v2457
      %v2567 = vpack.c.bf16 %v2458, %v2458
      %v2568 = vpack.c.bf16 %v2459, %v2459
      %v2569 = vpack.c.bf16 %v2460, %v2460
      %v2570 = vpack.c.bf16 %v2461, %v2461
      %v2571 = vpack.c.bf16 %v2462, %v2462
      %v2572 = vpack.c.bf16 %v2463, %v2463
      %v2573 = vpack.c.bf16 %v2464, %v2464
      %v2574 = vpack.c.bf16 %v2465, %v2465
      %v2575 = vpack.c.bf16 %v2466, %v2466
      %v2576 = vpack.c.bf16 %v2467, %v2467
      %v2577 = vpack.c.bf16 %v2468, %v2468
      %v2578 = vpack.c.bf16 %v2469, %v2469
      %v2579 = vpack.c.bf16 %v2470, %v2470
      %v2580 = vpack.c.bf16 %v2471, %v2471
      %v2581 = vpack.c.bf16 %v2472, %v2472
      %v2582 = vpack.c.bf16 %v2473, %v2473
      %v2583 = vpack.c.bf16 %v2474, %v2474
      %v2584 = vpack.c.bf16 %v2475, %v2475
      %v2585 = vpack.c.bf16 %v2476, %v2476
      %v2586 = vpack.c.bf16 %v2477, %v2477
      %v2587 = vpack.c.bf16 %v2478, %v2478
      %v2588 = vpack.c.bf16 %v2479, %v2479
      %v2589 = vpack.c.bf16 %v2480, %v2480
      %v2590 = vpack.c.bf16 %v2481, %v2481
      %v2591 = vpack.c.bf16 %v2482, %v2482
      %v2592 = vpack.c.bf16 %v2483, %v2483
      %v2593 = vpack.c.bf16 %v2484, %v2484
      %v2594 = vpack.c.bf16 %v2485, %v2485
      %v2595 = vpack.c.bf16 %v2486, %v2486
      %v2596 = vpack.c.bf16 %v2487, %v2487
      %v2597 = vpack.c.bf16 %v2488, %v2488
      %v2598 = vpack.c.bf16 %v2489, %v2489
      %v2599 = vpack.c.bf16 %v2490, %v2490
      %v2600 = vpack.c.bf16 %v2491, %v2491
      %v2601 = vpack.c.bf16 %v2492, %v2492
      %v2602 = vpack.c.bf16 %v2493, %v2493
      %v2603 = vpack.c.bf16 %v2494, %v2494
      %v2604 = vpack.c.bf16 %v2495, %v2495
      %v2605 = vpack.c.bf16 %v2496, %v2496
      %v2606 = vpack.c.bf16 %v2497, %v2497
      %v2607 = vpack.c.bf16 %v2498, %v2498
      %v2608 = vpack.c.bf16 %v2499, %v2499
      %v2609 = vpack.c.bf16 %v2500, %v2500
      %v2610 = vpack.c.bf16 %v2501, %v2501
      %v2611 = vpack.c.bf16 %v2502, %v2502
      %v2612 = vpack.c.bf16 %v2503, %v2503
      %v2613 = vpack.c.bf16 %v2504, %v2504
      %v2614 = vpack.c.bf16 %v2505, %v2505
      %v2615 = vpack.c.bf16 %v2506, %v2506
      %v2616 = vpack.c.bf16 %v2507, %v2507
      %v2617 = vpack.c.bf16 %v2508, %v2508
      %v2618 = vpack.c.bf16 %v2509, %v2509
      %v2619 = vpack.c.bf16 %v2510, %v2510
      %v2620 = vpack.c.bf16 %v2511, %v2511
      %v2621 = vpack.c.bf16 %v2512, %v2512
      %v2622 = vpack.c.bf16 %v2513, %v2513
      %v2623 = vpack.c.bf16 %v2514, %v2514
      %v2624 = vpack.c.bf16 %v2515, %v2515
      %v2625 = vpack.c.bf16 %v2516, %v2516
      %v2626 = vpack.c.bf16 %v2517, %v2517
      %v2627 = vpack.c.bf16 %v2518, %v2518
      %v2628 = vpack.c.bf16 %v2519, %v2519
      %v2629 = vpack.c.bf16 %v2520, %v2520
      %v2630 = vpack.c.bf16 %v2521, %v2521
      %v2631 = vpack.c.bf16 %v2522, %v2522
      %vm2632 = vcmask 257024
      %2633 = vst.msk [vmem:[%s197] sm:$0xf] %vm2632, %v2523
      %2634 = vst.msk [vmem:[%s197 + $0x4] sm:$0xf] %vm2632, %v2524
      %2635 = vst.msk [vmem:[%s197 + $0x8] sm:$0xf] %vm2632, %v2525
      %2636 = vst.msk [vmem:[%s197 + $0xc] sm:$0xf] %vm2632, %v2526
      %2637 = vst.msk [vmem:[%s197 + $0x10] sm:$0xf] %vm2632, %v2527
      %2638 = vst.msk [vmem:[%s197 + $0x14] sm:$0xf] %vm2632, %v2528
      %2639 = vst.msk [vmem:[%s197 + $0x18] sm:$0xf] %vm2632, %v2529
      %2640 = vst.msk [vmem:[%s197 + $0x1c] sm:$0xf] %vm2632, %v2530
      %2641 = vst.msk [vmem:[%s197 + $0x20] sm:$0xf] %vm2632, %v2531
      %2642 = vst.msk [vmem:[%s197 + $0x24] sm:$0xf] %vm2632, %v2532
      %2643 = vst.msk [vmem:[%s197 + $0x28] sm:$0xf] %vm2632, %v2533
      %2644 = vst.msk [vmem:[%s197 + $0x2c] sm:$0xf] %vm2632, %v2534
      %2645 = vst.msk [vmem:[%s197 + $0x30] sm:$0xf] %vm2632, %v2535
      %2646 = vst.msk [vmem:[%s197 + $0x34] sm:$0xf] %vm2632, %v2536
      %2647 = vst.msk [vmem:[%s197 + $0x38] sm:$0xf] %vm2632, %v2537
      %2648 = vst.msk [vmem:[%s197 + $0x3c] sm:$0xf] %vm2632, %v2538
      %2649 = vst.msk [vmem:[%s197 + $0x40] sm:$0xf] %vm2632, %v2539
      %2650 = vst.msk [vmem:[%s197 + $0x44] sm:$0xf] %vm2632, %v2540
      %2651 = vst.msk [vmem:[%s197 + $0x48] sm:$0xf] %vm2632, %v2541
      %2652 = vst.msk [vmem:[%s197 + $0x4c] sm:$0xf] %vm2632, %v2542
      %2653 = vst.msk [vmem:[%s197 + $0x50] sm:$0xf] %vm2632, %v2543
      %2654 = vst.msk [vmem:[%s197 + $0x54] sm:$0xf] %vm2632, %v2544
      %2655 = vst.msk [vmem:[%s197 + $0x58] sm:$0xf] %vm2632, %v2545
      %2656 = vst.msk [vmem:[%s197 + $0x5c] sm:$0xf] %vm2632, %v2546
      %2657 = vst.msk [vmem:[%s197 + $0x60] sm:$0xf] %vm2632, %v2547
      %2658 = vst.msk [vmem:[%s197 + $0x64] sm:$0xf] %vm2632, %v2548
      %2659 = vst.msk [vmem:[%s197 + $0x68] sm:$0xf] %vm2632, %v2549
      %2660 = vst.msk [vmem:[%s197 + $0x6c] sm:$0xf] %vm2632, %v2550
      %2661 = vst.msk [vmem:[%s197 + $0x70] sm:$0xf] %vm2632, %v2551
      %2662 = vst.msk [vmem:[%s197 + $0x74] sm:$0xf] %vm2632, %v2552
      %2663 = vst.msk [vmem:[%s197 + $0x78] sm:$0xf] %vm2632, %v2553
      %2664 = vst.msk [vmem:[%s197 + $0x7c] sm:$0xf] %vm2632, %v2554
      %2665 = vst.msk [vmem:[%s197 + $0x80] sm:$0xf] %vm2632, %v2555
      %2666 = vst.msk [vmem:[%s197 + $0x84] sm:$0xf] %vm2632, %v2556
      %2667 = vst.msk [vmem:[%s197 + $0x88] sm:$0xf] %vm2632, %v2557
      %2668 = vst.msk [vmem:[%s197 + $0x8c] sm:$0xf] %vm2632, %v2558
      %2669 = vst.msk [vmem:[%s197 + $0x90] sm:$0xf] %vm2632, %v2559
      %2670 = vst.msk [vmem:[%s197 + $0x94] sm:$0xf] %vm2632, %v2560
      %2671 = vst.msk [vmem:[%s197 + $0x98] sm:$0xf] %vm2632, %v2561
      %2672 = vst.msk [vmem:[%s197 + $0x9c] sm:$0xf] %vm2632, %v2562
      %2673 = vst.msk [vmem:[%s197 + $0xa0] sm:$0xf] %vm2632, %v2563
      %2674 = vst.msk [vmem:[%s197 + $0xa4] sm:$0xf] %vm2632, %v2564
      %2675 = vst.msk [vmem:[%s197 + $0xa8] sm:$0xf] %vm2632, %v2565
      %2676 = vst.msk [vmem:[%s197 + $0xac] sm:$0xf] %vm2632, %v2566
      %2677 = vst.msk [vmem:[%s197 + $0xb0] sm:$0xf] %vm2632, %v2567
      %2678 = vst.msk [vmem:[%s197 + $0xb4] sm:$0xf] %vm2632, %v2568
      %2679 = vst.msk [vmem:[%s197 + $0xb8] sm:$0xf] %vm2632, %v2569
      %2680 = vst.msk [vmem:[%s197 + $0xbc] sm:$0xf] %vm2632, %v2570
      %2681 = vst.msk [vmem:[%s197 + $0xc0] sm:$0xf] %vm2632, %v2571
      %2682 = vst.msk [vmem:[%s197 + $0xc4] sm:$0xf] %vm2632, %v2572
      %2683 = vst.msk [vmem:[%s197 + $0xc8] sm:$0xf] %vm2632, %v2573
      %2684 = vst.msk [vmem:[%s197 + $0xcc] sm:$0xf] %vm2632, %v2574
      %2685 = vst.msk [vmem:[%s197 + $0xd0] sm:$0xf] %vm2632, %v2575
      %2686 = vst.msk [vmem:[%s197 + $0xd4] sm:$0xf] %vm2632, %v2576
      %2687 = vst.msk [vmem:[%s197 + $0xd8] sm:$0xf] %vm2632, %v2577
      %2688 = vst.msk [vmem:[%s197 + $0xdc] sm:$0xf] %vm2632, %v2578
      %2689 = vst.msk [vmem:[%s197 + $0xe0] sm:$0xf] %vm2632, %v2579
      %2690 = vst.msk [vmem:[%s197 + $0xe4] sm:$0xf] %vm2632, %v2580
      %2691 = vst.msk [vmem:[%s197 + $0xe8] sm:$0xf] %vm2632, %v2581
      %2692 = vst.msk [vmem:[%s197 + $0xec] sm:$0xf] %vm2632, %v2582
      %2693 = vst.msk [vmem:[%s197 + $0xf0] sm:$0xf] %vm2632, %v2583
      %2694 = vst.msk [vmem:[%s197 + $0xf4] sm:$0xf] %vm2632, %v2584
      %2695 = vst.msk [vmem:[%s197 + $0xf8] sm:$0xf] %vm2632, %v2585
      %2696 = vst.msk [vmem:[%s197 + $0xfc] sm:$0xf] %vm2632, %v2586
      %2697 = vst.msk [vmem:[%s197 + $0x100] sm:$0xf] %vm2632, %v2587
      %2698 = vst.msk [vmem:[%s197 + $0x104] sm:$0xf] %vm2632, %v2588
      %2699 = vst.msk [vmem:[%s197 + $0x108] sm:$0xf] %vm2632, %v2589
      %2700 = vst.msk [vmem:[%s197 + $0x10c] sm:$0xf] %vm2632, %v2590
      %2701 = vst.msk [vmem:[%s197 + $0x110] sm:$0xf] %vm2632, %v2591
      %2702 = vst.msk [vmem:[%s197 + $0x114] sm:$0xf] %vm2632, %v2592
      %2703 = vst.msk [vmem:[%s197 + $0x118] sm:$0xf] %vm2632, %v2593
      %2704 = vst.msk [vmem:[%s197 + $0x11c] sm:$0xf] %vm2632, %v2594
      %2705 = vst.msk [vmem:[%s197 + $0x120] sm:$0xf] %vm2632, %v2595
      %2706 = vst.msk [vmem:[%s197 + $0x124] sm:$0xf] %vm2632, %v2596
      %2707 = vst.msk [vmem:[%s197 + $0x128] sm:$0xf] %vm2632, %v2597
      %2708 = vst.msk [vmem:[%s197 + $0x12c] sm:$0xf] %vm2632, %v2598
      %2709 = vst.msk [vmem:[%s197 + $0x130] sm:$0xf] %vm2632, %v2599
      %2710 = vst.msk [vmem:[%s197 + $0x134] sm:$0xf] %vm2632, %v2600
      %2711 = vst.msk [vmem:[%s197 + $0x138] sm:$0xf] %vm2632, %v2601
      %2712 = vst.msk [vmem:[%s197 + $0x13c] sm:$0xf] %vm2632, %v2602
      %2713 = vst.msk [vmem:[%s197 + $0x140] sm:$0xf] %vm2632, %v2603
      %2714 = vst.msk [vmem:[%s197 + $0x144] sm:$0xf] %vm2632, %v2604
      %2715 = vst.msk [vmem:[%s197 + $0x148] sm:$0xf] %vm2632, %v2605
      %2716 = vst.msk [vmem:[%s197 + $0x14c] sm:$0xf] %vm2632, %v2606
      %2717 = vst.msk [vmem:[%s197 + $0x150] sm:$0xf] %vm2632, %v2607
      %2718 = vst.msk [vmem:[%s197 + $0x154] sm:$0xf] %vm2632, %v2608
      %2719 = vst.msk [vmem:[%s197 + $0x158] sm:$0xf] %vm2632, %v2609
      %2720 = vst.msk [vmem:[%s197 + $0x15c] sm:$0xf] %vm2632, %v2610
      %2721 = vst.msk [vmem:[%s197 + $0x160] sm:$0xf] %vm2632, %v2611
      %2722 = vst.msk [vmem:[%s197 + $0x164] sm:$0xf] %vm2632, %v2612
      %2723 = vst.msk [vmem:[%s197 + $0x168] sm:$0xf] %vm2632, %v2613
      %2724 = vst.msk [vmem:[%s197 + $0x16c] sm:$0xf] %vm2632, %v2614
      %2725 = vst.msk [vmem:[%s197 + $0x170] sm:$0xf] %vm2632, %v2615
      %2726 = vst.msk [vmem:[%s197 + $0x174] sm:$0xf] %vm2632, %v2616
      %2727 = vst.msk [vmem:[%s197 + $0x178] sm:$0xf] %vm2632, %v2617
      %2728 = vst.msk [vmem:[%s197 + $0x17c] sm:$0xf] %vm2632, %v2618
      %2729 = vst.msk [vmem:[%s197 + $0x180] sm:$0xf] %vm2632, %v2619
      %2730 = vst.msk [vmem:[%s197 + $0x184] sm:$0xf] %vm2632, %v2620
      %2731 = vst.msk [vmem:[%s197 + $0x188] sm:$0xf] %vm2632, %v2621
      %2732 = vst.msk [vmem:[%s197 + $0x18c] sm:$0xf] %vm2632, %v2622
      %2733 = vst.msk [vmem:[%s197 + $0x190] sm:$0xf] %vm2632, %v2623
      %2734 = vst.msk [vmem:[%s197 + $0x194] sm:$0xf] %vm2632, %v2624
      %2735 = vst.msk [vmem:[%s197 + $0x198] sm:$0xf] %vm2632, %v2625
      %2736 = vst.msk [vmem:[%s197 + $0x19c] sm:$0xf] %vm2632, %v2626
      %2737 = vst.msk [vmem:[%s197 + $0x1a0] sm:$0xf] %vm2632, %v2627
      %2738 = vst.msk [vmem:[%s197 + $0x1a4] sm:$0xf] %vm2632, %v2628
      %2739 = vst.msk [vmem:[%s197 + $0x1a8] sm:$0xf] %vm2632, %v2629
      %2740 = vst.msk [vmem:[%s197 + $0x1ac] sm:$0xf] %vm2632, %v2630
      %vm2741 = vcmask 256000
      %vm2742 = vsmask.f32 2304
      %vm2743 = vmand %vm2741, %vm2742
      %v2744 = vld [vmem:[%s197 + $0x1b0] sm:$0x7]
      %v2745 = vsel %vm2743, %v2631, %v2744
      %2746 = vst [vmem:[%s197 + $0x1b0] sm:$0x7] %v2745
      %p2747 = scmp.lt.s32.totalorder %s15, 1
      %s2748 = scalar_select %p2747, %s15, 1
      %s2749 = smul.addr %s2748, 109
      %s2750 = smul.addr %s2749, 4
      %s2751 = scalar_lea.vmem %s4, %s2750
      // Predicated region
      $region37: #{network_cnn_forward.3} parent=35 // pred_check
        %p2752 = pneg %p122
      $region38: #{network_cnn_forward.3} parent=35 // pred_check_branch
        %2754 = sbr.rel (%p2752) target = $region40
      $region39: #{network_cnn_forward.3} parent=35 // pred_region
        _
      $region40: #{network_cnn_forward.3} parent=35 // pred_fallthru
        _
    $region36: #{network_cnn_forward.3} parent=5 // pred_fallthru
      _
    %p2755 = scmp.le.s32.totalorder 2, %s10
    // Predicated region
    $region41: #{network_cnn_forward.3} parent=5 // pred_check
      %p2756 = pneg %p2755
    $region42: #{network_cnn_forward.3} parent=5 // pred_check_branch
      %2758 = sbr.rel (%p2756) target = $region44
    $region43: #{network_cnn_forward.3} parent=5 // pred_region
      %s2759 = ssub.s32 %s10, 2
      // Predicated region
      $region45: #{network_cnn_forward.3} parent=43 // pred_check
        %p2760 = pneg %p128
      $region46: #{network_cnn_forward.3} parent=43 // pred_check_branch
        %2762 = sbr.rel (%p2760) target = $region48
      $region47: #{network_cnn_forward.3} parent=43 // pred_region
        %p2763 = scmp.lt.s32.totalorder %s16, 1
        %s2764 = scalar_select %p2763, %s16, 1
        %s2765 = smul.addr %s2764, 109
        %s2766 = smul.addr %s2765, 4
        %s2767 = scalar_lea.vmem %s4, %s2766
      $region48: #{network_cnn_forward.3} parent=43 // pred_fallthru
        _
    $region44: #{network_cnn_forward.3} parent=5 // pred_fallthru
      _
  $region6: #{network_cnn_forward.3} parent=0 // loop_footer
    %s14 = sadd.s32 1, %s10
  $region7: #{network_cnn_forward.3} parent=0 // loop_footer_branch
    %9 = sbr.rel target = $region3
  $region8: #{network_cnn_forward.3} parent=0 // loop_exit
    _

// kernel: network_cnn_forward.4
$region0: #{network_cnn_forward.4}
  #allocation0 [shape = 'u32[]', space=smem, size = 0x4, offset = 0x4, fixed_abs, tag = 'smem constant byte address 0x4 - core index']
  #allocation1 [shape = 'u32[72,128]{1,0:T(1,128)}', space=vmem, size = 0x9000, scoped, tag = 'internal scratch']
  %s0 = inlined_call_operand.vmem [shape: bf16[2,169,288], index: 0, kind: input, shape index: {}]
  %s1 = inlined_call_operand.vmem [shape: bf16[288,64], index: 1, kind: input, shape index: {}]
  %s2 = inlined_call_operand.vmem [shape: f32[1,64], index: 2, kind: input, shape index: {}]
  %s3 = inlined_call_operand.vmem [shape: f32[1,64], index: 3, kind: input, shape index: {}]
  %s4 = inlined_call_operand.vmem [shape: bf16[2,155,64], index: 4, kind: output, shape index: {}]
  %s5 = sld [smem:[#allocation0]]
  $region49: #{network_cnn_forward.4} parent=0
    _
  %s7 = ssub.s32 1, %s5
  %s8 = scalar_select 0, %s7, %s5
  loop: start=0, step=1, limit=4
  $region2: #{network_cnn_forward.4} parent=0 // loop_pre_header
    _
  $region3: #{network_cnn_forward.4} parent=0 // loop_header
    %s10 = sphi 0, %s14
    %p11 = scmp.ge.s32.totalorder %s10, 4
    %s20 = sphi 0, %s22
    %s23 = sphi 0, %s20
    %s24 = sphi 0, %s23
    %s40 = sphi 0, %s24
    %s44 = sphi 0, %s44
    %s46 = sphi 0, %s44
    %s47 = sphi 0, %s46
    %s61 = sphi 0, %s47
    %s65 = sphi 0, %s65
    %s67 = sphi 0, %s65
    %s68 = sphi 0, %s67
    %s82 = sphi 0, %s68
    %s86 = sphi 0, %s86
    %s88 = sphi 0, %s86
    %s89 = sphi 0, %s88
    %s103 = sphi 0, %s89
    %s109 = sphi 0, %s111
    %s112 = sphi 0, %s109
    %s113 = sphi 0, %s112
    %s129 = sphi 0, %s113
  $region4: #{network_cnn_forward.4} parent=0 // loop_header_branch
    %13 = sbr.rel (%p11) target = $region8
  $region5: #{network_cnn_forward.4} parent=0 // loop_body
    %s15 = ssub.s32 %s10, 1
    %s16 = ssub.s32 %s10, 2
    %s17 = sadd.s32 %s10, 1
    %s18 = ssub.s32 %s10, %s17
    %p19 = scmp.eq.s32.totalorder %s18, 0
    %s21 = sadd.s32 %s20, 1
    %s22 = scalar_select %p19, %s20, %s21
    %p25 = pneg %p19
    %p26 = scmp.eq.s32.totalorder %s10, 1
    %p27 = por %p25, %p26
    %p28 = scmp.ne.s32.totalorder %s20, %s23
    %p29 = scmp.eq.s32.totalorder %s10, 0
    %p30 = por %p28, %p29
    %p31 = scmp.ne.s32.totalorder %s20, %s23
    %p32 = scmp.eq.s32.totalorder %s15, 1
    %p33 = por %p31, %p32
    %p34 = scmp.ne.s32.totalorder %s23, %s24
    %p35 = scmp.eq.s32.totalorder %s15, 0
    %p36 = por %p34, %p35
    %p37 = scmp.ne.s32.totalorder %s23, %s24
    %p38 = scmp.eq.s32.totalorder %s16, 1
    %p39 = por %p37, %p38
    %p41 = scmp.ne.s32.totalorder %s24, %s40
    %p42 = scmp.eq.s32.totalorder %s16, 0
    %p43 = por %p41, %p42
    %s45 = sadd.s32 %s44, 1
    %p48 = scmp.eq.s32.totalorder %s10, 1
    %p49 = scmp.ne.s32.totalorder %s44, %s46
    %p50 = scmp.eq.s32.totalorder %s10, 0
    %p51 = por %p49, %p50
    %p52 = scmp.ne.s32.totalorder %s44, %s46
    %p53 = scmp.eq.s32.totalorder %s15, 1
    %p54 = por %p52, %p53
    %p55 = scmp.ne.s32.totalorder %s46, %s47
    %p56 = scmp.eq.s32.totalorder %s15, 0
    %p57 = por %p55, %p56
    %p58 = scmp.ne.s32.totalorder %s46, %s47
    %p59 = scmp.eq.s32.totalorder %s16, 1
    %p60 = por %p58, %p59
    %p62 = scmp.ne.s32.totalorder %s47, %s61
    %p63 = scmp.eq.s32.totalorder %s16, 0
    %p64 = por %p62, %p63
    %s66 = sadd.s32 %s65, 1
    %p69 = scmp.eq.s32.totalorder %s10, 1
    %p70 = scmp.ne.s32.totalorder %s65, %s67
    %p71 = scmp.eq.s32.totalorder %s10, 0
    %p72 = por %p70, %p71
    %p73 = scmp.ne.s32.totalorder %s65, %s67
    %p74 = scmp.eq.s32.totalorder %s15, 1
    %p75 = por %p73, %p74
    %p76 = scmp.ne.s32.totalorder %s67, %s68
    %p77 = scmp.eq.s32.totalorder %s15, 0
    %p78 = por %p76, %p77
    %p79 = scmp.ne.s32.totalorder %s67, %s68
    %p80 = scmp.eq.s32.totalorder %s16, 1
    %p81 = por %p79, %p80
    %p83 = scmp.ne.s32.totalorder %s68, %s82
    %p84 = scmp.eq.s32.totalorder %s16, 0
    %p85 = por %p83, %p84
    %s87 = sadd.s32 %s86, 1
    %p90 = scmp.eq.s32.totalorder %s10, 1
    %p91 = scmp.ne.s32.totalorder %s86, %s88
    %p92 = scmp.eq.s32.totalorder %s10, 0
    %p93 = por %p91, %p92
    %p94 = scmp.ne.s32.totalorder %s86, %s88
    %p95 = scmp.eq.s32.totalorder %s15, 1
    %p96 = por %p94, %p95
    %p97 = scmp.ne.s32.totalorder %s88, %s89
    %p98 = scmp.eq.s32.totalorder %s15, 0
    %p99 = por %p97, %p98
    %p100 = scmp.ne.s32.totalorder %s88, %s89
    %p101 = scmp.eq.s32.totalorder %s16, 1
    %p102 = por %p100, %p101
    %p104 = scmp.ne.s32.totalorder %s89, %s103
    %p105 = scmp.eq.s32.totalorder %s16, 0
    %p106 = por %p104, %p105
    %s107 = ssub.s32 %s10, %s17
    %p108 = scmp.eq.s32.totalorder %s107, 0
    %s110 = sadd.s32 %s109, 1
    %s111 = scalar_select %p108, %s109, %s110
    %p114 = pneg %p108
    %p115 = scmp.eq.s32.totalorder %s10, 1
    %p116 = por %p114, %p115
    %p117 = scmp.ne.s32.totalorder %s109, %s112
    %p118 = scmp.eq.s32.totalorder %s10, 0
    %p119 = por %p117, %p118
    %p120 = scmp.ne.s32.totalorder %s109, %s112
    %p121 = scmp.eq.s32.totalorder %s15, 1
    %p122 = por %p120, %p121
    %p123 = scmp.ne.s32.totalorder %s112, %s113
    %p124 = scmp.eq.s32.totalorder %s15, 0
    %p125 = por %p123, %p124
    %p126 = scmp.ne.s32.totalorder %s112, %s113
    %p127 = scmp.eq.s32.totalorder %s16, 1
    %p128 = por %p126, %p127
    %p130 = scmp.ne.s32.totalorder %s113, %s129
    %p131 = scmp.eq.s32.totalorder %s16, 0
    %p132 = por %p130, %p131
    %p133 = scmp.le.s32.totalorder 1, %s10
    %p134 = scmp.lt.s32.totalorder %s10, 3
    %p135 = pnand %p133, %p134
    %p136 = pneg %p135
    // Predicated region
    $region9: #{network_cnn_forward.4} parent=5 // pred_check
      _
    $region10: #{network_cnn_forward.4} parent=5 // pred_check_branch
      %138 = sbr.rel (%p135) target = $region12
    $region11: #{network_cnn_forward.4} parent=5 // pred_region
      %s139 = ssub.s32 %s10, 1
      // Predicated region
      $region13: #{network_cnn_forward.4} parent=11 // pred_check
        %p140 = pneg %p57
      $region14: #{network_cnn_forward.4} parent=11 // pred_check_branch
        %142 = sbr.rel (%p140) target = $region16
      $region15: #{network_cnn_forward.4} parent=11 // pred_region
        _
      $region16: #{network_cnn_forward.4} parent=11 // pred_fallthru
        _
      // Predicated region
      $region17: #{network_cnn_forward.4} parent=11 // pred_check
        %p143 = pneg %p78
      $region18: #{network_cnn_forward.4} parent=11 // pred_check_branch
        %145 = sbr.rel (%p143) target = $region20
      $region19: #{network_cnn_forward.4} parent=11 // pred_region
        _
      $region20: #{network_cnn_forward.4} parent=11 // pred_fallthru
        _
      // Predicated region
      $region21: #{network_cnn_forward.4} parent=11 // pred_check
        %p146 = pneg %p99
      $region22: #{network_cnn_forward.4} parent=11 // pred_check_branch
        %148 = sbr.rel (%p146) target = $region24
      $region23: #{network_cnn_forward.4} parent=11 // pred_region
        _
      $region24: #{network_cnn_forward.4} parent=11 // pred_fallthru
        _
    $region12: #{network_cnn_forward.4} parent=5 // pred_fallthru
      _
    %p149 = scmp.lt.s32.totalorder %s10, 2
    // Predicated region
    $region25: #{network_cnn_forward.4} parent=5 // pred_check
      %p150 = pneg %p149
    $region26: #{network_cnn_forward.4} parent=5 // pred_check_branch
      %152 = sbr.rel (%p150) target = $region28
    $region27: #{network_cnn_forward.4} parent=5 // pred_region
      // Predicated region
      $region29: #{network_cnn_forward.4} parent=27 // pred_check
        %p153 = pneg %p30
      $region30: #{network_cnn_forward.4} parent=27 // pred_check_branch
        %155 = sbr.rel (%p153) target = $region32
      $region31: #{network_cnn_forward.4} parent=27 // pred_region
        %p156 = scmp.lt.s32.totalorder %s10, 1
        %s157 = scalar_select %p156, %s10, 1
        %s158 = smul.addr %s157, 66
        %s159 = smul.addr %s158, 4
        %s160 = scalar_lea.vmem %s0, %s159
      $region32: #{network_cnn_forward.4} parent=27 // pred_fallthru
        _
    $region28: #{network_cnn_forward.4} parent=5 // pred_fallthru
      _
    %p161 = scmp.le.s32.totalorder 1, %s10
    %p162 = scmp.lt.s32.totalorder %s10, 3
    %p163 = pnand %p161, %p162
    %p164 = pneg %p163
    // Predicated region
    $region33: #{network_cnn_forward.4} parent=5 // pred_check
      _
    $region34: #{network_cnn_forward.4} parent=5 // pred_check_branch
      %166 = sbr.rel (%p163) target = $region36
    $region35: #{network_cnn_forward.4} parent=5 // pred_region
      %s167 = ssub.s32 %s10, 1
      %p168 = scmp.lt.s32.totalorder %s15, 1
      %s169 = scalar_select %p168, %s15, 1
      %s170 = smul.addr %s169, 66
      %s171 = smul.addr %s170, 4
      %s172 = scalar_lea.vmem %s0, %s171
      %p173 = pneg %p36
      %p174 = pneg %p33
      %p175 = pneg %p57
      %p176 = pneg %p54
      %p177 = pneg %p78
      %p178 = pneg %p75
      %p179 = pneg %p99
      %p180 = pneg %p96
      %p181 = pneg %p125
      %p182 = pneg %p122
      %p183 = scmp.lt.s32.totalorder %s15, 1
      %s184 = scalar_select %p183, %s15, 1
      %s185 = smul.addr %s184, 20
      %s186 = smul.addr %s185, 4
      %s187 = scalar_lea.vmem %s4, %s186
      %p188 = scmp.lt.s32.totalorder %s15, 1
      %s189 = scalar_select %p188, %s15, 1
      %s190 = smul.addr %s189, 66
      %s191 = smul.addr %s190, 4
      %s192 = scalar_lea.vmem %s0, %s191
      %p193 = scmp.lt.s32.totalorder %s15, 1
      %s194 = scalar_select %p193, %s15, 1
      %s195 = smul.addr %s194, 20
      %s196 = smul.addr %s195, 4
      %s197 = scalar_lea.vmem %s4, %s196
      %v199 = vld [vmem:[%s192] sm:$0xff]
      %v200 = vld [vmem:[%s192 + $0x8] sm:$0xf]
      %v201 = vld [vmem:[%s192 + $0xc] sm:$0xff]
      %v202 = vld [vmem:[%s192 + $0x14] sm:$0xf]
      %v203 = vld [vmem:[%s192 + $0x18] sm:$0xff]
      %v204 = vld [vmem:[%s192 + $0x20] sm:$0xf]
      %v205 = vld [vmem:[%s192 + $0x24] sm:$0xff]
      %v206 = vld [vmem:[%s192 + $0x2c] sm:$0xf]
      %v207 = vld [vmem:[%s192 + $0x30] sm:$0xff]
      %v208 = vld [vmem:[%s192 + $0x38] sm:$0xf]
      %v209 = vld [vmem:[%s192 + $0x3c] sm:$0xff]
      %v210 = vld [vmem:[%s192 + $0x44] sm:$0xf]
      %v211 = vld [vmem:[%s192 + $0x48] sm:$0xff]
      %v212 = vld [vmem:[%s192 + $0x50] sm:$0xf]
      %v213 = vld [vmem:[%s192 + $0x54] sm:$0xff]
      %v214 = vld [vmem:[%s192 + $0x5c] sm:$0xf]
      %v215 = vld [vmem:[%s192 + $0x60] sm:$0xff]
      %v216 = vld [vmem:[%s192 + $0x68] sm:$0xf]
      %v217 = vld [vmem:[%s192 + $0x6c] sm:$0xff]
      %v218 = vld [vmem:[%s192 + $0x74] sm:$0xf]
      %v219 = vld [vmem:[%s192 + $0x78] sm:$0xff]
      %v220 = vld [vmem:[%s192 + $0x80] sm:$0xf]
      %v221 = vld [vmem:[%s192 + $0x84] sm:$0xff]
      %v222 = vld [vmem:[%s192 + $0x8c] sm:$0xf]
      %v223 = vld [vmem:[%s192 + $0x90] sm:$0xff]
      %v224 = vld [vmem:[%s192 + $0x98] sm:$0xf]
      %v225 = vld [vmem:[%s192 + $0x9c] sm:$0xff]
      %v226 = vld [vmem:[%s192 + $0xa4] sm:$0xf]
      %v227 = vld [vmem:[%s192 + $0xa8] sm:$0xff]
      %v228 = vld [vmem:[%s192 + $0xb0] sm:$0xf]
      %v229 = vld [vmem:[%s192 + $0xb4] sm:$0xff]
      %v230 = vld [vmem:[%s192 + $0xbc] sm:$0xf]
      %v231 = vld [vmem:[%s192 + $0xc0] sm:$0xff]
      %v232 = vld [vmem:[%s192 + $0xc8] sm:$0xf]
      %v233 = vld [vmem:[%s192 + $0xcc] sm:$0xff]
      %v234 = vld [vmem:[%s192 + $0xd4] sm:$0xf]
      %v235 = vld [vmem:[%s192 + $0xd8] sm:$0xff]
      %v236 = vld [vmem:[%s192 + $0xe0] sm:$0xf]
      %v237 = vld [vmem:[%s192 + $0xe4] sm:$0xff]
      %v238 = vld [vmem:[%s192 + $0xec] sm:$0xf]
      %v239 = vld [vmem:[%s192 + $0xf0] sm:$0xff]
      %v240 = vld [vmem:[%s192 + $0xf8] sm:$0xf]
      %v241 = vld [vmem:[%s192 + $0xfc] sm:$0x11]
      %v242 = vld [vmem:[%s192 + $0x104] sm:$0x1]
      %v243 = vld [vmem:[%s1] sm:$0xf]
      %v244 = vld [vmem:[%s1 + $0x4] sm:$0xf]
      %v245 = vld [vmem:[%s1 + $0x8] sm:$0xf]
      %v246 = vld [vmem:[%s1 + $0xc] sm:$0xf]
      %v247 = vld [vmem:[%s1 + $0x10] sm:$0xf]
      %v248 = vld [vmem:[%s1 + $0x14] sm:$0xf]
      %v249 = vld [vmem:[%s1 + $0x18] sm:$0xf]
      %v250 = vld [vmem:[%s1 + $0x1c] sm:$0xf]
      %v251 = vld [vmem:[%s1 + $0x20] sm:$0xf]
      %v252 = vld [vmem:[%s1 + $0x24] sm:$0xf]
      %v253 = vld [vmem:[%s1 + $0x28] sm:$0xf]
      %v254 = vld [vmem:[%s1 + $0x2c] sm:$0xf]
      %v255 = vld [vmem:[%s1 + $0x30] sm:$0xf]
      %v256 = vld [vmem:[%s1 + $0x34] sm:$0xf]
      %v257 = vld [vmem:[%s1 + $0x38] sm:$0xf]
      %v258 = vld [vmem:[%s1 + $0x3c] sm:$0xf]
      %v259 = vld [vmem:[%s1 + $0x40] sm:$0xf]
      %v260 = vld [vmem:[%s1 + $0x44] sm:$0xf]
      %v261 = vld [vmem:[%s1 + $0x48] sm:$0xf]
      %v262 = vld [vmem:[%s1 + $0x4c] sm:$0xf]
      %v263 = vld [vmem:[%s1 + $0x50] sm:$0xf]
      %v264 = vld [vmem:[%s1 + $0x54] sm:$0xf]
      %v265 = vld [vmem:[%s1 + $0x58] sm:$0xf]
      %v266 = vld [vmem:[%s1 + $0x5c] sm:$0xf]
      %v267 = vld [vmem:[%s1 + $0x60] sm:$0xf]
      %v268 = vld [vmem:[%s1 + $0x64] sm:$0xf]
      %v269 = vld [vmem:[%s1 + $0x68] sm:$0xf]
      %v270 = vld [vmem:[%s1 + $0x6c] sm:$0xf]
      %v271 = vld [vmem:[%s1 + $0x70] sm:$0xf]
      %v272 = vld [vmem:[%s1 + $0x74] sm:$0xf]
      %v273 = vld [vmem:[%s1 + $0x78] sm:$0xf]
      %v274 = vld [vmem:[%s1 + $0x7c] sm:$0xf]
      %v275 = vld [vmem:[%s1 + $0x80] sm:$0xf]
      %v276 = vld [vmem:[%s1 + $0x84] sm:$0xf]
      %v277 = vld [vmem:[%s1 + $0x88] sm:$0xf]
      %v278 = vld [vmem:[%s1 + $0x8c] sm:$0xf]
      %v323 = vunpack.c.l.b16 %v199
      %v324 = vunpack.c.h.b16 %v199
      %v325 = vunpack.c.l.b16 %v200
      %v326 = vunpack.c.l.b16 %v201
      %v327 = vunpack.c.h.b16 %v201
      %v328 = vunpack.c.l.b16 %v202
      %v329 = vunpack.c.l.b16 %v203
      %v330 = vunpack.c.h.b16 %v203
      %v331 = vunpack.c.l.b16 %v204
      %v332 = vunpack.c.l.b16 %v205
      %v333 = vunpack.c.h.b16 %v205
      %v334 = vunpack.c.l.b16 %v206
      %v335 = vunpack.c.l.b16 %v207
      %v336 = vunpack.c.h.b16 %v207
      %v337 = vunpack.c.l.b16 %v208
      %v338 = vunpack.c.l.b16 %v209
      %v339 = vunpack.c.h.b16 %v209
      %v340 = vunpack.c.l.b16 %v210
      %v341 = vunpack.c.l.b16 %v211
      %v342 = vunpack.c.h.b16 %v211
      %v343 = vunpack.c.l.b16 %v212
      %v344 = vunpack.c.l.b16 %v213
      %v345 = vunpack.c.h.b16 %v213
      %v346 = vunpack.c.l.b16 %v214
      %v347 = vunpack.c.l.b16 %v215
      %v348 = vunpack.c.h.b16 %v215
      %v349 = vunpack.c.l.b16 %v216
      %v350 = vunpack.c.l.b16 %v217
      %v351 = vunpack.c.h.b16 %v217
      %v352 = vunpack.c.l.b16 %v218
      %v353 = vunpack.c.l.b16 %v219
      %v354 = vunpack.c.h.b16 %v219
      %v355 = vunpack.c.l.b16 %v220
      %v356 = vunpack.c.l.b16 %v221
      %v357 = vunpack.c.h.b16 %v221
      %v358 = vunpack.c.l.b16 %v222
      %v359 = vunpack.c.l.b16 %v223
      %v360 = vunpack.c.h.b16 %v223
      %v361 = vunpack.c.l.b16 %v224
      %v362 = vunpack.c.l.b16 %v225
      %v363 = vunpack.c.h.b16 %v225
      %v364 = vunpack.c.l.b16 %v226
      %v365 = vunpack.c.l.b16 %v227
      %v366 = vunpack.c.h.b16 %v227
      %v367 = vunpack.c.l.b16 %v228
      %v368 = vunpack.c.l.b16 %v229
      %v369 = vunpack.c.h.b16 %v229
      %v370 = vunpack.c.l.b16 %v230
      %v371 = vunpack.c.l.b16 %v231
      %v372 = vunpack.c.h.b16 %v231
      %v373 = vunpack.c.l.b16 %v232
      %v374 = vunpack.c.l.b16 %v233
      %v375 = vunpack.c.h.b16 %v233
      %v376 = vunpack.c.l.b16 %v234
      %v377 = vunpack.c.l.b16 %v235
      %v378 = vunpack.c.h.b16 %v235
      %v379 = vunpack.c.l.b16 %v236
      %v380 = vunpack.c.l.b16 %v237
      %v381 = vunpack.c.h.b16 %v237
      %v382 = vunpack.c.l.b16 %v238
      %v383 = vunpack.c.l.b16 %v239
      %v384 = vunpack.c.h.b16 %v239
      %v385 = vunpack.c.l.b16 %v240
      %v386 = vunpack.c.l.b16 %v241
      %v387 = vunpack.c.h.b16 %v241
      %v388 = vunpack.c.l.b16 %v242
      %v389 = vpack.c.b16 %v326, %v323
      %v390 = vpack.c.b16 %v327, %v324
      %v391 = vpack.c.b16 %v328, %v325
      %v392 = vpack.c.b16 %v332, %v329
      %v393 = vpack.c.b16 %v333, %v330
      %v394 = vpack.c.b16 %v334, %v331
      %v395 = vpack.c.b16 %v338, %v335
      %v396 = vpack.c.b16 %v339, %v336
      %v397 = vpack.c.b16 %v340, %v337
      %v398 = vpack.c.b16 %v344, %v341
      %v399 = vpack.c.b16 %v345, %v342
      %v400 = vpack.c.b16 %v346, %v343
      %v401 = vpack.c.b16 %v350, %v347
      %v402 = vpack.c.b16 %v351, %v348
      %v403 = vpack.c.b16 %v352, %v349
      %v404 = vpack.c.b16 %v356, %v353
      %v405 = vpack.c.b16 %v357, %v354
      %v406 = vpack.c.b16 %v358, %v355
      %v407 = vpack.c.b16 %v362, %v359
      %v408 = vpack.c.b16 %v363, %v360
      %v409 = vpack.c.b16 %v364, %v361
      %v410 = vpack.c.b16 %v368, %v365
      %v411 = vpack.c.b16 %v369, %v366
      %v412 = vpack.c.b16 %v370, %v367
      %v413 = vpack.c.b16 %v374, %v371
      %v414 = vpack.c.b16 %v375, %v372
      %v415 = vpack.c.b16 %v376, %v373
      %v416 = vpack.c.b16 %v380, %v377
      %v417 = vpack.c.b16 %v381, %v378
      %v418 = vpack.c.b16 %v382, %v379
      %v419 = vpack.c.b16 %v386, %v383
      %v420 = vpack.c.b16 %v387, %v384
      %v421 = vpack.c.b16 %v388, %v385
      %v480 = vunpack.c.l.b16 %v243
      %v481 = vunpack.c.l.b16 %v244
      %v482 = vunpack.c.l.b16 %v245
      %v483 = vunpack.c.l.b16 %v246
      %v484 = vunpack.c.l.b16 %v247
      %v485 = vunpack.c.l.b16 %v248
      %v486 = vunpack.c.l.b16 %v249
      %v487 = vunpack.c.l.b16 %v250
      %v488 = vunpack.c.l.b16 %v251
      %v489 = vunpack.c.l.b16 %v252
      %v490 = vunpack.c.l.b16 %v253
      %v491 = vunpack.c.l.b16 %v254
      %v492 = vunpack.c.l.b16 %v255
      %v493 = vunpack.c.l.b16 %v256
      %v494 = vunpack.c.l.b16 %v257
      %v495 = vunpack.c.l.b16 %v258
      %v496 = vunpack.c.l.b16 %v259
      %v497 = vunpack.c.l.b16 %v260
      %v498 = vunpack.c.l.b16 %v261
      %v499 = vunpack.c.l.b16 %v262
      %v500 = vunpack.c.l.b16 %v263
      %v501 = vunpack.c.l.b16 %v264
      %v502 = vunpack.c.l.b16 %v265
      %v503 = vunpack.c.l.b16 %v266
      %v504 = vunpack.c.l.b16 %v267
      %v505 = vunpack.c.l.b16 %v268
      %v506 = vunpack.c.l.b16 %v269
      %v507 = vunpack.c.l.b16 %v270
      %v508 = vunpack.c.l.b16 %v271
      %v509 = vunpack.c.l.b16 %v272
      %v510 = vunpack.c.l.b16 %v273
      %v511 = vunpack.c.l.b16 %v274
      %v512 = vunpack.c.l.b16 %v275
      %v513 = vunpack.c.l.b16 %v276
      %v514 = vunpack.c.l.b16 %v277
      %v515 = vunpack.c.l.b16 %v278
      %v516 = vpack.c.b16 %v481, %v480
      %v517 = vpack.c.b16 %v483, %v482
      %v518 = vpack.c.b16 %v485, %v484
      %v519 = vpack.c.b16 %v487, %v486
      %v520 = vpack.c.b16 %v489, %v488
      %v521 = vpack.c.b16 %v491, %v490
      %v522 = vpack.c.b16 %v493, %v492
      %v523 = vpack.c.b16 %v495, %v494
      %v524 = vpack.c.b16 %v497, %v496
      %v525 = vpack.c.b16 %v499, %v498
      %v526 = vpack.c.b16 %v501, %v500
      %v527 = vpack.c.b16 %v503, %v502
      %v528 = vpack.c.b16 %v505, %v504
      %v529 = vpack.c.b16 %v507, %v506
      %v530 = vpack.c.b16 %v509, %v508
      %v531 = vpack.c.b16 %v511, %v510
      %v532 = vpack.c.b16 %v513, %v512
      %v533 = vpack.c.b16 %v515, %v514
      %vm552 = vcmask 261120
      %v554 = vsel %vm552, %v391, 0
      %v557 = vsel %vm552, %v394, 0
      %v560 = vsel %vm552, %v397, 0
      %v563 = vsel %vm552, %v400, 0
      %v566 = vsel %vm552, %v403, 0
      %v569 = vsel %vm552, %v406, 0
      %v572 = vsel %vm552, %v409, 0
      %v575 = vsel %vm552, %v412, 0
      %v578 = vsel %vm552, %v415, 0
      %v581 = vsel %vm552, %v418, 0
      %v584 = vsel %vm552, %v421, 0
      %586 = vmatpush.bf16.msra.mxu0 %v523
      %587 = vmatpush.bf16.msra.mxu0 %v522
      %588 = vmatpush.bf16.msra.mxu0 %v521
      %589 = vmatpush.bf16.msra.mxu0 %v520
      %590 = vmatpush.bf16.msra.mxu0 %v519
      %591 = vmatpush.bf16.msra.mxu0 %v518
      %592 = vmatpush.bf16.msra.mxu0 %v517
      %593 = vmatpush.bf16.msra.mxu0 %v516
      %594 = vmatmul.bf16.gmra.mxu0 %v389
      %v595 = vpop.f32.mrf.mxu0
      %v596 = vadd.f32 0.0, %v595
      %v597 = vpop.f32.mrf.mxu0
      %v598 = vadd.f32 0.0, %v597
      %599 = vmatmul.bf16.gmra.mxu0 %v392
      %v600 = vpop.f32.mrf.mxu0
      %v601 = vadd.f32 0.0, %v600
      %v602 = vpop.f32.mrf.mxu0
      %v603 = vadd.f32 0.0, %v602
      %604 = vmatmul.bf16.gmra.mxu0 %v395
      %v605 = vpop.f32.mrf.mxu0
      %v606 = vadd.f32 0.0, %v605
      %v607 = vpop.f32.mrf.mxu0
      %v608 = vadd.f32 0.0, %v607
      %609 = vmatmul.bf16.gmra.mxu0 %v398
      %v610 = vpop.f32.mrf.mxu0
      %v611 = vadd.f32 0.0, %v610
      %v612 = vpop.f32.mrf.mxu0
      %v613 = vadd.f32 0.0, %v612
      %614 = vmatmul.bf16.gmra.mxu0 %v401
      %v615 = vpop.f32.mrf.mxu0
      %v616 = vadd.f32 0.0, %v615
      %v617 = vpop.f32.mrf.mxu0
      %v618 = vadd.f32 0.0, %v617
      %619 = vmatmul.bf16.gmra.mxu0 %v404
      %v620 = vpop.f32.mrf.mxu0
      %v621 = vadd.f32 0.0, %v620
      %v622 = vpop.f32.mrf.mxu0
      %v623 = vadd.f32 0.0, %v622
      %624 = vmatmul.bf16.gmra.mxu0 %v407
      %v625 = vpop.f32.mrf.mxu0
      %v626 = vadd.f32 0.0, %v625
      %v627 = vpop.f32.mrf.mxu0
      %v628 = vadd.f32 0.0, %v627
      %629 = vmatmul.bf16.gmra.mxu0 %v410
      %v630 = vpop.f32.mrf.mxu0
      %v631 = vadd.f32 0.0, %v630
      %v632 = vpop.f32.mrf.mxu0
      %v633 = vadd.f32 0.0, %v632
      %634 = vmatmul.bf16.gmra.mxu0 %v413
      %v635 = vpop.f32.mrf.mxu0
      %v636 = vadd.f32 0.0, %v635
      %v637 = vpop.f32.mrf.mxu0
      %v638 = vadd.f32 0.0, %v637
      %639 = vmatmul.bf16.gmra.mxu0 %v416
      %v640 = vpop.f32.mrf.mxu0
      %v641 = vadd.f32 0.0, %v640
      %v642 = vpop.f32.mrf.mxu0
      %v643 = vadd.f32 0.0, %v642
      %644 = vmatmul.bf16.gmra.mxu0 %v419
      %v645 = vpop.f32.mrf.mxu0
      %v646 = vadd.f32 0.0, %v645
      %v647 = vpop.f32.mrf.mxu0
      %v648 = vadd.f32 0.0, %v647
      %649 = vdwg.mxu0
      %650 = vmatpush.bf16.msra.mxu0 %v531
      %651 = vmatpush.bf16.msra.mxu0 %v530
      %652 = vmatpush.bf16.msra.mxu0 %v529
      %653 = vmatpush.bf16.msra.mxu0 %v528
      %654 = vmatpush.bf16.msra.mxu0 %v527
      %655 = vmatpush.bf16.msra.mxu0 %v526
      %656 = vmatpush.bf16.msra.mxu0 %v525
      %657 = vmatpush.bf16.msra.mxu0 %v524
      %658 = vmatmul.bf16.gmra.mxu0 %v390
      %v659 = vpop.f32.mrf.mxu0
      %v660 = vadd.f32 %v596, %v659
      %v661 = vpop.f32.mrf.mxu0
      %v662 = vadd.f32 %v598, %v661
      %663 = vmatmul.bf16.gmra.mxu0 %v393
      %v664 = vpop.f32.mrf.mxu0
      %v665 = vadd.f32 %v601, %v664
      %v666 = vpop.f32.mrf.mxu0
      %v667 = vadd.f32 %v603, %v666
      %668 = vmatmul.bf16.gmra.mxu0 %v396
      %v669 = vpop.f32.mrf.mxu0
      %v670 = vadd.f32 %v606, %v669
      %v671 = vpop.f32.mrf.mxu0
      %v672 = vadd.f32 %v608, %v671
      %673 = vmatmul.bf16.gmra.mxu0 %v399
      %v674 = vpop.f32.mrf.mxu0
      %v675 = vadd.f32 %v611, %v674
      %v676 = vpop.f32.mrf.mxu0
      %v677 = vadd.f32 %v613, %v676
      %678 = vmatmul.bf16.gmra.mxu0 %v402
      %v679 = vpop.f32.mrf.mxu0
      %v680 = vadd.f32 %v616, %v679
      %v681 = vpop.f32.mrf.mxu0
      %v682 = vadd.f32 %v618, %v681
      %683 = vmatmul.bf16.gmra.mxu0 %v405
      %v684 = vpop.f32.mrf.mxu0
      %v685 = vadd.f32 %v621, %v684
      %v686 = vpop.f32.mrf.mxu0
      %v687 = vadd.f32 %v623, %v686
      %688 = vmatmul.bf16.gmra.mxu0 %v408
      %v689 = vpop.f32.mrf.mxu0
      %v690 = vadd.f32 %v626, %v689
      %v691 = vpop.f32.mrf.mxu0
      %v692 = vadd.f32 %v628, %v691
      %693 = vmatmul.bf16.gmra.mxu0 %v411
      %v694 = vpop.f32.mrf.mxu0
      %v695 = vadd.f32 %v631, %v694
      %v696 = vpop.f32.mrf.mxu0
      %v697 = vadd.f32 %v633, %v696
      %698 = vmatmul.bf16.gmra.mxu0 %v414
      %v699 = vpop.f32.mrf.mxu0
      %v700 = vadd.f32 %v636, %v699
      %v701 = vpop.f32.mrf.mxu0
      %v702 = vadd.f32 %v638, %v701
      %703 = vmatmul.bf16.gmra.mxu0 %v417
      %v704 = vpop.f32.mrf.mxu0
      %v705 = vadd.f32 %v641, %v704
      %v706 = vpop.f32.mrf.mxu0
      %v707 = vadd.f32 %v643, %v706
      %708 = vmatmul.bf16.gmra.mxu0 %v420
      %v709 = vpop.f32.mrf.mxu0
      %v710 = vadd.f32 %v646, %v709
      %v711 = vpop.f32.mrf.mxu0
      %v712 = vadd.f32 %v648, %v711
      %713 = vdwg.mxu0
      %714 = vmatpush.bf16.msra.mxu0 0
      %715 = vmatpush.bf16.msra.mxu0 0
      %716 = vmatpush.bf16.msra.mxu0 0
      %717 = vmatpush.bf16.msra.mxu0 0
      %718 = vmatpush.bf16.msra.mxu0 0
      %719 = vmatpush.bf16.msra.mxu0 0
      %720 = vmatpush.bf16.msra.mxu0 %v533
      %721 = vmatpush.bf16.msra.mxu0 %v532
      %722 = vmatmul.bf16.gmra.mxu0 %v554
      %v723 = vpop.f32.mrf.mxu0
      %v724 = vadd.f32 %v660, %v723
      %v725 = vpop.f32.mrf.mxu0
      %v726 = vadd.f32 %v662, %v725
      %727 = vmatmul.bf16.gmra.mxu0 %v557
      %v728 = vpop.f32.mrf.mxu0
      %v729 = vadd.f32 %v665, %v728
      %v730 = vpop.f32.mrf.mxu0
      %v731 = vadd.f32 %v667, %v730
      %732 = vmatmul.bf16.gmra.mxu0 %v560
      %v733 = vpop.f32.mrf.mxu0
      %v734 = vadd.f32 %v670, %v733
      %v735 = vpop.f32.mrf.mxu0
      %v736 = vadd.f32 %v672, %v735
      %737 = vmatmul.bf16.gmra.mxu0 %v563
      %v738 = vpop.f32.mrf.mxu0
      %v739 = vadd.f32 %v675, %v738
      %v740 = vpop.f32.mrf.mxu0
      %v741 = vadd.f32 %v677, %v740
      %742 = vmatmul.bf16.gmra.mxu0 %v566
      %v743 = vpop.f32.mrf.mxu0
      %v744 = vadd.f32 %v680, %v743
      %v745 = vpop.f32.mrf.mxu0
      %v746 = vadd.f32 %v682, %v745
      %747 = vmatmul.bf16.gmra.mxu0 %v569
      %v748 = vpop.f32.mrf.mxu0
      %v749 = vadd.f32 %v685, %v748
      %v750 = vpop.f32.mrf.mxu0
      %v751 = vadd.f32 %v687, %v750
      %752 = vmatmul.bf16.gmra.mxu0 %v572
      %v753 = vpop.f32.mrf.mxu0
      %v754 = vadd.f32 %v690, %v753
      %v755 = vpop.f32.mrf.mxu0
      %v756 = vadd.f32 %v692, %v755
      %757 = vmatmul.bf16.gmra.mxu0 %v575
      %v758 = vpop.f32.mrf.mxu0
      %v759 = vadd.f32 %v695, %v758
      %v760 = vpop.f32.mrf.mxu0
      %v761 = vadd.f32 %v697, %v760
      %762 = vmatmul.bf16.gmra.mxu0 %v578
      %v763 = vpop.f32.mrf.mxu0
      %v764 = vadd.f32 %v700, %v763
      %v765 = vpop.f32.mrf.mxu0
      %v766 = vadd.f32 %v702, %v765
      %767 = vmatmul.bf16.gmra.mxu0 %v581
      %v768 = vpop.f32.mrf.mxu0
      %v769 = vadd.f32 %v705, %v768
      %v770 = vpop.f32.mrf.mxu0
      %v771 = vadd.f32 %v707, %v770
      %772 = vmatmul.bf16.gmra.mxu0 %v584
      %v773 = vpop.f32.mrf.mxu0
      %v774 = vadd.f32 %v710, %v773
      %v775 = vpop.f32.mrf.mxu0
      %v776 = vadd.f32 %v712, %v775
      %777 = vdwg.mxu0
      %v778 = vld [vmem:[%s2] sm:$0x1]
      %v780 = vperm.slane %v778, 0
      %v782 = vmul.f32 %v724, %v780
      %v783 = vmul.f32 %v726, %v780
      %v784 = vmul.f32 %v729, %v780
      %v785 = vmul.f32 %v731, %v780
      %v786 = vmul.f32 %v734, %v780
      %v787 = vmul.f32 %v736, %v780
      %v788 = vmul.f32 %v739, %v780
      %v789 = vmul.f32 %v741, %v780
      %v790 = vmul.f32 %v744, %v780
      %v791 = vmul.f32 %v746, %v780
      %v792 = vmul.f32 %v749, %v780
      %v793 = vmul.f32 %v751, %v780
      %v794 = vmul.f32 %v754, %v780
      %v795 = vmul.f32 %v756, %v780
      %v796 = vmul.f32 %v759, %v780
      %v797 = vmul.f32 %v761, %v780
      %v798 = vmul.f32 %v764, %v780
      %v799 = vmul.f32 %v766, %v780
      %v800 = vmul.f32 %v769, %v780
      %v801 = vmul.f32 %v771, %v780
      %v802 = vmul.f32 %v774, %v780
      %v803 = vmul.f32 %v776, %v780
      %v804 = vld [vmem:[%s3] sm:$0x1]
      %v806 = vperm.slane %v804, 0
      %v808 = vadd.f32 %v782, %v806
      %v809 = vadd.f32 %v783, %v806
      %v810 = vadd.f32 %v784, %v806
      %v811 = vadd.f32 %v785, %v806
      %v812 = vadd.f32 %v786, %v806
      %v813 = vadd.f32 %v787, %v806
      %v814 = vadd.f32 %v788, %v806
      %v815 = vadd.f32 %v789, %v806
      %v816 = vadd.f32 %v790, %v806
      %v817 = vadd.f32 %v791, %v806
      %v818 = vadd.f32 %v792, %v806
      %v819 = vadd.f32 %v793, %v806
      %v820 = vadd.f32 %v794, %v806
      %v821 = vadd.f32 %v795, %v806
      %v822 = vadd.f32 %v796, %v806
      %v823 = vadd.f32 %v797, %v806
      %v824 = vadd.f32 %v798, %v806
      %v825 = vadd.f32 %v799, %v806
      %v826 = vadd.f32 %v800, %v806
      %v827 = vadd.f32 %v801, %v806
      %v828 = vadd.f32 %v802, %v806
      %v829 = vadd.f32 %v803, %v806
      %v830 = vmax.f32 %v808, 0.0
      %v831 = vmax.f32 %v809, 0.0
      %v832 = vmax.f32 %v810, 0.0
      %v833 = vmax.f32 %v811, 0.0
      %v834 = vmax.f32 %v812, 0.0
      %v835 = vmax.f32 %v813, 0.0
      %v836 = vmax.f32 %v814, 0.0
      %v837 = vmax.f32 %v815, 0.0
      %v838 = vmax.f32 %v816, 0.0
      %v839 = vmax.f32 %v817, 0.0
      %v840 = vmax.f32 %v818, 0.0
      %v841 = vmax.f32 %v819, 0.0
      %v842 = vmax.f32 %v820, 0.0
      %v843 = vmax.f32 %v821, 0.0
      %v844 = vmax.f32 %v822, 0.0
      %v845 = vmax.f32 %v823, 0.0
      %v846 = vmax.f32 %v824, 0.0
      %v847 = vmax.f32 %v825, 0.0
      %v848 = vmax.f32 %v826, 0.0
      %v849 = vmax.f32 %v827, 0.0
      %v850 = vmax.f32 %v828, 0.0
      %v851 = vmax.f32 %v829, 0.0
      %vm873 = vcmask 1042432
      %v874 = vrot.slane %v831, 5
      %v875 = vrot.slane %v832, 5
      %v876 = vsel %vm873, %v874, %v875
      %v877 = vrot.slane %v833, 5
      %v878 = vsel %vm873, %v875, %v877
      %v879 = vrot.slane %v834, 5
      %v880 = vsel %vm873, %v877, %v879
      %v881 = vrot.slane %v835, 5
      %v882 = vsel %vm873, %v879, %v881
      %v883 = vrot.slane %v836, 5
      %v884 = vsel %vm873, %v881, %v883
      %v885 = vrot.slane %v837, 5
      %v886 = vsel %vm873, %v883, %v885
      %v887 = vrot.slane %v838, 5
      %v888 = vsel %vm873, %v885, %v887
      %v889 = vrot.slane %v839, 5
      %v890 = vsel %vm873, %v887, %v889
      %v891 = vrot.slane %v840, 5
      %v892 = vsel %vm873, %v889, %v891
      %v893 = vrot.slane %v841, 5
      %v894 = vsel %vm873, %v891, %v893
      %v895 = vrot.slane %v842, 5
      %v896 = vsel %vm873, %v893, %v895
      %v897 = vrot.slane %v843, 5
      %v898 = vsel %vm873, %v895, %v897
      %v899 = vrot.slane %v844, 5
      %v900 = vsel %vm873, %v897, %v899
      %v901 = vrot.slane %v845, 5
      %v902 = vsel %vm873, %v899, %v901
      %v903 = vrot.slane %v846, 5
      %v904 = vsel %vm873, %v901, %v903
      %v905 = vrot.slane %v847, 5
      %v906 = vsel %vm873, %v903, %v905
      %v907 = vrot.slane %v848, 5
      %v908 = vsel %vm873, %v905, %v907
      %v909 = vrot.slane %v849, 5
      %v910 = vsel %vm873, %v907, %v909
      %v911 = vrot.slane %v850, 5
      %v912 = vsel %vm873, %v909, %v911
      %v913 = vrot.slane %v851, 5
      %v914 = vsel %vm873, %v911, %v913
      %v935 = vmax.f32 %v830, %v876
      %v936 = vmax.f32 %v831, %v878
      %v937 = vmax.f32 %v832, %v880
      %v938 = vmax.f32 %v833, %v882
      %v939 = vmax.f32 %v834, %v884
      %v940 = vmax.f32 %v835, %v886
      %v941 = vmax.f32 %v836, %v888
      %v942 = vmax.f32 %v837, %v890
      %v943 = vmax.f32 %v838, %v892
      %v944 = vmax.f32 %v839, %v894
      %v945 = vmax.f32 %v840, %v896
      %v946 = vmax.f32 %v841, %v898
      %v947 = vmax.f32 %v842, %v900
      %v948 = vmax.f32 %v843, %v902
      %v949 = vmax.f32 %v844, %v904
      %v950 = vmax.f32 %v845, %v906
      %v951 = vmax.f32 %v846, %v908
      %v952 = vmax.f32 %v847, %v910
      %v953 = vmax.f32 %v848, %v912
      %v954 = vmax.f32 %v849, %v914
      %vm975 = vcmask 1046528
      %v976 = vrot.slane %v935, 1
      %v977 = vrot.slane %v936, 1
      %v978 = vsel %vm975, %v976, %v977
      %v979 = vrot.slane %v937, 1
      %v980 = vsel %vm975, %v977, %v979
      %v981 = vrot.slane %v938, 1
      %v982 = vsel %vm975, %v979, %v981
      %v983 = vrot.slane %v939, 1
      %v984 = vsel %vm975, %v981, %v983
      %v985 = vrot.slane %v940, 1
      %v986 = vsel %vm975, %v983, %v985
      %v987 = vrot.slane %v941, 1
      %v988 = vsel %vm975, %v985, %v987
      %v989 = vrot.slane %v942, 1
      %v990 = vsel %vm975, %v987, %v989
      %v991 = vrot.slane %v943, 1
      %v992 = vsel %vm975, %v989, %v991
      %v993 = vrot.slane %v944, 1
      %v994 = vsel %vm975, %v991, %v993
      %v995 = vrot.slane %v945, 1
      %v996 = vsel %vm975, %v993, %v995
      %v997 = vrot.slane %v946, 1
      %v998 = vsel %vm975, %v995, %v997
      %v999 = vrot.slane %v947, 1
      %v1000 = vsel %vm975, %v997, %v999
      %v1001 = vrot.slane %v948, 1
      %v1002 = vsel %vm975, %v999, %v1001
      %v1003 = vrot.slane %v949, 1
      %v1004 = vsel %vm975, %v1001, %v1003
      %v1005 = vrot.slane %v950, 1
      %v1006 = vsel %vm975, %v1003, %v1005
      %v1007 = vrot.slane %v951, 1
      %v1008 = vsel %vm975, %v1005, %v1007
      %v1009 = vrot.slane %v952, 1
      %v1010 = vsel %vm975, %v1007, %v1009
      %v1011 = vrot.slane %v953, 1
      %v1012 = vsel %vm975, %v1009, %v1011
      %v1013 = vrot.slane %v954, 1
      %v1014 = vsel %vm975, %v1011, %v1013
      %v1035 = vmax.f32 %v935, %v978
      %v1036 = vmax.f32 %v936, %v980
      %v1037 = vmax.f32 %v937, %v982
      %v1038 = vmax.f32 %v938, %v984
      %v1039 = vmax.f32 %v939, %v986
      %v1040 = vmax.f32 %v940, %v988
      %v1041 = vmax.f32 %v941, %v990
      %v1042 = vmax.f32 %v942, %v992
      %v1043 = vmax.f32 %v943, %v994
      %v1044 = vmax.f32 %v944, %v996
      %v1045 = vmax.f32 %v945, %v998
      %v1046 = vmax.f32 %v946, %v1000
      %v1047 = vmax.f32 %v947, %v1002
      %v1048 = vmax.f32 %v948, %v1004
      %v1049 = vmax.f32 %v949, %v1006
      %v1050 = vmax.f32 %v950, %v1008
      %v1051 = vmax.f32 %v951, %v1010
      %v1052 = vmax.f32 %v952, %v1012
      %v1053 = vmax.f32 %v953, %v1014
      %v1054 = vmax.f32 %v954, %v1013
      %v1055 = vpack.c.bf16 %v1035, %v1035
      %v1056 = vpack.c.bf16 %v1036, %v1036
      %v1057 = vpack.c.bf16 %v1037, %v1037
      %v1058 = vpack.c.bf16 %v1038, %v1038
      %v1059 = vpack.c.bf16 %v1039, %v1039
      %v1060 = vpack.c.bf16 %v1040, %v1040
      %v1061 = vpack.c.bf16 %v1041, %v1041
      %v1062 = vpack.c.bf16 %v1042, %v1042
      %v1063 = vpack.c.bf16 %v1043, %v1043
      %v1064 = vpack.c.bf16 %v1044, %v1044
      %v1065 = vpack.c.bf16 %v1045, %v1045
      %v1066 = vpack.c.bf16 %v1046, %v1046
      %v1067 = vpack.c.bf16 %v1047, %v1047
      %v1068 = vpack.c.bf16 %v1048, %v1048
      %v1069 = vpack.c.bf16 %v1049, %v1049
      %v1070 = vpack.c.bf16 %v1050, %v1050
      %v1071 = vpack.c.bf16 %v1051, %v1051
      %v1072 = vpack.c.bf16 %v1052, %v1052
      %v1073 = vpack.c.bf16 %v1053, %v1053
      %v1074 = vpack.c.bf16 %v1054, %v1054
      %vm1075 = vcmask 519168
      %1076 = vst.msk [vmem:[%s197] sm:$0xf] %vm1075, %v1055
      %1077 = vst.msk [vmem:[%s197 + $0x4] sm:$0xf] %vm1075, %v1056
      %1078 = vst.msk [vmem:[%s197 + $0x8] sm:$0xf] %vm1075, %v1057
      %1079 = vst.msk [vmem:[%s197 + $0xc] sm:$0xf] %vm1075, %v1058
      %1080 = vst.msk [vmem:[%s197 + $0x10] sm:$0xf] %vm1075, %v1059
      %1081 = vst.msk [vmem:[%s197 + $0x14] sm:$0xf] %vm1075, %v1060
      %1082 = vst.msk [vmem:[%s197 + $0x18] sm:$0xf] %vm1075, %v1061
      %1083 = vst.msk [vmem:[%s197 + $0x1c] sm:$0xf] %vm1075, %v1062
      %1084 = vst.msk [vmem:[%s197 + $0x20] sm:$0xf] %vm1075, %v1063
      %1085 = vst.msk [vmem:[%s197 + $0x24] sm:$0xf] %vm1075, %v1064
      %1086 = vst.msk [vmem:[%s197 + $0x28] sm:$0xf] %vm1075, %v1065
      %1087 = vst.msk [vmem:[%s197 + $0x2c] sm:$0xf] %vm1075, %v1066
      %1088 = vst.msk [vmem:[%s197 + $0x30] sm:$0xf] %vm1075, %v1067
      %1089 = vst.msk [vmem:[%s197 + $0x34] sm:$0xf] %vm1075, %v1068
      %1090 = vst.msk [vmem:[%s197 + $0x38] sm:$0xf] %vm1075, %v1069
      %1091 = vst.msk [vmem:[%s197 + $0x3c] sm:$0xf] %vm1075, %v1070
      %1092 = vst.msk [vmem:[%s197 + $0x40] sm:$0xf] %vm1075, %v1071
      %1093 = vst.msk [vmem:[%s197 + $0x44] sm:$0xf] %vm1075, %v1072
      %1094 = vst.msk [vmem:[%s197 + $0x48] sm:$0xf] %vm1075, %v1073
      %vm1095 = vcmask 517120
      %vm1096 = vsmask.f32 1280
      %vm1097 = vmand %vm1095, %vm1096
      %v1098 = vld [vmem:[%s197 + $0x4c] sm:$0x3]
      %v1099 = vsel %vm1097, %v1074, %v1098
      %1100 = vst [vmem:[%s197 + $0x4c] sm:$0x3] %v1099
      %p1101 = scmp.lt.s32.totalorder %s15, 1
      %s1102 = scalar_select %p1101, %s15, 1
      %s1103 = smul.addr %s1102, 20
      %s1104 = smul.addr %s1103, 4
      %s1105 = scalar_lea.vmem %s4, %s1104
      // Predicated region
      $region37: #{network_cnn_forward.4} parent=35 // pred_check
        %p1106 = pneg %p122
      $region38: #{network_cnn_forward.4} parent=35 // pred_check_branch
        %1108 = sbr.rel (%p1106) target = $region40
      $region39: #{network_cnn_forward.4} parent=35 // pred_region
        _
      $region40: #{network_cnn_forward.4} parent=35 // pred_fallthru
        _
    $region36: #{network_cnn_forward.4} parent=5 // pred_fallthru
      _
    %p1109 = scmp.le.s32.totalorder 2, %s10
    // Predicated region
    $region41: #{network_cnn_forward.4} parent=5 // pred_check
      %p1110 = pneg %p1109
    $region42: #{network_cnn_forward.4} parent=5 // pred_check_branch
      %1112 = sbr.rel (%p1110) target = $region44
    $region43: #{network_cnn_forward.4} parent=5 // pred_region
      %s1113 = ssub.s32 %s10, 2
      // Predicated region
      $region45: #{network_cnn_forward.4} parent=43 // pred_check
        %p1114 = pneg %p128
      $region46: #{network_cnn_forward.4} parent=43 // pred_check_branch
        %1116 = sbr.rel (%p1114) target = $region48
      $region47: #{network_cnn_forward.4} parent=43 // pred_region
        %p1117 = scmp.lt.s32.totalorder %s16, 1
        %s1118 = scalar_select %p1117, %s16, 1
        %s1119 = smul.addr %s1118, 20
        %s1120 = smul.addr %s1119, 4
        %s1121 = scalar_lea.vmem %s4, %s1120
      $region48: #{network_cnn_forward.4} parent=43 // pred_fallthru
        _
    $region44: #{network_cnn_forward.4} parent=5 // pred_fallthru
      _
  $region6: #{network_cnn_forward.4} parent=0 // loop_footer
    %s14 = sadd.s32 1, %s10
  $region7: #{network_cnn_forward.4} parent=0 // loop_footer_branch
    %9 = sbr.rel target = $region3
  $region8: #{network_cnn_forward.4} parent=0 // loop_exit
    _

// kernel: network_cnn_forward.5
$region0: #{network_cnn_forward.5}
  #allocation0 [shape = 'u32[]', space=smem, size = 0x4, offset = 0x4, fixed_abs, tag = 'smem constant byte address 0x4 - core index']
  #allocation1 [shape = 'u32[72,128]{1,0:T(1,128)}', space=vmem, size = 0x9000, scoped, tag = 'internal scratch']
  %s0 = inlined_call_operand.vmem [shape: bf16[32,576], index: 0, kind: input, shape index: {}]
  %s1 = inlined_call_operand.vmem [shape: bf16[576,128], index: 1, kind: input, shape index: {}]
  %s2 = inlined_call_operand.vmem [shape: f32[1,128], index: 2, kind: input, shape index: {}]
  %s3 = inlined_call_operand.vmem [shape: f32[1,128], index: 3, kind: input, shape index: {}]
  %s4 = inlined_call_operand.vmem [shape: f32[8,32], index: 4, kind: input, shape index: {}]
  %s5 = inlined_call_operand.vmem [shape: bf16[4,128,32], index: 5, kind: input, shape index: {}]
  %s6 = inlined_call_operand.vmem [shape: f32[1,32], index: 6, kind: input, shape index: {}]
  %s7 = inlined_call_operand.vmem [shape: bf16[32,2], index: 7, kind: input, shape index: {}]
  %s8 = inlined_call_operand.vmem [shape: f32[1,2], index: 8, kind: input, shape index: {}]
  %s9 = inlined_call_operand.hbm [shape: f32[2,2], index: 9, kind: output, shape index: {}]
  %s10 = sld [smem:[#allocation0]]
  $region46: #{network_cnn_forward.5} parent=0
    _
  %s12 = ssub.s32 1, %s10
  %s13 = scalar_select 0, %s12, %s10
  $region1: #{network_cnn_forward.5} parent=0
    #allocation2 [shape = 'u8[1024]{0}', space=vmem, size = 0x400, scoped, tag = 'output window, operand 0, single buffered']
    #allocation3 [shape = 's32[1]{0}', space=sflag, size = 0x4, scoped, tag = 'scoped memory for network_cnn_forward.5']
    %14 = vsyncpa [#allocation3], 0
    // Predicated region
    $region2: #{network_cnn_forward.5} parent=1 // pred_check
      _
    $region3: #{network_cnn_forward.5} parent=1 // pred_check_branch
      %16 = sbr.rel (0) target = $region5
    $region4: #{network_cnn_forward.5} parent=1 // pred_region
      _
    $region5: #{network_cnn_forward.5} parent=1 // pred_fallthru
      _
    // Predicated region
    $region6: #{network_cnn_forward.5} parent=1 // pred_check
      _
    $region7: #{network_cnn_forward.5} parent=1 // pred_check_branch
      %18 = sbr.rel (0) target = $region9
    $region8: #{network_cnn_forward.5} parent=1 // pred_region
      _
    $region9: #{network_cnn_forward.5} parent=1 // pred_fallthru
      _
    // Predicated region
    $region10: #{network_cnn_forward.5} parent=1 // pred_check
      _
    $region11: #{network_cnn_forward.5} parent=1 // pred_check_branch
      %20 = sbr.rel (0) target = $region13
    $region12: #{network_cnn_forward.5} parent=1 // pred_region
      _
    $region13: #{network_cnn_forward.5} parent=1 // pred_fallthru
      _
    // Predicated region
    $region14: #{network_cnn_forward.5} parent=1 // pred_check
      _
    $region15: #{network_cnn_forward.5} parent=1 // pred_check_branch
      %22 = sbr.rel (0) target = $region17
    $region16: #{network_cnn_forward.5} parent=1 // pred_region
      _
    $region17: #{network_cnn_forward.5} parent=1 // pred_fallthru
      _
    // Predicated region
    $region18: #{network_cnn_forward.5} parent=1 // pred_check
      _
    $region19: #{network_cnn_forward.5} parent=1 // pred_check_branch
      %24 = sbr.rel (0) target = $region21
    $region20: #{network_cnn_forward.5} parent=1 // pred_region
      _
    $region21: #{network_cnn_forward.5} parent=1 // pred_fallthru
      _
    // Predicated region
    $region22: #{network_cnn_forward.5} parent=1 // pred_check
      _
    $region23: #{network_cnn_forward.5} parent=1 // pred_check_branch
      %26 = sbr.rel (0) target = $region25
    $region24: #{network_cnn_forward.5} parent=1 // pred_region
      _
    $region25: #{network_cnn_forward.5} parent=1 // pred_fallthru
      _
    // Predicated region
    $region26: #{network_cnn_forward.5} parent=1 // pred_check
      _
    $region27: #{network_cnn_forward.5} parent=1 // pred_check_branch
      %28 = sbr.rel (0) target = $region29
    $region28: #{network_cnn_forward.5} parent=1 // pred_region
      _
    $region29: #{network_cnn_forward.5} parent=1 // pred_fallthru
      _
    // Predicated region
    $region30: #{network_cnn_forward.5} parent=1 // pred_check
      _
    $region31: #{network_cnn_forward.5} parent=1 // pred_check_branch
      %30 = sbr.rel (0) target = $region33
    $region32: #{network_cnn_forward.5} parent=1 // pred_region
      _
    $region33: #{network_cnn_forward.5} parent=1 // pred_fallthru
      _
    // Predicated region
    $region34: #{network_cnn_forward.5} parent=1 // pred_check
      _
    $region35: #{network_cnn_forward.5} parent=1 // pred_check_branch
      %32 = sbr.rel (0) target = $region37
    $region36: #{network_cnn_forward.5} parent=1 // pred_region
      _
    $region37: #{network_cnn_forward.5} parent=1 // pred_fallthru
      _
    %v34 = vld [vmem:[%s0] sm:$0xff]
    %v35 = vld [vmem:[%s0 + $0x8] sm:$0xff]
    %v36 = vld [vmem:[%s0 + $0x10] sm:$0xf]
    %v37 = vld [vmem:[%s0 + $0x14] sm:$0xff]
    %v38 = vld [vmem:[%s0 + $0x1c] sm:$0xff]
    %v39 = vld [vmem:[%s0 + $0x24] sm:$0xf]
    %v40 = vld [vmem:[%s0 + $0x28] sm:$0xff]
    %v41 = vld [vmem:[%s0 + $0x30] sm:$0xff]
    %v42 = vld [vmem:[%s0 + $0x38] sm:$0xf]
    %v43 = vld [vmem:[%s0 + $0x3c] sm:$0xff]
    %v44 = vld [vmem:[%s0 + $0x44] sm:$0xff]
    %v45 = vld [vmem:[%s0 + $0x4c] sm:$0xf]
    %v46 = vld [vmem:[%s1] sm:$0xf]
    %v47 = vld [vmem:[%s1 + $0x4] sm:$0xf]
    %v48 = vld [vmem:[%s1 + $0x8] sm:$0xf]
    %v49 = vld [vmem:[%s1 + $0xc] sm:$0xf]
    %v50 = vld [vmem:[%s1 + $0x10] sm:$0xf]
    %v51 = vld [vmem:[%s1 + $0x14] sm:$0xf]
    %v52 = vld [vmem:[%s1 + $0x18] sm:$0xf]
    %v53 = vld [vmem:[%s1 + $0x1c] sm:$0xf]
    %v54 = vld [vmem:[%s1 + $0x20] sm:$0xf]
    %v55 = vld [vmem:[%s1 + $0x24] sm:$0xf]
    %v56 = vld [vmem:[%s1 + $0x28] sm:$0xf]
    %v57 = vld [vmem:[%s1 + $0x2c] sm:$0xf]
    %v58 = vld [vmem:[%s1 + $0x30] sm:$0xf]
    %v59 = vld [vmem:[%s1 + $0x34] sm:$0xf]
    %v60 = vld [vmem:[%s1 + $0x38] sm:$0xf]
    %v61 = vld [vmem:[%s1 + $0x3c] sm:$0xf]
    %v62 = vld [vmem:[%s1 + $0x40] sm:$0xf]
    %v63 = vld [vmem:[%s1 + $0x44] sm:$0xf]
    %v64 = vld [vmem:[%s1 + $0x48] sm:$0xf]
    %v65 = vld [vmem:[%s1 + $0x4c] sm:$0xf]
    %v66 = vld [vmem:[%s1 + $0x50] sm:$0xf]
    %v67 = vld [vmem:[%s1 + $0x54] sm:$0xf]
    %v68 = vld [vmem:[%s1 + $0x58] sm:$0xf]
    %v69 = vld [vmem:[%s1 + $0x5c] sm:$0xf]
    %v70 = vld [vmem:[%s1 + $0x60] sm:$0xf]
    %v71 = vld [vmem:[%s1 + $0x64] sm:$0xf]
    %v72 = vld [vmem:[%s1 + $0x68] sm:$0xf]
    %v73 = vld [vmem:[%s1 + $0x6c] sm:$0xf]
    %v74 = vld [vmem:[%s1 + $0x70] sm:$0xf]
    %v75 = vld [vmem:[%s1 + $0x74] sm:$0xf]
    %v76 = vld [vmem:[%s1 + $0x78] sm:$0xf]
    %v77 = vld [vmem:[%s1 + $0x7c] sm:$0xf]
    %v78 = vld [vmem:[%s1 + $0x80] sm:$0xf]
    %v79 = vld [vmem:[%s1 + $0x84] sm:$0xf]
    %v80 = vld [vmem:[%s1 + $0x88] sm:$0xf]
    %v81 = vld [vmem:[%s1 + $0x8c] sm:$0xf]
    %v82 = vld [vmem:[%s1 + $0x90] sm:$0xf]
    %v83 = vld [vmem:[%s1 + $0x94] sm:$0xf]
    %v84 = vld [vmem:[%s1 + $0x98] sm:$0xf]
    %v85 = vld [vmem:[%s1 + $0x9c] sm:$0xf]
    %v86 = vld [vmem:[%s1 + $0xa0] sm:$0xf]
    %v87 = vld [vmem:[%s1 + $0xa4] sm:$0xf]
    %v88 = vld [vmem:[%s1 + $0xa8] sm:$0xf]
    %v89 = vld [vmem:[%s1 + $0xac] sm:$0xf]
    %v90 = vld [vmem:[%s1 + $0xb0] sm:$0xf]
    %v91 = vld [vmem:[%s1 + $0xb4] sm:$0xf]
    %v92 = vld [vmem:[%s1 + $0xb8] sm:$0xf]
    %v93 = vld [vmem:[%s1 + $0xbc] sm:$0xf]
    %v94 = vld [vmem:[%s1 + $0xc0] sm:$0xf]
    %v95 = vld [vmem:[%s1 + $0xc4] sm:$0xf]
    %v96 = vld [vmem:[%s1 + $0xc8] sm:$0xf]
    %v97 = vld [vmem:[%s1 + $0xcc] sm:$0xf]
    %v98 = vld [vmem:[%s1 + $0xd0] sm:$0xf]
    %v99 = vld [vmem:[%s1 + $0xd4] sm:$0xf]
    %v100 = vld [vmem:[%s1 + $0xd8] sm:$0xf]
    %v101 = vld [vmem:[%s1 + $0xdc] sm:$0xf]
    %v102 = vld [vmem:[%s1 + $0xe0] sm:$0xf]
    %v103 = vld [vmem:[%s1 + $0xe4] sm:$0xf]
    %v104 = vld [vmem:[%s1 + $0xe8] sm:$0xf]
    %v105 = vld [vmem:[%s1 + $0xec] sm:$0xf]
    %v106 = vld [vmem:[%s1 + $0xf0] sm:$0xf]
    %v107 = vld [vmem:[%s1 + $0xf4] sm:$0xf]
    %v108 = vld [vmem:[%s1 + $0xf8] sm:$0xf]
    %v109 = vld [vmem:[%s1 + $0xfc] sm:$0xf]
    %v110 = vld [vmem:[%s1 + $0x100] sm:$0xf]
    %v111 = vld [vmem:[%s1 + $0x104] sm:$0xf]
    %v112 = vld [vmem:[%s1 + $0x108] sm:$0xf]
    %v113 = vld [vmem:[%s1 + $0x10c] sm:$0xf]
    %v114 = vld [vmem:[%s1 + $0x110] sm:$0xf]
    %v115 = vld [vmem:[%s1 + $0x114] sm:$0xf]
    %v116 = vld [vmem:[%s1 + $0x118] sm:$0xf]
    %v117 = vld [vmem:[%s1 + $0x11c] sm:$0xf]
    %v130 = vunpack.c.l.b16 %v34
    %v131 = vunpack.c.h.b16 %v34
    %v132 = vunpack.c.l.b16 %v35
    %v133 = vunpack.c.h.b16 %v35
    %v134 = vunpack.c.l.b16 %v36
    %v135 = vunpack.c.l.b16 %v37
    %v136 = vunpack.c.h.b16 %v37
    %v137 = vunpack.c.l.b16 %v38
    %v138 = vunpack.c.h.b16 %v38
    %v139 = vunpack.c.l.b16 %v39
    %v140 = vunpack.c.l.b16 %v40
    %v141 = vunpack.c.h.b16 %v40
    %v142 = vunpack.c.l.b16 %v41
    %v143 = vunpack.c.h.b16 %v41
    %v144 = vunpack.c.l.b16 %v42
    %v145 = vunpack.c.l.b16 %v43
    %v146 = vunpack.c.h.b16 %v43
    %v147 = vunpack.c.l.b16 %v44
    %v148 = vunpack.c.h.b16 %v44
    %v149 = vunpack.c.l.b16 %v45
    %v150 = vpack.c.b16 %v135, %v130
    %v151 = vpack.c.b16 %v136, %v131
    %v152 = vpack.c.b16 %v137, %v132
    %v153 = vpack.c.b16 %v138, %v133
    %v154 = vpack.c.b16 %v139, %v134
    %v155 = vpack.c.b16 %v145, %v140
    %v156 = vpack.c.b16 %v146, %v141
    %v157 = vpack.c.b16 %v147, %v142
    %v158 = vpack.c.b16 %v148, %v143
    %v159 = vpack.c.b16 %v149, %v144
    %v240 = vunpack.c.l.b16 %v46
    %v241 = vunpack.c.l.b16 %v47
    %v242 = vunpack.c.l.b16 %v48
    %v243 = vunpack.c.l.b16 %v49
    %v244 = vunpack.c.l.b16 %v50
    %v245 = vunpack.c.l.b16 %v51
    %v246 = vunpack.c.l.b16 %v52
    %v247 = vunpack.c.l.b16 %v53
    %v248 = vunpack.c.l.b16 %v54
    %v249 = vunpack.c.l.b16 %v55
    %v250 = vunpack.c.l.b16 %v56
    %v251 = vunpack.c.l.b16 %v57
    %v252 = vunpack.c.l.b16 %v58
    %v253 = vunpack.c.l.b16 %v59
    %v254 = vunpack.c.l.b16 %v60
    %v255 = vunpack.c.l.b16 %v61
    %v256 = vunpack.c.l.b16 %v62
    %v257 = vunpack.c.l.b16 %v63
    %v258 = vunpack.c.l.b16 %v64
    %v259 = vunpack.c.l.b16 %v65
    %v260 = vunpack.c.l.b16 %v66
    %v261 = vunpack.c.l.b16 %v67
    %v262 = vunpack.c.l.b16 %v68
    %v263 = vunpack.c.l.b16 %v69
    %v264 = vunpack.c.l.b16 %v70
    %v265 = vunpack.c.l.b16 %v71
    %v266 = vunpack.c.l.b16 %v72
    %v267 = vunpack.c.l.b16 %v73
    %v268 = vunpack.c.l.b16 %v74
    %v269 = vunpack.c.l.b16 %v75
    %v270 = vunpack.c.l.b16 %v76
    %v271 = vunpack.c.l.b16 %v77
    %v272 = vunpack.c.l.b16 %v78
    %v273 = vunpack.c.l.b16 %v79
    %v274 = vunpack.c.l.b16 %v80
    %v275 = vunpack.c.l.b16 %v81
    %v276 = vunpack.c.l.b16 %v82
    %v277 = vunpack.c.l.b16 %v83
    %v278 = vunpack.c.l.b16 %v84
    %v279 = vunpack.c.l.b16 %v85
    %v280 = vunpack.c.l.b16 %v86
    %v281 = vunpack.c.l.b16 %v87
    %v282 = vunpack.c.l.b16 %v88
    %v283 = vunpack.c.l.b16 %v89
    %v284 = vunpack.c.l.b16 %v90
    %v285 = vunpack.c.l.b16 %v91
    %v286 = vunpack.c.l.b16 %v92
    %v287 = vunpack.c.l.b16 %v93
    %v288 = vunpack.c.l.b16 %v94
    %v289 = vunpack.c.l.b16 %v95
    %v290 = vunpack.c.l.b16 %v96
    %v291 = vunpack.c.l.b16 %v97
    %v292 = vunpack.c.l.b16 %v98
    %v293 = vunpack.c.l.b16 %v99
    %v294 = vunpack.c.l.b16 %v100
    %v295 = vunpack.c.l.b16 %v101
    %v296 = vunpack.c.l.b16 %v102
    %v297 = vunpack.c.l.b16 %v103
    %v298 = vunpack.c.l.b16 %v104
    %v299 = vunpack.c.l.b16 %v105
    %v300 = vunpack.c.l.b16 %v106
    %v301 = vunpack.c.l.b16 %v107
    %v302 = vunpack.c.l.b16 %v108
    %v303 = vunpack.c.l.b16 %v109
    %v304 = vunpack.c.l.b16 %v110
    %v305 = vunpack.c.l.b16 %v111
    %v306 = vunpack.c.l.b16 %v112
    %v307 = vunpack.c.l.b16 %v113
    %v308 = vunpack.c.l.b16 %v114
    %v309 = vunpack.c.l.b16 %v115
    %v310 = vunpack.c.l.b16 %v116
    %v311 = vunpack.c.l.b16 %v117
    %v312 = vpack.c.b16 %v241, %v240
    %v313 = vpack.c.b16 %v243, %v242
    %v314 = vpack.c.b16 %v245, %v244
    %v315 = vpack.c.b16 %v247, %v246
    %v316 = vpack.c.b16 %v249, %v248
    %v317 = vpack.c.b16 %v251, %v250
    %v318 = vpack.c.b16 %v253, %v252
    %v319 = vpack.c.b16 %v255, %v254
    %v320 = vpack.c.b16 %v257, %v256
    %v321 = vpack.c.b16 %v259, %v258
    %v322 = vpack.c.b16 %v261, %v260
    %v323 = vpack.c.b16 %v263, %v262
    %v324 = vpack.c.b16 %v265, %v264
    %v325 = vpack.c.b16 %v267, %v266
    %v326 = vpack.c.b16 %v269, %v268
    %v327 = vpack.c.b16 %v271, %v270
    %v328 = vpack.c.b16 %v273, %v272
    %v329 = vpack.c.b16 %v275, %v274
    %v330 = vpack.c.b16 %v277, %v276
    %v331 = vpack.c.b16 %v279, %v278
    %v332 = vpack.c.b16 %v281, %v280
    %v333 = vpack.c.b16 %v283, %v282
    %v334 = vpack.c.b16 %v285, %v284
    %v335 = vpack.c.b16 %v287, %v286
    %v336 = vpack.c.b16 %v289, %v288
    %v337 = vpack.c.b16 %v291, %v290
    %v338 = vpack.c.b16 %v293, %v292
    %v339 = vpack.c.b16 %v295, %v294
    %v340 = vpack.c.b16 %v297, %v296
    %v341 = vpack.c.b16 %v299, %v298
    %v342 = vpack.c.b16 %v301, %v300
    %v343 = vpack.c.b16 %v303, %v302
    %v344 = vpack.c.b16 %v305, %v304
    %v345 = vpack.c.b16 %v307, %v306
    %v346 = vpack.c.b16 %v309, %v308
    %v347 = vpack.c.b16 %v311, %v310
    %vm384 = vcmask 523264
    %v386 = vsel %vm384, %v154, 0
    %v389 = vsel %vm384, %v159, 0
    %391 = vmatpush.bf16.msra.mxu0 %v319
    %392 = vmatpush.bf16.msra.mxu0 %v318
    %393 = vmatpush.bf16.msra.mxu0 %v317
    %394 = vmatpush.bf16.msra.mxu0 %v316
    %395 = vmatpush.bf16.msra.mxu0 %v315
    %396 = vmatpush.bf16.msra.mxu0 %v314
    %397 = vmatpush.bf16.msra.mxu0 %v313
    %398 = vmatpush.bf16.msra.mxu0 %v312
    %399 = vmatmul.bf16.gmra.mxu0 %v150
    %v400 = vpop.f32.mrf.mxu0
    %v401 = vadd.f32 0.0, %v400
    %v402 = vpop.f32.mrf.mxu0
    %v403 = vadd.f32 0.0, %v402
    %404 = vmatmul.bf16.gmra.mxu0 %v155
    %v405 = vpop.f32.mrf.mxu0
    %v406 = vadd.f32 0.0, %v405
    %v407 = vpop.f32.mrf.mxu0
    %v408 = vadd.f32 0.0, %v407
    %409 = vdwg.mxu0
    %410 = vmatpush.bf16.msra.mxu0 %v327
    %411 = vmatpush.bf16.msra.mxu0 %v326
    %412 = vmatpush.bf16.msra.mxu0 %v325
    %413 = vmatpush.bf16.msra.mxu0 %v324
    %414 = vmatpush.bf16.msra.mxu0 %v323
    %415 = vmatpush.bf16.msra.mxu0 %v322
    %416 = vmatpush.bf16.msra.mxu0 %v321
    %417 = vmatpush.bf16.msra.mxu0 %v320
    %418 = vmatmul.bf16.gmra.mxu0 %v151
    %v419 = vpop.f32.mrf.mxu0
    %v420 = vadd.f32 %v401, %v419
    %v421 = vpop.f32.mrf.mxu0
    %v422 = vadd.f32 %v403, %v421
    %423 = vmatmul.bf16.gmra.mxu0 %v156
    %v424 = vpop.f32.mrf.mxu0
    %v425 = vadd.f32 %v406, %v424
    %v426 = vpop.f32.mrf.mxu0
    %v427 = vadd.f32 %v408, %v426
    %428 = vdwg.mxu0
    %429 = vmatpush.bf16.msra.mxu0 %v335
    %430 = vmatpush.bf16.msra.mxu0 %v334
    %431 = vmatpush.bf16.msra.mxu0 %v333
    %432 = vmatpush.bf16.msra.mxu0 %v332
    %433 = vmatpush.bf16.msra.mxu0 %v331
    %434 = vmatpush.bf16.msra.mxu0 %v330
    %435 = vmatpush.bf16.msra.mxu0 %v329
    %436 = vmatpush.bf16.msra.mxu0 %v328
    %437 = vmatmul.bf16.gmra.mxu0 %v152
    %v438 = vpop.f32.mrf.mxu0
    %v439 = vadd.f32 %v420, %v438
    %v440 = vpop.f32.mrf.mxu0
    %v441 = vadd.f32 %v422, %v440
    %442 = vmatmul.bf16.gmra.mxu0 %v157
    %v443 = vpop.f32.mrf.mxu0
    %v444 = vadd.f32 %v425, %v443
    %v445 = vpop.f32.mrf.mxu0
    %v446 = vadd.f32 %v427, %v445
    %447 = vdwg.mxu0
    %448 = vmatpush.bf16.msra.mxu0 %v343
    %449 = vmatpush.bf16.msra.mxu0 %v342
    %450 = vmatpush.bf16.msra.mxu0 %v341
    %451 = vmatpush.bf16.msra.mxu0 %v340
    %452 = vmatpush.bf16.msra.mxu0 %v339
    %453 = vmatpush.bf16.msra.mxu0 %v338
    %454 = vmatpush.bf16.msra.mxu0 %v337
    %455 = vmatpush.bf16.msra.mxu0 %v336
    %456 = vmatmul.bf16.gmra.mxu0 %v153
    %v457 = vpop.f32.mrf.mxu0
    %v458 = vadd.f32 %v439, %v457
    %v459 = vpop.f32.mrf.mxu0
    %v460 = vadd.f32 %v441, %v459
    %461 = vmatmul.bf16.gmra.mxu0 %v158
    %v462 = vpop.f32.mrf.mxu0
    %v463 = vadd.f32 %v444, %v462
    %v464 = vpop.f32.mrf.mxu0
    %v465 = vadd.f32 %v446, %v464
    %466 = vdwg.mxu0
    %467 = vmatpush.bf16.msra.mxu0 0
    %468 = vmatpush.bf16.msra.mxu0 0
    %469 = vmatpush.bf16.msra.mxu0 0
    %470 = vmatpush.bf16.msra.mxu0 0
    %471 = vmatpush.bf16.msra.mxu0 %v347
    %472 = vmatpush.bf16.msra.mxu0 %v346
    %473 = vmatpush.bf16.msra.mxu0 %v345
    %474 = vmatpush.bf16.msra.mxu0 %v344
    %475 = vmatmul.bf16.gmra.mxu0 %v386
    %v476 = vpop.f32.mrf.mxu0
    %v477 = vadd.f32 %v458, %v476
    %v478 = vpop.f32.mrf.mxu0
    %v479 = vadd.f32 %v460, %v478
    %480 = vmatmul.bf16.gmra.mxu0 %v389
    %v481 = vpop.f32.mrf.mxu0
    %v482 = vadd.f32 %v463, %v481
    %v483 = vpop.f32.mrf.mxu0
    %v484 = vadd.f32 %v465, %v483
    %485 = vdwg.mxu0
    %v486 = vld [vmem:[%s2] sm:$0x1]
    %v488 = vperm.slane %v486, 0
    %v490 = vmul.f32 %v477, %v488
    %v491 = vmul.f32 %v479, %v488
    %v492 = vmul.f32 %v482, %v488
    %v493 = vmul.f32 %v484, %v488
    %v494 = vld [vmem:[%s3] sm:$0x1]
    %v496 = vperm.slane %v494, 0
    %v498 = vadd.f32 %v490, %v496
    %v499 = vadd.f32 %v491, %v496
    %v500 = vadd.f32 %v492, %v496
    %v501 = vadd.f32 %v493, %v496
    %v502 = vmax.f32 %v498, 0.0
    %v503 = vmax.f32 %v499, 0.0
    %v504 = vmax.f32 %v500, 0.0
    %v505 = vmax.f32 %v501, 0.0
    %v506 = vld [vmem:[%s4] sm:$0xff]
    %vm507 = vcmask 261120
    %v509 = vsel %vm507, %v506, 0
    %511 = vmatpush.msra.mxu0 0.0
    %512 = vmatpush.msra.mxu0 0.0
    %513 = vmatpush.msra.mxu0 0.0
    %514 = vmatpush.msra.mxu0 0.0
    %515 = vmatpush.msra.mxu0 0.0
    %516 = vmatpush.msra.mxu0 0.0
    %517 = vmatpush.msra.mxu0 0.0
    %518 = vmatpush.msra.mxu0 0.0
    %519 = vmatpush.msra.mxu0 0.0
    %520 = vmatpush.msra.mxu0 0.0
    %521 = vmatpush.msra.mxu0 0.0
    %522 = vmatpush.msra.mxu0 0.0
    %523 = vmatpush.msra.mxu0 %v505
    %524 = vmatpush.msra.mxu0 %v504
    %525 = vmatpush.msra.mxu0 %v503
    %526 = vmatpush.msra.mxu0 %v502
    %527 = vmatmul.f32.gmra.mxu0 %v509
    %v528 = vpop.f32.mrf.mxu0
    %v529 = vadd.f32 0.0, %v528
    %530 = vdwg.mxu0
    %v531 = vld [vmem:[%s6] sm:$0x1]
    %v532 = vpack.c.bf16 %v529, %v529
    %v533 = vld [vmem:[%s5] sm:$0xf]
    %v534 = vld [vmem:[%s5 + $0x4] sm:$0xf]
    %v535 = vld [vmem:[%s5 + $0x8] sm:$0xf]
    %v536 = vld [vmem:[%s5 + $0xc] sm:$0xf]
    %v537 = vld [vmem:[%s5 + $0x10] sm:$0xf]
    %v538 = vld [vmem:[%s5 + $0x14] sm:$0xf]
    %v539 = vld [vmem:[%s5 + $0x18] sm:$0xf]
    %v540 = vld [vmem:[%s5 + $0x1c] sm:$0xf]
    %v541 = vld [vmem:[%s5 + $0x20] sm:$0xf]
    %v542 = vld [vmem:[%s5 + $0x24] sm:$0xf]
    %v543 = vld [vmem:[%s5 + $0x28] sm:$0xf]
    %v544 = vld [vmem:[%s5 + $0x2c] sm:$0xf]
    %v545 = vld [vmem:[%s5 + $0x30] sm:$0xf]
    %v546 = vld [vmem:[%s5 + $0x34] sm:$0xf]
    %v547 = vld [vmem:[%s5 + $0x38] sm:$0xf]
    %v548 = vld [vmem:[%s5 + $0x3c] sm:$0xf]
    %v565 = vunpack.c.l.b16 %v533
    %v566 = vunpack.c.l.b16 %v534
    %v567 = vunpack.c.l.b16 %v535
    %v568 = vunpack.c.l.b16 %v536
    %v569 = vunpack.c.l.b16 %v537
    %v570 = vunpack.c.l.b16 %v538
    %v571 = vunpack.c.l.b16 %v539
    %v572 = vunpack.c.l.b16 %v540
    %v573 = vunpack.c.l.b16 %v541
    %v574 = vunpack.c.l.b16 %v542
    %v575 = vunpack.c.l.b16 %v543
    %v576 = vunpack.c.l.b16 %v544
    %v577 = vunpack.c.l.b16 %v545
    %v578 = vunpack.c.l.b16 %v546
    %v579 = vunpack.c.l.b16 %v547
    %v580 = vunpack.c.l.b16 %v548
    %v581 = vpack.c.b16 %v566, %v565
    %v582 = vpack.c.b16 %v568, %v567
    %v583 = vpack.c.b16 %v570, %v569
    %v584 = vpack.c.b16 %v572, %v571
    %v585 = vpack.c.b16 %v574, %v573
    %v586 = vpack.c.b16 %v576, %v575
    %v587 = vpack.c.b16 %v578, %v577
    %v588 = vpack.c.b16 %v580, %v579
    %597 = vmatpush.bf16.msra.mxu0 %v588
    %598 = vmatpush.bf16.msra.mxu0 %v587
    %599 = vmatpush.bf16.msra.mxu0 %v586
    %600 = vmatpush.bf16.msra.mxu0 %v585
    %601 = vmatpush.bf16.msra.mxu0 %v584
    %602 = vmatpush.bf16.msra.mxu0 %v583
    %603 = vmatpush.bf16.msra.mxu0 %v582
    %604 = vmatpush.bf16.msra.mxu0 %v581
    %605 = vmatmul.bf16.gmra.mxu0 %v532
    %v606 = vpop.f32.mrf.mxu0
    %v607 = vadd.f32 0.0, %v606
    %v608 = vpop.f32.mrf.mxu0
    %609 = vdwg.mxu0
    %v611 = vperm.slane %v531, 0
    %v613 = vadd.f32 %v611, %v607
    %s614 = scalar_lea.vmem %s5, 64
    %v615 = vld [vmem:[%s614] sm:$0xf]
    %v616 = vld [vmem:[%s614 + $0x4] sm:$0xf]
    %v617 = vld [vmem:[%s614 + $0x8] sm:$0xf]
    %v618 = vld [vmem:[%s614 + $0xc] sm:$0xf]
    %v619 = vld [vmem:[%s614 + $0x10] sm:$0xf]
    %v620 = vld [vmem:[%s614 + $0x14] sm:$0xf]
    %v621 = vld [vmem:[%s614 + $0x18] sm:$0xf]
    %v622 = vld [vmem:[%s614 + $0x1c] sm:$0xf]
    %v623 = vld [vmem:[%s614 + $0x20] sm:$0xf]
    %v624 = vld [vmem:[%s614 + $0x24] sm:$0xf]
    %v625 = vld [vmem:[%s614 + $0x28] sm:$0xf]
    %v626 = vld [vmem:[%s614 + $0x2c] sm:$0xf]
    %v627 = vld [vmem:[%s614 + $0x30] sm:$0xf]
    %v628 = vld [vmem:[%s614 + $0x34] sm:$0xf]
    %v629 = vld [vmem:[%s614 + $0x38] sm:$0xf]
    %v630 = vld [vmem:[%s614 + $0x3c] sm:$0xf]
    %v632 = vrot.slane %v532, 1
    %v650 = vunpack.c.l.b16 %v615
    %v651 = vunpack.c.l.b16 %v616
    %v652 = vunpack.c.l.b16 %v617
    %v653 = vunpack.c.l.b16 %v618
    %v654 = vunpack.c.l.b16 %v619
    %v655 = vunpack.c.l.b16 %v620
    %v656 = vunpack.c.l.b16 %v621
    %v657 = vunpack.c.l.b16 %v622
    %v658 = vunpack.c.l.b16 %v623
    %v659 = vunpack.c.l.b16 %v624
    %v660 = vunpack.c.l.b16 %v625
    %v661 = vunpack.c.l.b16 %v626
    %v662 = vunpack.c.l.b16 %v627
    %v663 = vunpack.c.l.b16 %v628
    %v664 = vunpack.c.l.b16 %v629
    %v665 = vunpack.c.l.b16 %v630
    %v666 = vpack.c.b16 %v651, %v650
    %v667 = vpack.c.b16 %v653, %v652
    %v668 = vpack.c.b16 %v655, %v654
    %v669 = vpack.c.b16 %v657, %v656
    %v670 = vpack.c.b16 %v659, %v658
    %v671 = vpack.c.b16 %v661, %v660
    %v672 = vpack.c.b16 %v663, %v662
    %v673 = vpack.c.b16 %v665, %v664
    %682 = vmatpush.bf16.msra.mxu0 %v673
    %683 = vmatpush.bf16.msra.mxu0 %v672
    %684 = vmatpush.bf16.msra.mxu0 %v671
    %685 = vmatpush.bf16.msra.mxu0 %v670
    %686 = vmatpush.bf16.msra.mxu0 %v669
    %687 = vmatpush.bf16.msra.mxu0 %v668
    %688 = vmatpush.bf16.msra.mxu0 %v667
    %689 = vmatpush.bf16.msra.mxu0 %v666
    %690 = vmatmul.bf16.gmra.mxu0 %v632
    %v691 = vpop.f32.mrf.mxu0
    %v692 = vadd.f32 0.0, %v691
    %v693 = vpop.f32.mrf.mxu0
    %694 = vdwg.mxu0
    %v695 = vadd.f32 %v613, %v692
    %s696 = scalar_lea.vmem %s5, 128
    %v697 = vld [vmem:[%s696] sm:$0xf]
    %v698 = vld [vmem:[%s696 + $0x4] sm:$0xf]
    %v699 = vld [vmem:[%s696 + $0x8] sm:$0xf]
    %v700 = vld [vmem:[%s696 + $0xc] sm:$0xf]
    %v701 = vld [vmem:[%s696 + $0x10] sm:$0xf]
    %v702 = vld [vmem:[%s696 + $0x14] sm:$0xf]
    %v703 = vld [vmem:[%s696 + $0x18] sm:$0xf]
    %v704 = vld [vmem:[%s696 + $0x1c] sm:$0xf]
    %v705 = vld [vmem:[%s696 + $0x20] sm:$0xf]
    %v706 = vld [vmem:[%s696 + $0x24] sm:$0xf]
    %v707 = vld [vmem:[%s696 + $0x28] sm:$0xf]
    %v708 = vld [vmem:[%s696 + $0x2c] sm:$0xf]
    %v709 = vld [vmem:[%s696 + $0x30] sm:$0xf]
    %v710 = vld [vmem:[%s696 + $0x34] sm:$0xf]
    %v711 = vld [vmem:[%s696 + $0x38] sm:$0xf]
    %v712 = vld [vmem:[%s696 + $0x3c] sm:$0xf]
    %v713 = vrot.slane %v532, 2
    %v731 = vunpack.c.l.b16 %v697
    %v732 = vunpack.c.l.b16 %v698
    %v733 = vunpack.c.l.b16 %v699
    %v734 = vunpack.c.l.b16 %v700
    %v735 = vunpack.c.l.b16 %v701
    %v736 = vunpack.c.l.b16 %v702
    %v737 = vunpack.c.l.b16 %v703
    %v738 = vunpack.c.l.b16 %v704
    %v739 = vunpack.c.l.b16 %v705
    %v740 = vunpack.c.l.b16 %v706
    %v741 = vunpack.c.l.b16 %v707
    %v742 = vunpack.c.l.b16 %v708
    %v743 = vunpack.c.l.b16 %v709
    %v744 = vunpack.c.l.b16 %v710
    %v745 = vunpack.c.l.b16 %v711
    %v746 = vunpack.c.l.b16 %v712
    %v747 = vpack.c.b16 %v732, %v731
    %v748 = vpack.c.b16 %v734, %v733
    %v749 = vpack.c.b16 %v736, %v735
    %v750 = vpack.c.b16 %v738, %v737
    %v751 = vpack.c.b16 %v740, %v739
    %v752 = vpack.c.b16 %v742, %v741
    %v753 = vpack.c.b16 %v744, %v743
    %v754 = vpack.c.b16 %v746, %v745
    %763 = vmatpush.bf16.msra.mxu0 %v754
    %764 = vmatpush.bf16.msra.mxu0 %v753
    %765 = vmatpush.bf16.msra.mxu0 %v752
    %766 = vmatpush.bf16.msra.mxu0 %v751
    %767 = vmatpush.bf16.msra.mxu0 %v750
    %768 = vmatpush.bf16.msra.mxu0 %v749
    %769 = vmatpush.bf16.msra.mxu0 %v748
    %770 = vmatpush.bf16.msra.mxu0 %v747
    %771 = vmatmul.bf16.gmra.mxu0 %v713
    %v772 = vpop.f32.mrf.mxu0
    %v773 = vadd.f32 0.0, %v772
    %v774 = vpop.f32.mrf.mxu0
    %775 = vdwg.mxu0
    %v776 = vadd.f32 %v695, %v773
    %s777 = scalar_lea.vmem %s5, 192
    %v778 = vld [vmem:[%s777] sm:$0xf]
    %v779 = vld [vmem:[%s777 + $0x4] sm:$0xf]
    %v780 = vld [vmem:[%s777 + $0x8] sm:$0xf]
    %v781 = vld [vmem:[%s777 + $0xc] sm:$0xf]
    %v782 = vld [vmem:[%s777 + $0x10] sm:$0xf]
    %v783 = vld [vmem:[%s777 + $0x14] sm:$0xf]
    %v784 = vld [vmem:[%s777 + $0x18] sm:$0xf]
    %v785 = vld [vmem:[%s777 + $0x1c] sm:$0xf]
    %v786 = vld [vmem:[%s777 + $0x20] sm:$0xf]
    %v787 = vld [vmem:[%s777 + $0x24] sm:$0xf]
    %v788 = vld [vmem:[%s777 + $0x28] sm:$0xf]
    %v789 = vld [vmem:[%s777 + $0x2c] sm:$0xf]
    %v790 = vld [vmem:[%s777 + $0x30] sm:$0xf]
    %v791 = vld [vmem:[%s777 + $0x34] sm:$0xf]
    %v792 = vld [vmem:[%s777 + $0x38] sm:$0xf]
    %v793 = vld [vmem:[%s777 + $0x3c] sm:$0xf]
    %v794 = vrot.slane %v532, 3
    %v812 = vunpack.c.l.b16 %v778
    %v813 = vunpack.c.l.b16 %v779
    %v814 = vunpack.c.l.b16 %v780
    %v815 = vunpack.c.l.b16 %v781
    %v816 = vunpack.c.l.b16 %v782
    %v817 = vunpack.c.l.b16 %v783
    %v818 = vunpack.c.l.b16 %v784
    %v819 = vunpack.c.l.b16 %v785
    %v820 = vunpack.c.l.b16 %v786
    %v821 = vunpack.c.l.b16 %v787
    %v822 = vunpack.c.l.b16 %v788
    %v823 = vunpack.c.l.b16 %v789
    %v824 = vunpack.c.l.b16 %v790
    %v825 = vunpack.c.l.b16 %v791
    %v826 = vunpack.c.l.b16 %v792
    %v827 = vunpack.c.l.b16 %v793
    %v828 = vpack.c.b16 %v813, %v812
    %v829 = vpack.c.b16 %v815, %v814
    %v830 = vpack.c.b16 %v817, %v816
    %v831 = vpack.c.b16 %v819, %v818
    %v832 = vpack.c.b16 %v821, %v820
    %v833 = vpack.c.b16 %v823, %v822
    %v834 = vpack.c.b16 %v825, %v824
    %v835 = vpack.c.b16 %v827, %v826
    %844 = vmatpush.bf16.msra.mxu0 %v835
    %845 = vmatpush.bf16.msra.mxu0 %v834
    %846 = vmatpush.bf16.msra.mxu0 %v833
    %847 = vmatpush.bf16.msra.mxu0 %v832
    %848 = vmatpush.bf16.msra.mxu0 %v831
    %849 = vmatpush.bf16.msra.mxu0 %v830
    %850 = vmatpush.bf16.msra.mxu0 %v829
    %851 = vmatpush.bf16.msra.mxu0 %v828
    %852 = vmatmul.bf16.gmra.mxu0 %v794
    %v853 = vpop.f32.mrf.mxu0
    %v854 = vadd.f32 0.0, %v853
    %v855 = vpop.f32.mrf.mxu0
    %856 = vdwg.mxu0
    %v857 = vadd.f32 %v776, %v854
    %v858 = vmax.f32 %v857, 0.0
    %v859 = vpack.c.bf16 %v858, %v858
    %v860 = vld [vmem:[%s7] sm:$0xf]
    %v861 = vld [vmem:[%s7 + $0x4] sm:$0xf]
    %v862 = vld [vmem:[%s7 + $0x8] sm:$0xf]
    %v863 = vld [vmem:[%s7 + $0xc] sm:$0xf]
    %v864 = vld [vmem:[%s8] sm:$0x1]
    %v866 = vperm.slane %v864, 0
    %v872 = vunpack.c.l.b16 %v860
    %v873 = vunpack.c.l.b16 %v861
    %v874 = vunpack.c.l.b16 %v862
    %v875 = vunpack.c.l.b16 %v863
    %v876 = vpack.c.b16 %v873, %v872
    %v877 = vpack.c.b16 %v875, %v874
    %v881 = vsel %vm507, %v859, 0
    %883 = vmatpush.bf16.msra.mxu0 0
    %884 = vmatpush.bf16.msra.mxu0 0
    %885 = vmatpush.bf16.msra.mxu0 0
    %886 = vmatpush.bf16.msra.mxu0 0
    %887 = vmatpush.bf16.msra.mxu0 0
    %888 = vmatpush.bf16.msra.mxu0 0
    %889 = vmatpush.bf16.msra.mxu0 %v877
    %890 = vmatpush.bf16.msra.mxu0 %v876
    %891 = vmatmul.bf16.gmra.mxu0 %v881
    %v892 = vpop.f32.mrf.mxu0
    %v893 = vadd.f32 %v866, %v892
    %v894 = vpop.f32.mrf.mxu0
    %895 = vdwg.mxu0
    %vm896 = vcmask 9216
    %897 = vst.msk [vmem:[#allocation2] sm:$0x3] %vm896, %v893
    // Predicated region
    $region38: #{network_cnn_forward.5} parent=1 // pred_check
      _
    $region39: #{network_cnn_forward.5} parent=1 // pred_check_branch
      %899 = sbr.rel (0) target = $region41
    $region40: #{network_cnn_forward.5} parent=1 // pred_region
      %901 = vsyncadd [#allocation3], 0
      %s903 = sshll.u32 [#allocation2], 4
      %s904 = int_to_ptr.vmem [resolvable:$true] %s903
      %s905 = sshll.u32 %s9, 4
      %s906 = int_to_ptr.hbm [resolvable:$true] %s905
      %908 = dma.vmem_to_hbm [thread:$0]  %s904, 32, %s906, [#allocation3]
    $region41: #{network_cnn_forward.5} parent=1 // pred_fallthru
      _
    // Predicated region
    $region42: #{network_cnn_forward.5} parent=1 // pred_check
      _
    $region43: #{network_cnn_forward.5} parent=1 // pred_check_branch
      %910 = sbr.rel (0) target = $region45
    $region44: #{network_cnn_forward.5} parent=1 // pred_region
      %912 = dma.done [#allocation3], 32
    $region45: #{network_cnn_forward.5} parent=1 // pred_fallthru
      _
    %913 = vsyncpa [#allocation3], 1

</llo_original>
